<compile_context>
chip_gen: v7x
topology: tpu7x:2x2x1
jax: 0.10.0
libtpu: 0.0.40
codegen_flags: <defaults>
</compile_context>

<pallas_src>
import jax
import jax.numpy as jnp
from jax.experimental import pallas as pl
from jax.experimental.pallas import tpu as pltpu

EPS = 1e-5

# bf16 operands + f32 accumulation is the native MXU fast path on v5e/v6e/v7x.
# Set to jnp.float32 for the closest bit-level match to the PyTorch reference.
MATMUL_DTYPE = jnp.bfloat16


def _round_up(x, m):
    return (x + m - 1) // m * m


# ----------------------- fused per-layer Pallas kernel ----------------------

def _fused_conv_matmul(patches, w2d, kind, *, bias=None, gamma=None, beta=None):
    """patches [M, K] @ w2d [K, Cout] with a fused epilogue, one pallas_call.

    kind:
      "bn_relu"      : in-kernel batch mean/var (training-mode BN) -> affine -> ReLU
      "bias"         : + bias              (encoder head)
      "bias_sigmoid" : + bias -> sigmoid   (decoder head)
    """
    M, K = patches.shape
    Cout = w2d.shape[1]
    Mp = _round_up(max(M, 1), 8)          # sublane granule only; no 128x padding
    a = patches
    if Mp != M:
        a = jnp.pad(a, ((0, Mp - M), (0, 0)))   # zero rows -> zero matmul rows
    a = a.astype(MATMUL_DTYPE)
    w = w2d.astype(MATMUL_DTYPE)

    if kind == "bn_relu":
        inv_m = float(1.0 / M)
        exact_rows = (Mp == M)

        def kernel(a_ref, w_ref, g_ref, b_ref, o_ref):
            y = jnp.dot(a_ref[...], w_ref[...],
                        preferred_element_type=jnp.float32)
            if exact_rows:
                mean = jnp.mean(y, axis=0, keepdims=True)
                var = jnp.mean(jnp.square(y - mean), axis=0, keepdims=True)
            else:
                # Padding rows are exactly zero (zero patches, no bias), so
                # plain sums over Mp rows equal sums over the true M rows.
                mean = jnp.sum(y, axis=0, keepdims=True) * inv_m
                var = jnp.sum(y * y, axis=0, keepdims=True) * inv_m - mean * mean
            scale = g_ref[...] * jax.lax.rsqrt(var + EPS)
            o_ref[...] = jnp.maximum((y - mean) * scale + b_ref[...], 0.0)

        vecs = (gamma.reshape(1, Cout).astype(jnp.float32),
                beta.reshape(1, Cout).astype(jnp.float32))

    elif kind == "bias":
        def kernel(a_ref, w_ref, bias_ref, o_ref):
            o_ref[...] = jnp.dot(a_ref[...], w_ref[...],
                                 preferred_element_type=jnp.float32) + bias_ref[...]

        vecs = (bias.reshape(1, Cout).astype(jnp.float32),)

    else:  # "bias_sigmoid"
        def kernel(a_ref, w_ref, bias_ref, o_ref):
            y = jnp.dot(a_ref[...], w_ref[...],
                        preferred_element_type=jnp.float32) + bias_ref[...]
            # Stable sigmoid on the otherwise-idle EUP slot.
            z = jnp.exp(-jnp.abs(y))
            r = pl.reciprocal(1.0 + z, approx=True)
            o_ref[...] = jnp.where(y >= 0.0, r, z * r)

        vecs = (bias.reshape(1, Cout).astype(jnp.float32),)

    vec_specs = [pl.BlockSpec((1, Cout), lambda i: (0, 0)) for _ in vecs]
    out = pl.pallas_call(
        kernel,
        out_shape=jax.ShapeDtypeStruct((Mp, Cout), jnp.float32),
        grid=(1,),   # whole layer fits in VMEM; single step (tiny problem)
        in_specs=[pl.BlockSpec((Mp, K), lambda i: (0, 0)),
                  pl.BlockSpec((K, Cout), lambda i: (0, 0))] + vec_specs,
        out_specs=pl.BlockSpec((Mp, Cout), lambda i: (0, 0)),
        compiler_params=pltpu.CompilerParams(
            dimension_semantics=("arbitrary",)),
    )(a, w, *vecs)
    return out[:M] if Mp != M else out


# ------------------------------- layer glue ---------------------------------

def _im2col_nhwc(x, k, stride, pad):
    """x: (N, H, W, C) -> patches [N*Ho*Wo, k*k*C], column order (kh, kw, C)."""
    N, H, W, C = x.shape
    xp = jnp.pad(x, ((0, 0), (pad, pad), (pad, pad), (0, 0)))
    Ho = (H + 2 * pad - k) // stride + 1
    Wo = (W + 2 * pad - k) // stride + 1
    cols = []
    for i in range(k):
        for j in range(k):
            cols.append(xp[:, i:i + stride * Ho:stride,
                           j:j + stride * Wo:stride, :])
    patches = jnp.concatenate(cols, axis=-1)        # (N, Ho, Wo, k*k*C)
    return patches.reshape(N * Ho * Wo, k * k * C), Ho, Wo


def conv2d_fused(x_nhwc, w, kind, stride, pad, **epilogue):
    """x NHWC, w (Cout, Cin, k, k) PyTorch Conv2d layout."""
    Cout, Cin, k, _ = w.shape
    patches, Ho, Wo = _im2col_nhwc(x_nhwc, k, stride, pad)
    w2d = jnp.transpose(w, (2, 3, 1, 0)).reshape(k * k * Cin, Cout)
    y = _fused_conv_matmul(patches, w2d, kind, **epilogue)
    return y.reshape(x_nhwc.shape[0], Ho, Wo, Cout)


def conv_transpose2d_fused(x_nhwc, w, kind, stride, pad, **epilogue):
    """x NHWC, w (Cin, Cout, k, k) PyTorch ConvTranspose2d layout."""
    Cin, Cout, k, _ = w.shape
    N, H, W, C = x_nhwc.shape
    # transposed conv == stride-dilate input, pad by (k-1-pad), then a normal
    # stride-1 conv with the spatially-flipped kernel (in/out channels swapped)
    if stride > 1:
        z = jnp.zeros((N, (H - 1) * stride + 1, (W - 1) * stride + 1, C),
                      x_nhwc.dtype)
        x_nhwc = z.at[:, ::stride, ::stride, :].set(x_nhwc)
    # TODO(synk): the dilated input is 75% zeros for stride=2; a stride^2
    # sub-kernel decomposition would skip those MACs (irrelevant at this size).
    w2d = jnp.transpose(jnp.flip(w, axis=(2, 3)),
                        (2, 3, 0, 1)).reshape(k * k * Cin, Cout)
    patches, Ho, Wo = _im2col_nhwc(x_nhwc, k, 1, k - 1 - pad)
    y = _fused_conv_matmul(patches, w2d, kind, **epilogue)
    return y.reshape(N, Ho, Wo, Cout)


# ------------------------------ forward pass --------------------------------

def autoencoder_forward(x, params):
    """x: NCHW float32. Returns (encoded NCHW, decoded NCHW)."""
    h = jnp.transpose(x, (0, 2, 3, 1))              # NCHW -> NHWC once
    # -------- encoder --------
    # Conv biases before BatchNorm are dropped: mean subtraction cancels them.
    for i in range(3):
        p = params["enc"][i]
        h = conv2d_fused(h, p["w"], "bn_relu", stride=2, pad=1,
                         gamma=p["gamma"], beta=p["beta"])
    p = params["enc"][3]
    encoded_nhwc = conv2d_fused(h, p["w"], "bias", stride=2, pad=1, bias=p["b"])
    # -------- decoder --------
    h = encoded_nhwc
    for i in range(3):
        p = params["dec"][i]
        h = conv_transpose2d_fused(h, p["w"], "bn_relu", stride=2, pad=1,
                                   gamma=p["gamma"], beta=p["beta"])
    p = params["dec"][3]
    decoded_nhwc = conv_transpose2d_fused(h, p["w"], "bias_sigmoid",
                                          stride=2, pad=1, bias=p["b"])
    # TODO(synk): BatchNorm running_mean/var momentum updates are a training
    # side effect with no bearing on the returned tensors; not modeled here.
    encoded = jnp.transpose(encoded_nhwc, (0, 3, 1, 2))
    decoded = jnp.transpose(decoded_nhwc, (0, 3, 1, 2))
    return encoded, decoded


# --------------------------------- params -----------------------------------

def init_params(key):
    """Deterministic PyTorch-style uniform(-1/sqrt(fan_in), 1/sqrt(fan_in))."""
    k = 4
    enc_chans = [(3, 16), (16, 32), (32, 64), (64, 64)]
    dec_chans = [(64, 64), (64, 32), (32, 16), (16, 3)]
    params = {"enc": [], "dec": []}
    for cin, cout in enc_chans:
        key, kw, kb = jax.random.split(key, 3)
        bound = 1.0 / (cin * k * k) ** 0.5
        params["enc"].append(dict(
            w=jax.random.uniform(kw, (cout, cin, k, k), jnp.float32,
                                 -bound, bound),
            b=jax.random.uniform(kb, (cout,), jnp.float32, -bound, bound),
            gamma=jnp.ones((cout,), jnp.float32),
            beta=jnp.zeros((cout,), jnp.float32)))
    for cin, cout in dec_chans:
        key, kw, kb = jax.random.split(key, 3)
        bound = 1.0 / (cout * k * k) ** 0.5   # PyTorch fan_in = w.size(1)*k*k
        params["dec"].append(dict(
            w=jax.random.uniform(kw, (cin, cout, k, k), jnp.float32,
                                 -bound, bound),
            b=jax.random.uniform(kb, (cout,), jnp.float32, -bound, bound),
            gamma=jnp.ones((cout,), jnp.float32),
            beta=jnp.zeros((cout,), jnp.float32)))
    return params


if __name__ == "__main__":
    key = jax.random.PRNGKey(0)
    pkey, xkey = jax.random.split(key)
    params = init_params(pkey)
    x = jax.random.uniform(xkey, (2, 3, 16, 16), jnp.float32)   # NCHW
    fwd = jax.jit(autoencoder_forward)
    encoded, decoded = fwd(x, params)
    jax.block_until_ready((encoded, decoded))
    assert encoded.shape == (2, 64, 1, 1), encoded.shape
    assert decoded.shape == (2, 3, 16, 16), decoded.shape
    assert bool(jnp.all(jnp.isfinite(encoded))) and bool(
        jnp.all(jnp.isfinite(decoded)))
    assert bool(jnp.all(decoded >= 0.0)) and bool(jnp.all(decoded <= 1.0))
    print("KERNEL_OK")
</pallas_src>

<mosaic_0001>
module attributes {stable_mosaic.version = 11 : i64} {
  func.func @kernel(%arg0: i32, %arg1: memref<128x48xbf16, #tpu.memory_space<vmem>>, %arg2: memref<48x16xbf16, #tpu.memory_space<vmem>>, %arg3: memref<1x16xf32, #tpu.memory_space<vmem>>, %arg4: memref<1x16xf32, #tpu.memory_space<vmem>>, %arg5: memref<128x16xf32, #tpu.memory_space<vmem>>) attributes {dimension_semantics = [#tpu.dimension_semantics<arbitrary>], iteration_bounds = array<i64: 1>, scalar_prefetch = 0 : i64, scratch_operands = 0 : i64, tpu.core_type = #tpu.core_type<tc>, window_params = [{pipeline_mode = #tpu.pipeline_mode<synchronous>, transform_indices = @transform_0, window_bounds = array<i64: 128, 48>}, {pipeline_mode = #tpu.pipeline_mode<synchronous>, transform_indices = @transform_1, window_bounds = array<i64: 48, 16>}, {pipeline_mode = #tpu.pipeline_mode<synchronous>, transform_indices = @transform_2, window_bounds = array<i64: 1, 16>}, {pipeline_mode = #tpu.pipeline_mode<synchronous>, transform_indices = @transform_3, window_bounds = array<i64: 1, 16>}, {pipeline_mode = #tpu.pipeline_mode<synchronous>, transform_indices = @transform_4, window_bounds = array<i64: 128, 16>}]} {
    %c0 = arith.constant 0 : index
    %c0_0 = arith.constant 0 : index
    %0 = vector.load %arg1[%c0, %c0_0] : memref<128x48xbf16, #tpu.memory_space<vmem>>, vector<128x48xbf16>
    %c0_1 = arith.constant 0 : index
    %c0_2 = arith.constant 0 : index
    %1 = vector.load %arg2[%c0_1, %c0_2] : memref<48x16xbf16, #tpu.memory_space<vmem>>, vector<48x16xbf16>
    %cst = arith.constant dense<0.000000e+00> : vector<128x16xf32>
    %2 = tpu.matmul %0, %1, %cst {dimension_numbers = #tpu.dot_dimension_numbers<[1], [0], [0], [1], [0, 0, 1, 1], [], []>} : vector<128x48xbf16>, vector<48x16xbf16>, vector<128x16xf32> -> vector<128x16xf32>
    %cst_3 = arith.constant dense<0.000000e+00> : vector<16xf32>
    %3 = vector.multi_reduction <add>, %2, %cst_3 [0] : vector<128x16xf32> to vector<16xf32>
    %4 = vector.shape_cast %3 : vector<16xf32> to vector<1x16xf32>
    %cst_4 = arith.constant 1.280000e+02 : f32
    %5 = vector.broadcast %cst_4 : f32 to vector<1x16xf32>
    %6 = arith.divf %4, %5 : vector<1x16xf32>
    %7 = vector.broadcast %6 : vector<1x16xf32> to vector<128x16xf32>
    %8 = arith.subf %2, %7 : vector<128x16xf32>
    %9 = arith.mulf %8, %8 : vector<128x16xf32>
    %cst_5 = arith.constant dense<0.000000e+00> : vector<16xf32>
    %10 = vector.multi_reduction <add>, %9, %cst_5 [0] : vector<128x16xf32> to vector<16xf32>
    %11 = vector.shape_cast %10 : vector<16xf32> to vector<1x16xf32>
    %cst_6 = arith.constant 1.280000e+02 : f32
    %12 = vector.broadcast %cst_6 : f32 to vector<1x16xf32>
    %13 = arith.divf %11, %12 : vector<1x16xf32>
    %c0_7 = arith.constant 0 : index
    %c0_8 = arith.constant 0 : index
    %14 = vector.load %arg3[%c0_7, %c0_8] : memref<1x16xf32, #tpu.memory_space<vmem>>, vector<1x16xf32>
    %cst_9 = arith.constant 9.99999974E-6 : f32
    %15 = vector.broadcast %cst_9 : f32 to vector<1x16xf32>
    %16 = arith.addf %13, %15 : vector<1x16xf32>
    %17 = math.rsqrt %16 : vector<1x16xf32>
    %18 = arith.mulf %14, %17 : vector<1x16xf32>
    %19 = vector.broadcast %6 : vector<1x16xf32> to vector<128x16xf32>
    %20 = arith.subf %2, %19 : vector<128x16xf32>
    %21 = vector.broadcast %18 : vector<1x16xf32> to vector<128x16xf32>
    %22 = arith.mulf %20, %21 : vector<128x16xf32>
    %c0_10 = arith.constant 0 : index
    %c0_11 = arith.constant 0 : index
    %23 = vector.load %arg4[%c0_10, %c0_11] : memref<1x16xf32, #tpu.memory_space<vmem>>, vector<1x16xf32>
    %24 = vector.broadcast %23 : vector<1x16xf32> to vector<128x16xf32>
    %25 = arith.addf %22, %24 : vector<128x16xf32>
    %cst_12 = arith.constant 0.000000e+00 : f32
    %26 = vector.broadcast %cst_12 : f32 to vector<128x16xf32>
    %27 = arith.maximumf %25, %26 : vector<128x16xf32>
    %c0_13 = arith.constant 0 : index
    %c0_14 = arith.constant 0 : index
    %28 = vector.load %arg5[%c0_13, %c0_14] : memref<128x16xf32, #tpu.memory_space<vmem>>, vector<128x16xf32>
    tpu.vector_store %arg5[%c0_13, %c0_14], %27 {strides = array<i32>} : memref<128x16xf32, #tpu.memory_space<vmem>>, vector<128x16xf32>,
    return
  }
  func.func @transform_0(%arg0: i32) -> (i32, i32) {
    %c0_i32 = arith.constant 0 : i32
    %c0_i32_0 = arith.constant 0 : i32
    %c0_i32_1 = arith.constant 0 : i32
    return %c0_i32, %c0_i32_0 : i32, i32
  }
  func.func @transform_1(%arg0: i32) -> (i32, i32) {
    %c0_i32 = arith.constant 0 : i32
    %c0_i32_0 = arith.constant 0 : i32
    %c0_i32_1 = arith.constant 0 : i32
    return %c0_i32, %c0_i32_0 : i32, i32
  }
  func.func @transform_2(%arg0: i32) -> (i32, i32) {
    %c0_i32 = arith.constant 0 : i32
    %c0_i32_0 = arith.constant 0 : i32
    %c0_i32_1 = arith.constant 0 : i32
    return %c0_i32, %c0_i32_0 : i32, i32
  }
  func.func @transform_3(%arg0: i32) -> (i32, i32) {
    %c0_i32 = arith.constant 0 : i32
    %c0_i32_0 = arith.constant 0 : i32
    %c0_i32_1 = arith.constant 0 : i32
    return %c0_i32, %c0_i32_0 : i32, i32
  }
  func.func @transform_4(%arg0: i32) -> (i32, i32) {
    %c0_i32 = arith.constant 0 : i32
    %c0_i32_0 = arith.constant 0 : i32
    %c0_i32_1 = arith.constant 0 : i32
    return %c0_i32, %c0_i32_0 : i32, i32
  }
}

module attributes {stable_mosaic.version = 11 : i64} {
  func.func @kernel(%arg0: i32, %arg1: memref<32x256xbf16, #tpu.memory_space<vmem>>, %arg2: memref<256x32xbf16, #tpu.memory_space<vmem>>, %arg3: memref<1x32xf32, #tpu.memory_space<vmem>>, %arg4: memref<1x32xf32, #tpu.memory_space<vmem>>, %arg5: memref<32x32xf32, #tpu.memory_space<vmem>>) attributes {dimension_semantics = [#tpu.dimension_semantics<arbitrary>], iteration_bounds = array<i64: 1>, scalar_prefetch = 0 : i64, scratch_operands = 0 : i64, tpu.core_type = #tpu.core_type<tc>, window_params = [{pipeline_mode = #tpu.pipeline_mode<synchronous>, transform_indices = @transform_0, window_bounds = array<i64: 32, 256>}, {pipeline_mode = #tpu.pipeline_mode<synchronous>, transform_indices = @transform_1, window_bounds = array<i64: 256, 32>}, {pipeline_mode = #tpu.pipeline_mode<synchronous>, transform_indices = @transform_2, window_bounds = array<i64: 1, 32>}, {pipeline_mode = #tpu.pipeline_mode<synchronous>, transform_indices = @transform_3, window_bounds = array<i64: 1, 32>}, {pipeline_mode = #tpu.pipeline_mode<synchronous>, transform_indices = @transform_4, window_bounds = array<i64: 32, 32>}]} {
    %c0 = arith.constant 0 : index
    %c0_0 = arith.constant 0 : index
    %0 = vector.load %arg1[%c0, %c0_0] : memref<32x256xbf16, #tpu.memory_space<vmem>>, vector<32x256xbf16>
    %c0_1 = arith.constant 0 : index
    %c0_2 = arith.constant 0 : index
    %1 = vector.load %arg2[%c0_1, %c0_2] : memref<256x32xbf16, #tpu.memory_space<vmem>>, vector<256x32xbf16>
    %cst = arith.constant dense<0.000000e+00> : vector<32x32xf32>
    %2 = tpu.matmul %0, %1, %cst {dimension_numbers = #tpu.dot_dimension_numbers<[1], [0], [0], [1], [0, 0, 1, 1], [], []>} : vector<32x256xbf16>, vector<256x32xbf16>, vector<32x32xf32> -> vector<32x32xf32>
    %cst_3 = arith.constant dense<0.000000e+00> : vector<32xf32>
    %3 = vector.multi_reduction <add>, %2, %cst_3 [0] : vector<32x32xf32> to vector<32xf32>
    %4 = vector.shape_cast %3 : vector<32xf32> to vector<1x32xf32>
    %cst_4 = arith.constant 3.200000e+01 : f32
    %5 = vector.broadcast %cst_4 : f32 to vector<1x32xf32>
    %6 = arith.divf %4, %5 : vector<1x32xf32>
    %7 = vector.broadcast %6 : vector<1x32xf32> to vector<32x32xf32>
    %8 = arith.subf %2, %7 : vector<32x32xf32>
    %9 = arith.mulf %8, %8 : vector<32x32xf32>
    %cst_5 = arith.constant dense<0.000000e+00> : vector<32xf32>
    %10 = vector.multi_reduction <add>, %9, %cst_5 [0] : vector<32x32xf32> to vector<32xf32>
    %11 = vector.shape_cast %10 : vector<32xf32> to vector<1x32xf32>
    %cst_6 = arith.constant 3.200000e+01 : f32
    %12 = vector.broadcast %cst_6 : f32 to vector<1x32xf32>
    %13 = arith.divf %11, %12 : vector<1x32xf32>
    %c0_7 = arith.constant 0 : index
    %c0_8 = arith.constant 0 : index
    %14 = vector.load %arg3[%c0_7, %c0_8] : memref<1x32xf32, #tpu.memory_space<vmem>>, vector<1x32xf32>
    %cst_9 = arith.constant 9.99999974E-6 : f32
    %15 = vector.broadcast %cst_9 : f32 to vector<1x32xf32>
    %16 = arith.addf %13, %15 : vector<1x32xf32>
    %17 = math.rsqrt %16 : vector<1x32xf32>
    %18 = arith.mulf %14, %17 : vector<1x32xf32>
    %19 = vector.broadcast %6 : vector<1x32xf32> to vector<32x32xf32>
    %20 = arith.subf %2, %19 : vector<32x32xf32>
    %21 = vector.broadcast %18 : vector<1x32xf32> to vector<32x32xf32>
    %22 = arith.mulf %20, %21 : vector<32x32xf32>
    %c0_10 = arith.constant 0 : index
    %c0_11 = arith.constant 0 : index
    %23 = vector.load %arg4[%c0_10, %c0_11] : memref<1x32xf32, #tpu.memory_space<vmem>>, vector<1x32xf32>
    %24 = vector.broadcast %23 : vector<1x32xf32> to vector<32x32xf32>
    %25 = arith.addf %22, %24 : vector<32x32xf32>
    %cst_12 = arith.constant 0.000000e+00 : f32
    %26 = vector.broadcast %cst_12 : f32 to vector<32x32xf32>
    %27 = arith.maximumf %25, %26 : vector<32x32xf32>
    %c0_13 = arith.constant 0 : index
    %c0_14 = arith.constant 0 : index
    %28 = vector.load %arg5[%c0_13, %c0_14] : memref<32x32xf32, #tpu.memory_space<vmem>>, vector<32x32xf32>
    tpu.vector_store %arg5[%c0_13, %c0_14], %27 {strides = array<i32>} : memref<32x32xf32, #tpu.memory_space<vmem>>, vector<32x32xf32>,
    return
  }
  func.func @transform_0(%arg0: i32) -> (i32, i32) {
    %c0_i32 = arith.constant 0 : i32
    %c0_i32_0 = arith.constant 0 : i32
    %c0_i32_1 = arith.constant 0 : i32
    return %c0_i32, %c0_i32_0 : i32, i32
  }
  func.func @transform_1(%arg0: i32) -> (i32, i32) {
    %c0_i32 = arith.constant 0 : i32
    %c0_i32_0 = arith.constant 0 : i32
    %c0_i32_1 = arith.constant 0 : i32
    return %c0_i32, %c0_i32_0 : i32, i32
  }
  func.func @transform_2(%arg0: i32) -> (i32, i32) {
    %c0_i32 = arith.constant 0 : i32
    %c0_i32_0 = arith.constant 0 : i32
    %c0_i32_1 = arith.constant 0 : i32
    return %c0_i32, %c0_i32_0 : i32, i32
  }
  func.func @transform_3(%arg0: i32) -> (i32, i32) {
    %c0_i32 = arith.constant 0 : i32
    %c0_i32_0 = arith.constant 0 : i32
    %c0_i32_1 = arith.constant 0 : i32
    return %c0_i32, %c0_i32_0 : i32, i32
  }
  func.func @transform_4(%arg0: i32) -> (i32, i32) {
    %c0_i32 = arith.constant 0 : i32
    %c0_i32_0 = arith.constant 0 : i32
    %c0_i32_1 = arith.constant 0 : i32
    return %c0_i32, %c0_i32_0 : i32, i32
  }
}

module attributes {stable_mosaic.version = 11 : i64} {
  func.func @kernel(%arg0: i32, %arg1: memref<8x512xbf16, #tpu.memory_space<vmem>>, %arg2: memref<512x64xbf16, #tpu.memory_space<vmem>>, %arg3: memref<1x64xf32, #tpu.memory_space<vmem>>, %arg4: memref<1x64xf32, #tpu.memory_space<vmem>>, %arg5: memref<8x64xf32, #tpu.memory_space<vmem>>) attributes {dimension_semantics = [#tpu.dimension_semantics<arbitrary>], iteration_bounds = array<i64: 1>, scalar_prefetch = 0 : i64, scratch_operands = 0 : i64, tpu.core_type = #tpu.core_type<tc>, window_params = [{pipeline_mode = #tpu.pipeline_mode<synchronous>, transform_indices = @transform_0, window_bounds = array<i64: 8, 512>}, {pipeline_mode = #tpu.pipeline_mode<synchronous>, transform_indices = @transform_1, window_bounds = array<i64: 512, 64>}, {pipeline_mode = #tpu.pipeline_mode<synchronous>, transform_indices = @transform_2, window_bounds = array<i64: 1, 64>}, {pipeline_mode = #tpu.pipeline_mode<synchronous>, transform_indices = @transform_3, window_bounds = array<i64: 1, 64>}, {pipeline_mode = #tpu.pipeline_mode<synchronous>, transform_indices = @transform_4, window_bounds = array<i64: 8, 64>}]} {
    %c0 = arith.constant 0 : index
    %c0_0 = arith.constant 0 : index
    %0 = vector.load %arg1[%c0, %c0_0] : memref<8x512xbf16, #tpu.memory_space<vmem>>, vector<8x512xbf16>
    %c0_1 = arith.constant 0 : index
    %c0_2 = arith.constant 0 : index
    %1 = vector.load %arg2[%c0_1, %c0_2] : memref<512x64xbf16, #tpu.memory_space<vmem>>, vector<512x64xbf16>
    %cst = arith.constant dense<0.000000e+00> : vector<8x64xf32>
    %2 = tpu.matmul %0, %1, %cst {dimension_numbers = #tpu.dot_dimension_numbers<[1], [0], [0], [1], [0, 0, 1, 1], [], []>} : vector<8x512xbf16>, vector<512x64xbf16>, vector<8x64xf32> -> vector<8x64xf32>
    %cst_3 = arith.constant dense<0.000000e+00> : vector<64xf32>
    %3 = vector.multi_reduction <add>, %2, %cst_3 [0] : vector<8x64xf32> to vector<64xf32>
    %4 = vector.shape_cast %3 : vector<64xf32> to vector<1x64xf32>
    %cst_4 = arith.constant 8.000000e+00 : f32
    %5 = vector.broadcast %cst_4 : f32 to vector<1x64xf32>
    %6 = arith.divf %4, %5 : vector<1x64xf32>
    %7 = vector.broadcast %6 : vector<1x64xf32> to vector<8x64xf32>
    %8 = arith.subf %2, %7 : vector<8x64xf32>
    %9 = arith.mulf %8, %8 : vector<8x64xf32>
    %cst_5 = arith.constant dense<0.000000e+00> : vector<64xf32>
    %10 = vector.multi_reduction <add>, %9, %cst_5 [0] : vector<8x64xf32> to vector<64xf32>
    %11 = vector.shape_cast %10 : vector<64xf32> to vector<1x64xf32>
    %cst_6 = arith.constant 8.000000e+00 : f32
    %12 = vector.broadcast %cst_6 : f32 to vector<1x64xf32>
    %13 = arith.divf %11, %12 : vector<1x64xf32>
    %c0_7 = arith.constant 0 : index
    %c0_8 = arith.constant 0 : index
    %14 = vector.load %arg3[%c0_7, %c0_8] : memref<1x64xf32, #tpu.memory_space<vmem>>, vector<1x64xf32>
    %cst_9 = arith.constant 9.99999974E-6 : f32
    %15 = vector.broadcast %cst_9 : f32 to vector<1x64xf32>
    %16 = arith.addf %13, %15 : vector<1x64xf32>
    %17 = math.rsqrt %16 : vector<1x64xf32>
    %18 = arith.mulf %14, %17 : vector<1x64xf32>
    %19 = vector.broadcast %6 : vector<1x64xf32> to vector<8x64xf32>
    %20 = arith.subf %2, %19 : vector<8x64xf32>
    %21 = vector.broadcast %18 : vector<1x64xf32> to vector<8x64xf32>
    %22 = arith.mulf %20, %21 : vector<8x64xf32>
    %c0_10 = arith.constant 0 : index
    %c0_11 = arith.constant 0 : index
    %23 = vector.load %arg4[%c0_10, %c0_11] : memref<1x64xf32, #tpu.memory_space<vmem>>, vector<1x64xf32>
    %24 = vector.broadcast %23 : vector<1x64xf32> to vector<8x64xf32>
    %25 = arith.addf %22, %24 : vector<8x64xf32>
    %cst_12 = arith.constant 0.000000e+00 : f32
    %26 = vector.broadcast %cst_12 : f32 to vector<8x64xf32>
    %27 = arith.maximumf %25, %26 : vector<8x64xf32>
    %c0_13 = arith.constant 0 : index
    %c0_14 = arith.constant 0 : index
    %28 = vector.load %arg5[%c0_13, %c0_14] : memref<8x64xf32, #tpu.memory_space<vmem>>, vector<8x64xf32>
    tpu.vector_store %arg5[%c0_13, %c0_14], %27 {strides = array<i32>} : memref<8x64xf32, #tpu.memory_space<vmem>>, vector<8x64xf32>,
    return
  }
  func.func @transform_0(%arg0: i32) -> (i32, i32) {
    %c0_i32 = arith.constant 0 : i32
    %c0_i32_0 = arith.constant 0 : i32
    %c0_i32_1 = arith.constant 0 : i32
    return %c0_i32, %c0_i32_0 : i32, i32
  }
  func.func @transform_1(%arg0: i32) -> (i32, i32) {
    %c0_i32 = arith.constant 0 : i32
    %c0_i32_0 = arith.constant 0 : i32
    %c0_i32_1 = arith.constant 0 : i32
    return %c0_i32, %c0_i32_0 : i32, i32
  }
  func.func @transform_2(%arg0: i32) -> (i32, i32) {
    %c0_i32 = arith.constant 0 : i32
    %c0_i32_0 = arith.constant 0 : i32
    %c0_i32_1 = arith.constant 0 : i32
    return %c0_i32, %c0_i32_0 : i32, i32
  }
  func.func @transform_3(%arg0: i32) -> (i32, i32) {
    %c0_i32 = arith.constant 0 : i32
    %c0_i32_0 = arith.constant 0 : i32
    %c0_i32_1 = arith.constant 0 : i32
    return %c0_i32, %c0_i32_0 : i32, i32
  }
  func.func @transform_4(%arg0: i32) -> (i32, i32) {
    %c0_i32 = arith.constant 0 : i32
    %c0_i32_0 = arith.constant 0 : i32
    %c0_i32_1 = arith.constant 0 : i32
    return %c0_i32, %c0_i32_0 : i32, i32
  }
}

module attributes {stable_mosaic.version = 11 : i64} {
  func.func @kernel(%arg0: i32, %arg1: memref<8x1024xbf16, #tpu.memory_space<vmem>>, %arg2: memref<1024x64xbf16, #tpu.memory_space<vmem>>, %arg3: memref<1x64xf32, #tpu.memory_space<vmem>>, %arg4: memref<8x64xf32, #tpu.memory_space<vmem>>) attributes {dimension_semantics = [#tpu.dimension_semantics<arbitrary>], iteration_bounds = array<i64: 1>, scalar_prefetch = 0 : i64, scratch_operands = 0 : i64, tpu.core_type = #tpu.core_type<tc>, window_params = [{pipeline_mode = #tpu.pipeline_mode<synchronous>, transform_indices = @transform_0, window_bounds = array<i64: 8, 1024>}, {pipeline_mode = #tpu.pipeline_mode<synchronous>, transform_indices = @transform_1, window_bounds = array<i64: 1024, 64>}, {pipeline_mode = #tpu.pipeline_mode<synchronous>, transform_indices = @transform_2, window_bounds = array<i64: 1, 64>}, {pipeline_mode = #tpu.pipeline_mode<synchronous>, transform_indices = @transform_3, window_bounds = array<i64: 8, 64>}]} {
    %c0 = arith.constant 0 : index
    %c0_0 = arith.constant 0 : index
    %0 = vector.load %arg1[%c0, %c0_0] : memref<8x1024xbf16, #tpu.memory_space<vmem>>, vector<8x1024xbf16>
    %c0_1 = arith.constant 0 : index
    %c0_2 = arith.constant 0 : index
    %1 = vector.load %arg2[%c0_1, %c0_2] : memref<1024x64xbf16, #tpu.memory_space<vmem>>, vector<1024x64xbf16>
    %cst = arith.constant dense<0.000000e+00> : vector<8x64xf32>
    %2 = tpu.matmul %0, %1, %cst {dimension_numbers = #tpu.dot_dimension_numbers<[1], [0], [0], [1], [0, 0, 1, 1], [], []>} : vector<8x1024xbf16>, vector<1024x64xbf16>, vector<8x64xf32> -> vector<8x64xf32>
    %c0_3 = arith.constant 0 : index
    %c0_4 = arith.constant 0 : index
    %3 = vector.load %arg3[%c0_3, %c0_4] : memref<1x64xf32, #tpu.memory_space<vmem>>, vector<1x64xf32>
    %4 = vector.broadcast %3 : vector<1x64xf32> to vector<8x64xf32>
    %5 = arith.addf %2, %4 : vector<8x64xf32>
    %c0_5 = arith.constant 0 : index
    %c0_6 = arith.constant 0 : index
    %6 = vector.load %arg4[%c0_5, %c0_6] : memref<8x64xf32, #tpu.memory_space<vmem>>, vector<8x64xf32>
    tpu.vector_store %arg4[%c0_5, %c0_6], %5 {strides = array<i32>} : memref<8x64xf32, #tpu.memory_space<vmem>>, vector<8x64xf32>,
    return
  }
  func.func @transform_0(%arg0: i32) -> (i32, i32) {
    %c0_i32 = arith.constant 0 : i32
    %c0_i32_0 = arith.constant 0 : i32
    %c0_i32_1 = arith.constant 0 : i32
    return %c0_i32, %c0_i32_0 : i32, i32
  }
  func.func @transform_1(%arg0: i32) -> (i32, i32) {
    %c0_i32 = arith.constant 0 : i32
    %c0_i32_0 = arith.constant 0 : i32
    %c0_i32_1 = arith.constant 0 : i32
    return %c0_i32, %c0_i32_0 : i32, i32
  }
  func.func @transform_2(%arg0: i32) -> (i32, i32) {
    %c0_i32 = arith.constant 0 : i32
    %c0_i32_0 = arith.constant 0 : i32
    %c0_i32_1 = arith.constant 0 : i32
    return %c0_i32, %c0_i32_0 : i32, i32
  }
  func.func @transform_3(%arg0: i32) -> (i32, i32) {
    %c0_i32 = arith.constant 0 : i32
    %c0_i32_0 = arith.constant 0 : i32
    %c0_i32_1 = arith.constant 0 : i32
    return %c0_i32, %c0_i32_0 : i32, i32
  }
}

module attributes {stable_mosaic.version = 11 : i64} {
  func.func @kernel(%arg0: i32, %arg1: memref<8x1024xbf16, #tpu.memory_space<vmem>>, %arg2: memref<1024x64xbf16, #tpu.memory_space<vmem>>, %arg3: memref<1x64xf32, #tpu.memory_space<vmem>>, %arg4: memref<1x64xf32, #tpu.memory_space<vmem>>, %arg5: memref<8x64xf32, #tpu.memory_space<vmem>>) attributes {dimension_semantics = [#tpu.dimension_semantics<arbitrary>], iteration_bounds = array<i64: 1>, scalar_prefetch = 0 : i64, scratch_operands = 0 : i64, tpu.core_type = #tpu.core_type<tc>, window_params = [{pipeline_mode = #tpu.pipeline_mode<synchronous>, transform_indices = @transform_0, window_bounds = array<i64: 8, 1024>}, {pipeline_mode = #tpu.pipeline_mode<synchronous>, transform_indices = @transform_1, window_bounds = array<i64: 1024, 64>}, {pipeline_mode = #tpu.pipeline_mode<synchronous>, transform_indices = @transform_2, window_bounds = array<i64: 1, 64>}, {pipeline_mode = #tpu.pipeline_mode<synchronous>, transform_indices = @transform_3, window_bounds = array<i64: 1, 64>}, {pipeline_mode = #tpu.pipeline_mode<synchronous>, transform_indices = @transform_4, window_bounds = array<i64: 8, 64>}]} {
    %c0 = arith.constant 0 : index
    %c0_0 = arith.constant 0 : index
    %0 = vector.load %arg1[%c0, %c0_0] : memref<8x1024xbf16, #tpu.memory_space<vmem>>, vector<8x1024xbf16>
    %c0_1 = arith.constant 0 : index
    %c0_2 = arith.constant 0 : index
    %1 = vector.load %arg2[%c0_1, %c0_2] : memref<1024x64xbf16, #tpu.memory_space<vmem>>, vector<1024x64xbf16>
    %cst = arith.constant dense<0.000000e+00> : vector<8x64xf32>
    %2 = tpu.matmul %0, %1, %cst {dimension_numbers = #tpu.dot_dimension_numbers<[1], [0], [0], [1], [0, 0, 1, 1], [], []>} : vector<8x1024xbf16>, vector<1024x64xbf16>, vector<8x64xf32> -> vector<8x64xf32>
    %cst_3 = arith.constant dense<0.000000e+00> : vector<64xf32>
    %3 = vector.multi_reduction <add>, %2, %cst_3 [0] : vector<8x64xf32> to vector<64xf32>
    %4 = vector.shape_cast %3 : vector<64xf32> to vector<1x64xf32>
    %cst_4 = arith.constant 8.000000e+00 : f32
    %5 = vector.broadcast %cst_4 : f32 to vector<1x64xf32>
    %6 = arith.divf %4, %5 : vector<1x64xf32>
    %7 = vector.broadcast %6 : vector<1x64xf32> to vector<8x64xf32>
    %8 = arith.subf %2, %7 : vector<8x64xf32>
    %9 = arith.mulf %8, %8 : vector<8x64xf32>
    %cst_5 = arith.constant dense<0.000000e+00> : vector<64xf32>
    %10 = vector.multi_reduction <add>, %9, %cst_5 [0] : vector<8x64xf32> to vector<64xf32>
    %11 = vector.shape_cast %10 : vector<64xf32> to vector<1x64xf32>
    %cst_6 = arith.constant 8.000000e+00 : f32
    %12 = vector.broadcast %cst_6 : f32 to vector<1x64xf32>
    %13 = arith.divf %11, %12 : vector<1x64xf32>
    %c0_7 = arith.constant 0 : index
    %c0_8 = arith.constant 0 : index
    %14 = vector.load %arg3[%c0_7, %c0_8] : memref<1x64xf32, #tpu.memory_space<vmem>>, vector<1x64xf32>
    %cst_9 = arith.constant 9.99999974E-6 : f32
    %15 = vector.broadcast %cst_9 : f32 to vector<1x64xf32>
    %16 = arith.addf %13, %15 : vector<1x64xf32>
    %17 = math.rsqrt %16 : vector<1x64xf32>
    %18 = arith.mulf %14, %17 : vector<1x64xf32>
    %19 = vector.broadcast %6 : vector<1x64xf32> to vector<8x64xf32>
    %20 = arith.subf %2, %19 : vector<8x64xf32>
    %21 = vector.broadcast %18 : vector<1x64xf32> to vector<8x64xf32>
    %22 = arith.mulf %20, %21 : vector<8x64xf32>
    %c0_10 = arith.constant 0 : index
    %c0_11 = arith.constant 0 : index
    %23 = vector.load %arg4[%c0_10, %c0_11] : memref<1x64xf32, #tpu.memory_space<vmem>>, vector<1x64xf32>
    %24 = vector.broadcast %23 : vector<1x64xf32> to vector<8x64xf32>
    %25 = arith.addf %22, %24 : vector<8x64xf32>
    %cst_12 = arith.constant 0.000000e+00 : f32
    %26 = vector.broadcast %cst_12 : f32 to vector<8x64xf32>
    %27 = arith.maximumf %25, %26 : vector<8x64xf32>
    %c0_13 = arith.constant 0 : index
    %c0_14 = arith.constant 0 : index
    %28 = vector.load %arg5[%c0_13, %c0_14] : memref<8x64xf32, #tpu.memory_space<vmem>>, vector<8x64xf32>
    tpu.vector_store %arg5[%c0_13, %c0_14], %27 {strides = array<i32>} : memref<8x64xf32, #tpu.memory_space<vmem>>, vector<8x64xf32>,
    return
  }
  func.func @transform_0(%arg0: i32) -> (i32, i32) {
    %c0_i32 = arith.constant 0 : i32
    %c0_i32_0 = arith.constant 0 : i32
    %c0_i32_1 = arith.constant 0 : i32
    return %c0_i32, %c0_i32_0 : i32, i32
  }
  func.func @transform_1(%arg0: i32) -> (i32, i32) {
    %c0_i32 = arith.constant 0 : i32
    %c0_i32_0 = arith.constant 0 : i32
    %c0_i32_1 = arith.constant 0 : i32
    return %c0_i32, %c0_i32_0 : i32, i32
  }
  func.func @transform_2(%arg0: i32) -> (i32, i32) {
    %c0_i32 = arith.constant 0 : i32
    %c0_i32_0 = arith.constant 0 : i32
    %c0_i32_1 = arith.constant 0 : i32
    return %c0_i32, %c0_i32_0 : i32, i32
  }
  func.func @transform_3(%arg0: i32) -> (i32, i32) {
    %c0_i32 = arith.constant 0 : i32
    %c0_i32_0 = arith.constant 0 : i32
    %c0_i32_1 = arith.constant 0 : i32
    return %c0_i32, %c0_i32_0 : i32, i32
  }
  func.func @transform_4(%arg0: i32) -> (i32, i32) {
    %c0_i32 = arith.constant 0 : i32
    %c0_i32_0 = arith.constant 0 : i32
    %c0_i32_1 = arith.constant 0 : i32
    return %c0_i32, %c0_i32_0 : i32, i32
  }
}

module attributes {stable_mosaic.version = 11 : i64} {
  func.func @kernel(%arg0: i32, %arg1: memref<32x1024xbf16, #tpu.memory_space<vmem>>, %arg2: memref<1024x32xbf16, #tpu.memory_space<vmem>>, %arg3: memref<1x32xf32, #tpu.memory_space<vmem>>, %arg4: memref<1x32xf32, #tpu.memory_space<vmem>>, %arg5: memref<32x32xf32, #tpu.memory_space<vmem>>) attributes {dimension_semantics = [#tpu.dimension_semantics<arbitrary>], iteration_bounds = array<i64: 1>, scalar_prefetch = 0 : i64, scratch_operands = 0 : i64, tpu.core_type = #tpu.core_type<tc>, window_params = [{pipeline_mode = #tpu.pipeline_mode<synchronous>, transform_indices = @transform_0, window_bounds = array<i64: 32, 1024>}, {pipeline_mode = #tpu.pipeline_mode<synchronous>, transform_indices = @transform_1, window_bounds = array<i64: 1024, 32>}, {pipeline_mode = #tpu.pipeline_mode<synchronous>, transform_indices = @transform_2, window_bounds = array<i64: 1, 32>}, {pipeline_mode = #tpu.pipeline_mode<synchronous>, transform_indices = @transform_3, window_bounds = array<i64: 1, 32>}, {pipeline_mode = #tpu.pipeline_mode<synchronous>, transform_indices = @transform_4, window_bounds = array<i64: 32, 32>}]} {
    %c0 = arith.constant 0 : index
    %c0_0 = arith.constant 0 : index
    %0 = vector.load %arg1[%c0, %c0_0] : memref<32x1024xbf16, #tpu.memory_space<vmem>>, vector<32x1024xbf16>
    %c0_1 = arith.constant 0 : index
    %c0_2 = arith.constant 0 : index
    %1 = vector.load %arg2[%c0_1, %c0_2] : memref<1024x32xbf16, #tpu.memory_space<vmem>>, vector<1024x32xbf16>
    %cst = arith.constant dense<0.000000e+00> : vector<32x32xf32>
    %2 = tpu.matmul %0, %1, %cst {dimension_numbers = #tpu.dot_dimension_numbers<[1], [0], [0], [1], [0, 0, 1, 1], [], []>} : vector<32x1024xbf16>, vector<1024x32xbf16>, vector<32x32xf32> -> vector<32x32xf32>
    %cst_3 = arith.constant dense<0.000000e+00> : vector<32xf32>
    %3 = vector.multi_reduction <add>, %2, %cst_3 [0] : vector<32x32xf32> to vector<32xf32>
    %4 = vector.shape_cast %3 : vector<32xf32> to vector<1x32xf32>
    %cst_4 = arith.constant 3.200000e+01 : f32
    %5 = vector.broadcast %cst_4 : f32 to vector<1x32xf32>
    %6 = arith.divf %4, %5 : vector<1x32xf32>
    %7 = vector.broadcast %6 : vector<1x32xf32> to vector<32x32xf32>
    %8 = arith.subf %2, %7 : vector<32x32xf32>
    %9 = arith.mulf %8, %8 : vector<32x32xf32>
    %cst_5 = arith.constant dense<0.000000e+00> : vector<32xf32>
    %10 = vector.multi_reduction <add>, %9, %cst_5 [0] : vector<32x32xf32> to vector<32xf32>
    %11 = vector.shape_cast %10 : vector<32xf32> to vector<1x32xf32>
    %cst_6 = arith.constant 3.200000e+01 : f32
    %12 = vector.broadcast %cst_6 : f32 to vector<1x32xf32>
    %13 = arith.divf %11, %12 : vector<1x32xf32>
    %c0_7 = arith.constant 0 : index
    %c0_8 = arith.constant 0 : index
    %14 = vector.load %arg3[%c0_7, %c0_8] : memref<1x32xf32, #tpu.memory_space<vmem>>, vector<1x32xf32>
    %cst_9 = arith.constant 9.99999974E-6 : f32
    %15 = vector.broadcast %cst_9 : f32 to vector<1x32xf32>
    %16 = arith.addf %13, %15 : vector<1x32xf32>
    %17 = math.rsqrt %16 : vector<1x32xf32>
    %18 = arith.mulf %14, %17 : vector<1x32xf32>
    %19 = vector.broadcast %6 : vector<1x32xf32> to vector<32x32xf32>
    %20 = arith.subf %2, %19 : vector<32x32xf32>
    %21 = vector.broadcast %18 : vector<1x32xf32> to vector<32x32xf32>
    %22 = arith.mulf %20, %21 : vector<32x32xf32>
    %c0_10 = arith.constant 0 : index
    %c0_11 = arith.constant 0 : index
    %23 = vector.load %arg4[%c0_10, %c0_11] : memref<1x32xf32, #tpu.memory_space<vmem>>, vector<1x32xf32>
    %24 = vector.broadcast %23 : vector<1x32xf32> to vector<32x32xf32>
    %25 = arith.addf %22, %24 : vector<32x32xf32>
    %cst_12 = arith.constant 0.000000e+00 : f32
    %26 = vector.broadcast %cst_12 : f32 to vector<32x32xf32>
    %27 = arith.maximumf %25, %26 : vector<32x32xf32>
    %c0_13 = arith.constant 0 : index
    %c0_14 = arith.constant 0 : index
    %28 = vector.load %arg5[%c0_13, %c0_14] : memref<32x32xf32, #tpu.memory_space<vmem>>, vector<32x32xf32>
    tpu.vector_store %arg5[%c0_13, %c0_14], %27 {strides = array<i32>} : memref<32x32xf32, #tpu.memory_space<vmem>>, vector<32x32xf32>,
    return
  }
  func.func @transform_0(%arg0: i32) -> (i32, i32) {
    %c0_i32 = arith.constant 0 : i32
    %c0_i32_0 = arith.constant 0 : i32
    %c0_i32_1 = arith.constant 0 : i32
    return %c0_i32, %c0_i32_0 : i32, i32
  }
  func.func @transform_1(%arg0: i32) -> (i32, i32) {
    %c0_i32 = arith.constant 0 : i32
    %c0_i32_0 = arith.constant 0 : i32
    %c0_i32_1 = arith.constant 0 : i32
    return %c0_i32, %c0_i32_0 : i32, i32
  }
  func.func @transform_2(%arg0: i32) -> (i32, i32) {
    %c0_i32 = arith.constant 0 : i32
    %c0_i32_0 = arith.constant 0 : i32
    %c0_i32_1 = arith.constant 0 : i32
    return %c0_i32, %c0_i32_0 : i32, i32
  }
  func.func @transform_3(%arg0: i32) -> (i32, i32) {
    %c0_i32 = arith.constant 0 : i32
    %c0_i32_0 = arith.constant 0 : i32
    %c0_i32_1 = arith.constant 0 : i32
    return %c0_i32, %c0_i32_0 : i32, i32
  }
  func.func @transform_4(%arg0: i32) -> (i32, i32) {
    %c0_i32 = arith.constant 0 : i32
    %c0_i32_0 = arith.constant 0 : i32
    %c0_i32_1 = arith.constant 0 : i32
    return %c0_i32, %c0_i32_0 : i32, i32
  }
}

module attributes {stable_mosaic.version = 11 : i64} {
  func.func @kernel(%arg0: i32, %arg1: memref<128x512xbf16, #tpu.memory_space<vmem>>, %arg2: memref<512x16xbf16, #tpu.memory_space<vmem>>, %arg3: memref<1x16xf32, #tpu.memory_space<vmem>>, %arg4: memref<1x16xf32, #tpu.memory_space<vmem>>, %arg5: memref<128x16xf32, #tpu.memory_space<vmem>>) attributes {dimension_semantics = [#tpu.dimension_semantics<arbitrary>], iteration_bounds = array<i64: 1>, scalar_prefetch = 0 : i64, scratch_operands = 0 : i64, tpu.core_type = #tpu.core_type<tc>, window_params = [{pipeline_mode = #tpu.pipeline_mode<synchronous>, transform_indices = @transform_0, window_bounds = array<i64: 128, 512>}, {pipeline_mode = #tpu.pipeline_mode<synchronous>, transform_indices = @transform_1, window_bounds = array<i64: 512, 16>}, {pipeline_mode = #tpu.pipeline_mode<synchronous>, transform_indices = @transform_2, window_bounds = array<i64: 1, 16>}, {pipeline_mode = #tpu.pipeline_mode<synchronous>, transform_indices = @transform_3, window_bounds = array<i64: 1, 16>}, {pipeline_mode = #tpu.pipeline_mode<synchronous>, transform_indices = @transform_4, window_bounds = array<i64: 128, 16>}]} {
    %c0 = arith.constant 0 : index
    %c0_0 = arith.constant 0 : index
    %0 = vector.load %arg1[%c0, %c0_0] : memref<128x512xbf16, #tpu.memory_space<vmem>>, vector<128x512xbf16>
    %c0_1 = arith.constant 0 : index
    %c0_2 = arith.constant 0 : index
    %1 = vector.load %arg2[%c0_1, %c0_2] : memref<512x16xbf16, #tpu.memory_space<vmem>>, vector<512x16xbf16>
    %cst = arith.constant dense<0.000000e+00> : vector<128x16xf32>
    %2 = tpu.matmul %0, %1, %cst {dimension_numbers = #tpu.dot_dimension_numbers<[1], [0], [0], [1], [0, 0, 1, 1], [], []>} : vector<128x512xbf16>, vector<512x16xbf16>, vector<128x16xf32> -> vector<128x16xf32>
    %cst_3 = arith.constant dense<0.000000e+00> : vector<16xf32>
    %3 = vector.multi_reduction <add>, %2, %cst_3 [0] : vector<128x16xf32> to vector<16xf32>
    %4 = vector.shape_cast %3 : vector<16xf32> to vector<1x16xf32>
    %cst_4 = arith.constant 1.280000e+02 : f32
    %5 = vector.broadcast %cst_4 : f32 to vector<1x16xf32>
    %6 = arith.divf %4, %5 : vector<1x16xf32>
    %7 = vector.broadcast %6 : vector<1x16xf32> to vector<128x16xf32>
    %8 = arith.subf %2, %7 : vector<128x16xf32>
    %9 = arith.mulf %8, %8 : vector<128x16xf32>
    %cst_5 = arith.constant dense<0.000000e+00> : vector<16xf32>
    %10 = vector.multi_reduction <add>, %9, %cst_5 [0] : vector<128x16xf32> to vector<16xf32>
    %11 = vector.shape_cast %10 : vector<16xf32> to vector<1x16xf32>
    %cst_6 = arith.constant 1.280000e+02 : f32
    %12 = vector.broadcast %cst_6 : f32 to vector<1x16xf32>
    %13 = arith.divf %11, %12 : vector<1x16xf32>
    %c0_7 = arith.constant 0 : index
    %c0_8 = arith.constant 0 : index
    %14 = vector.load %arg3[%c0_7, %c0_8] : memref<1x16xf32, #tpu.memory_space<vmem>>, vector<1x16xf32>
    %cst_9 = arith.constant 9.99999974E-6 : f32
    %15 = vector.broadcast %cst_9 : f32 to vector<1x16xf32>
    %16 = arith.addf %13, %15 : vector<1x16xf32>
    %17 = math.rsqrt %16 : vector<1x16xf32>
    %18 = arith.mulf %14, %17 : vector<1x16xf32>
    %19 = vector.broadcast %6 : vector<1x16xf32> to vector<128x16xf32>
    %20 = arith.subf %2, %19 : vector<128x16xf32>
    %21 = vector.broadcast %18 : vector<1x16xf32> to vector<128x16xf32>
    %22 = arith.mulf %20, %21 : vector<128x16xf32>
    %c0_10 = arith.constant 0 : index
    %c0_11 = arith.constant 0 : index
    %23 = vector.load %arg4[%c0_10, %c0_11] : memref<1x16xf32, #tpu.memory_space<vmem>>, vector<1x16xf32>
    %24 = vector.broadcast %23 : vector<1x16xf32> to vector<128x16xf32>
    %25 = arith.addf %22, %24 : vector<128x16xf32>
    %cst_12 = arith.constant 0.000000e+00 : f32
    %26 = vector.broadcast %cst_12 : f32 to vector<128x16xf32>
    %27 = arith.maximumf %25, %26 : vector<128x16xf32>
    %c0_13 = arith.constant 0 : index
    %c0_14 = arith.constant 0 : index
    %28 = vector.load %arg5[%c0_13, %c0_14] : memref<128x16xf32, #tpu.memory_space<vmem>>, vector<128x16xf32>
    tpu.vector_store %arg5[%c0_13, %c0_14], %27 {strides = array<i32>} : memref<128x16xf32, #tpu.memory_space<vmem>>, vector<128x16xf32>,
    return
  }
  func.func @transform_0(%arg0: i32) -> (i32, i32) {
    %c0_i32 = arith.constant 0 : i32
    %c0_i32_0 = arith.constant 0 : i32
    %c0_i32_1 = arith.constant 0 : i32
    return %c0_i32, %c0_i32_0 : i32, i32
  }
  func.func @transform_1(%arg0: i32) -> (i32, i32) {
    %c0_i32 = arith.constant 0 : i32
    %c0_i32_0 = arith.constant 0 : i32
    %c0_i32_1 = arith.constant 0 : i32
    return %c0_i32, %c0_i32_0 : i32, i32
  }
  func.func @transform_2(%arg0: i32) -> (i32, i32) {
    %c0_i32 = arith.constant 0 : i32
    %c0_i32_0 = arith.constant 0 : i32
    %c0_i32_1 = arith.constant 0 : i32
    return %c0_i32, %c0_i32_0 : i32, i32
  }
  func.func @transform_3(%arg0: i32) -> (i32, i32) {
    %c0_i32 = arith.constant 0 : i32
    %c0_i32_0 = arith.constant 0 : i32
    %c0_i32_1 = arith.constant 0 : i32
    return %c0_i32, %c0_i32_0 : i32, i32
  }
  func.func @transform_4(%arg0: i32) -> (i32, i32) {
    %c0_i32 = arith.constant 0 : i32
    %c0_i32_0 = arith.constant 0 : i32
    %c0_i32_1 = arith.constant 0 : i32
    return %c0_i32, %c0_i32_0 : i32, i32
  }
}

module attributes {stable_mosaic.version = 11 : i64} {
  func.func @kernel(%arg0: i32, %arg1: memref<512x256xbf16, #tpu.memory_space<vmem>>, %arg2: memref<256x3xbf16, #tpu.memory_space<vmem>>, %arg3: memref<1x3xf32, #tpu.memory_space<vmem>>, %arg4: memref<512x3xf32, #tpu.memory_space<vmem>>) attributes {dimension_semantics = [#tpu.dimension_semantics<arbitrary>], iteration_bounds = array<i64: 1>, scalar_prefetch = 0 : i64, scratch_operands = 0 : i64, tpu.core_type = #tpu.core_type<tc>, window_params = [{pipeline_mode = #tpu.pipeline_mode<synchronous>, transform_indices = @transform_0, window_bounds = array<i64: 512, 256>}, {pipeline_mode = #tpu.pipeline_mode<synchronous>, transform_indices = @transform_1, window_bounds = array<i64: 256, 3>}, {pipeline_mode = #tpu.pipeline_mode<synchronous>, transform_indices = @transform_2, window_bounds = array<i64: 1, 3>}, {pipeline_mode = #tpu.pipeline_mode<synchronous>, transform_indices = @transform_3, window_bounds = array<i64: 512, 3>}]} {
    %c0 = arith.constant 0 : index
    %c0_0 = arith.constant 0 : index
    %0 = vector.load %arg1[%c0, %c0_0] : memref<512x256xbf16, #tpu.memory_space<vmem>>, vector<512x256xbf16>
    %c0_1 = arith.constant 0 : index
    %c0_2 = arith.constant 0 : index
    %1 = vector.load %arg2[%c0_1, %c0_2] : memref<256x3xbf16, #tpu.memory_space<vmem>>, vector<256x3xbf16>
    %cst = arith.constant dense<0.000000e+00> : vector<512x3xf32>
    %2 = tpu.matmul %0, %1, %cst {dimension_numbers = #tpu.dot_dimension_numbers<[1], [0], [0], [1], [0, 0, 1, 1], [], []>} : vector<512x256xbf16>, vector<256x3xbf16>, vector<512x3xf32> -> vector<512x3xf32>
    %c0_3 = arith.constant 0 : index
    %c0_4 = arith.constant 0 : index
    %3 = vector.load %arg3[%c0_3, %c0_4] : memref<1x3xf32, #tpu.memory_space<vmem>>, vector<1x3xf32>
    %4 = vector.broadcast %3 : vector<1x3xf32> to vector<512x3xf32>
    %5 = arith.addf %2, %4 : vector<512x3xf32>
    %6 = math.absf %5 : vector<512x3xf32>
    %cst_5 = arith.constant 0.000000e+00 : f32
    %7 = vector.broadcast %cst_5 : f32 to vector<512x3xf32>
    %8 = arith.subf %7, %6 : vector<512x3xf32>
    %9 = math.exp %8 : vector<512x3xf32>
    %cst_6 = arith.constant 1.000000e+00 : f32
    %10 = vector.broadcast %cst_6 : f32 to vector<512x3xf32>
    %11 = arith.addf %10, %9 : vector<512x3xf32>
    %12 = tpu.reciprocal %11 {approx = true} : vector<512x3xf32> -> vector<512x3xf32>
    %cst_7 = arith.constant 0.000000e+00 : f32
    %13 = vector.broadcast %cst_7 : f32 to vector<512x3xf32>
    %14 = arith.cmpf oge, %5, %13 : vector<512x3xf32>
    %15 = arith.mulf %9, %12 : vector<512x3xf32>
    %16 = arith.select %14, %12, %15 : vector<512x3xi1>, vector<512x3xf32>
    %c0_8 = arith.constant 0 : index
    %c0_9 = arith.constant 0 : index
    %17 = vector.load %arg4[%c0_8, %c0_9] : memref<512x3xf32, #tpu.memory_space<vmem>>, vector<512x3xf32>
    tpu.vector_store %arg4[%c0_8, %c0_9], %16 {strides = array<i32>} : memref<512x3xf32, #tpu.memory_space<vmem>>, vector<512x3xf32>,
    return
  }
  func.func @transform_0(%arg0: i32) -> (i32, i32) {
    %c0_i32 = arith.constant 0 : i32
    %c0_i32_0 = arith.constant 0 : i32
    %c0_i32_1 = arith.constant 0 : i32
    return %c0_i32, %c0_i32_0 : i32, i32
  }
  func.func @transform_1(%arg0: i32) -> (i32, i32) {
    %c0_i32 = arith.constant 0 : i32
    %c0_i32_0 = arith.constant 0 : i32
    %c0_i32_1 = arith.constant 0 : i32
    return %c0_i32, %c0_i32_0 : i32, i32
  }
  func.func @transform_2(%arg0: i32) -> (i32, i32) {
    %c0_i32 = arith.constant 0 : i32
    %c0_i32_0 = arith.constant 0 : i32
    %c0_i32_1 = arith.constant 0 : i32
    return %c0_i32, %c0_i32_0 : i32, i32
  }
  func.func @transform_3(%arg0: i32) -> (i32, i32) {
    %c0_i32 = arith.constant 0 : i32
    %c0_i32_0 = arith.constant 0 : i32
    %c0_i32_1 = arith.constant 0 : i32
    return %c0_i32, %c0_i32_0 : i32, i32
  }
}

</mosaic_0001>

<llo_original>
// kernel: autoencoder_forward.8
$region0: #{autoencoder_forward.8}
  #allocation0 [shape = 'u32[]', space=smem, size = 0x4, offset = 0x4, fixed_abs, tag = 'smem constant byte address 0x4 - core index']
  #allocation1 [shape = 'u32[144,128]{1,0:T(1,128)}', space=vmem, size = 0x12000, scoped, tag = 'internal scratch']
  %s0 = inlined_call_operand.vmem [shape: bf16[128,48], index: 0, kind: input, shape index: {}]
  %s1 = inlined_call_operand.vmem [shape: bf16[48,16], index: 1, kind: input, shape index: {}]
  %s2 = inlined_call_operand.vmem [shape: f32[1,16], index: 2, kind: input, shape index: {}]
  %s3 = inlined_call_operand.vmem [shape: f32[1,16], index: 3, kind: input, shape index: {}]
  %s4 = inlined_call_operand.vmem [shape: f32[128,16], index: 4, kind: output, shape index: {}]
  %s5 = sld [smem:[#allocation0]]
  $region26: #{autoencoder_forward.8} parent=0
    _
  %s7 = ssub.s32 1, %s5
  %s8 = scalar_select 0, %s7, %s5
  // Predicated region
  $region2: #{autoencoder_forward.8} parent=0 // pred_check
    _
  $region3: #{autoencoder_forward.8} parent=0 // pred_check_branch
    %10 = sbr.rel (0) target = $region5
  $region4: #{autoencoder_forward.8} parent=0 // pred_region
    _
  $region5: #{autoencoder_forward.8} parent=0 // pred_fallthru
    _
  // Predicated region
  $region6: #{autoencoder_forward.8} parent=0 // pred_check
    _
  $region7: #{autoencoder_forward.8} parent=0 // pred_check_branch
    %12 = sbr.rel (0) target = $region9
  $region8: #{autoencoder_forward.8} parent=0 // pred_region
    _
  $region9: #{autoencoder_forward.8} parent=0 // pred_fallthru
    _
  // Predicated region
  $region10: #{autoencoder_forward.8} parent=0 // pred_check
    _
  $region11: #{autoencoder_forward.8} parent=0 // pred_check_branch
    %14 = sbr.rel (0) target = $region13
  $region12: #{autoencoder_forward.8} parent=0 // pred_region
    _
  $region13: #{autoencoder_forward.8} parent=0 // pred_fallthru
    _
  // Predicated region
  $region14: #{autoencoder_forward.8} parent=0 // pred_check
    _
  $region15: #{autoencoder_forward.8} parent=0 // pred_check_branch
    %16 = sbr.rel (0) target = $region17
  $region16: #{autoencoder_forward.8} parent=0 // pred_region
    _
  $region17: #{autoencoder_forward.8} parent=0 // pred_fallthru
    _
  %v18 = vld [vmem:[%s0] sm:$0xf]
  %v19 = vld [vmem:[%s0 + $0x4] sm:$0xf]
  %v20 = vld [vmem:[%s0 + $0x8] sm:$0xf]
  %v21 = vld [vmem:[%s0 + $0xc] sm:$0xf]
  %v22 = vld [vmem:[%s0 + $0x10] sm:$0xf]
  %v23 = vld [vmem:[%s0 + $0x14] sm:$0xf]
  %v24 = vld [vmem:[%s0 + $0x18] sm:$0xf]
  %v25 = vld [vmem:[%s0 + $0x1c] sm:$0xf]
  %v26 = vld [vmem:[%s0 + $0x20] sm:$0xf]
  %v27 = vld [vmem:[%s0 + $0x24] sm:$0xf]
  %v28 = vld [vmem:[%s0 + $0x28] sm:$0xf]
  %v29 = vld [vmem:[%s0 + $0x2c] sm:$0xf]
  %v30 = vld [vmem:[%s0 + $0x30] sm:$0xf]
  %v31 = vld [vmem:[%s0 + $0x34] sm:$0xf]
  %v32 = vld [vmem:[%s0 + $0x38] sm:$0xf]
  %v33 = vld [vmem:[%s0 + $0x3c] sm:$0xf]
  %v34 = vld [vmem:[%s1] sm:$0xf]
  %v35 = vld [vmem:[%s1 + $0x4] sm:$0xf]
  %v36 = vld [vmem:[%s1 + $0x8] sm:$0xf]
  %v37 = vld [vmem:[%s1 + $0xc] sm:$0xf]
  %v38 = vld [vmem:[%s1 + $0x10] sm:$0xf]
  %v39 = vld [vmem:[%s1 + $0x14] sm:$0xf]
  %v56 = vunpack.c.l.b16 %v18
  %v57 = vunpack.c.l.b16 %v19
  %v58 = vunpack.c.l.b16 %v20
  %v59 = vunpack.c.l.b16 %v21
  %v60 = vunpack.c.l.b16 %v22
  %v61 = vunpack.c.l.b16 %v23
  %v62 = vunpack.c.l.b16 %v24
  %v63 = vunpack.c.l.b16 %v25
  %v64 = vunpack.c.l.b16 %v26
  %v65 = vunpack.c.l.b16 %v27
  %v66 = vunpack.c.l.b16 %v28
  %v67 = vunpack.c.l.b16 %v29
  %v68 = vunpack.c.l.b16 %v30
  %v69 = vunpack.c.l.b16 %v31
  %v70 = vunpack.c.l.b16 %v32
  %v71 = vunpack.c.l.b16 %v33
  %v72 = vpack.c.b16 %v57, %v56
  %v73 = vpack.c.b16 %v59, %v58
  %v74 = vpack.c.b16 %v61, %v60
  %v75 = vpack.c.b16 %v63, %v62
  %v76 = vpack.c.b16 %v65, %v64
  %v77 = vpack.c.b16 %v67, %v66
  %v78 = vpack.c.b16 %v69, %v68
  %v79 = vpack.c.b16 %v71, %v70
  %v86 = vunpack.c.l.b16 %v34
  %v87 = vunpack.c.l.b16 %v35
  %v88 = vunpack.c.l.b16 %v36
  %v89 = vunpack.c.l.b16 %v37
  %v90 = vunpack.c.l.b16 %v38
  %v91 = vunpack.c.l.b16 %v39
  %v92 = vpack.c.b16 %v87, %v86
  %v93 = vpack.c.b16 %v89, %v88
  %v94 = vpack.c.b16 %v91, %v90
  %vm98 = vcmask 392192
  %v100 = vsel %vm98, %v72, 0
  %v103 = vsel %vm98, %v73, 0
  %v106 = vsel %vm98, %v74, 0
  %v109 = vsel %vm98, %v75, 0
  %v112 = vsel %vm98, %v76, 0
  %v115 = vsel %vm98, %v77, 0
  %v118 = vsel %vm98, %v78, 0
  %v121 = vsel %vm98, %v79, 0
  %123 = vmatprep.subr.bf16.mxu0 0
  %124 = vmatpush1.bf16.msra.mxu0 %v92
  %125 = vmatprep.subr.bf16.mxu0 0
  %126 = vmatpush1.bf16.msra.mxu0 %v93
  %127 = vmatprep.subr.bf16.mxu0 0
  %128 = vmatpush1.bf16.msra.mxu0 %v94
  %129 = vmatprep.subr.bf16.mxu0 0
  %130 = vmatpush1.bf16.msra.mxu0 0
  %131 = vmatprep.subr.bf16.mxu0 0
  %132 = vmatpush1.bf16.msra.mxu0 0
  %133 = vmatprep.subr.bf16.mxu0 0
  %134 = vmatpush1.bf16.msra.mxu0 0
  %135 = vmatprep.subr.bf16.mxu0 0
  %136 = vmatpush1.bf16.msra.mxu0 0
  %137 = vmatprep.subr.bf16.mxu0 0
  %138 = vmatpush1.bf16.msra.mxu0 0
  %139 = vmatprep.subr.bf16.mxu0 0
  %140 = vmatpush1.bf16.msra.mxu0 0
  %141 = vmatprep.subr.bf16.mxu0 0
  %142 = vmatpush1.bf16.msra.mxu0 0
  %143 = vmatprep.subr.bf16.mxu0 0
  %144 = vmatpush1.bf16.msra.mxu0 0
  %145 = vmatprep.subr.bf16.mxu0 0
  %146 = vmatpush1.bf16.msra.mxu0 0
  %147 = vmatprep.subr.bf16.mxu0 0
  %148 = vmatpush1.bf16.msra.mxu0 0
  %149 = vmatprep.subr.bf16.mxu0 0
  %150 = vmatpush1.bf16.msra.mxu0 0
  %151 = vmatprep.subr.bf16.mxu0 0
  %152 = vmatpush1.bf16.msra.mxu0 0
  %153 = vmatprep.subr.bf16.mxu0 0
  %154 = vmatpush1.bf16.msra.mxu0 0
  %155 = vmatprep.mubr.bf16.mxu0 0
  %156 = vmatmul.mubr.bf16.gmra.mrb[0].mxu0 %v100
  %v157 = vpop.f32.mrb[0].mxu0
  %v158 = vadd.f32 0.0, %v157
  %v159 = vpop.f32.mrb[0].mxu0
  %v160 = vpop.f32.mrb[0].mxu0
  %v161 = vadd.f32 0.0, %v160
  %v162 = vpop.f32.mrb[0].mxu0
  %163 = vmatprep.mubr.bf16.mxu0 0
  %164 = vmatmul.mubr.bf16.gmra.mrb[0].mxu0 %v103
  %v165 = vpop.f32.mrb[0].mxu0
  %v166 = vadd.f32 0.0, %v165
  %v167 = vpop.f32.mrb[0].mxu0
  %v168 = vpop.f32.mrb[0].mxu0
  %v169 = vadd.f32 0.0, %v168
  %v170 = vpop.f32.mrb[0].mxu0
  %171 = vmatprep.mubr.bf16.mxu0 0
  %172 = vmatmul.mubr.bf16.gmra.mrb[0].mxu0 %v106
  %v173 = vpop.f32.mrb[0].mxu0
  %v174 = vadd.f32 0.0, %v173
  %v175 = vpop.f32.mrb[0].mxu0
  %v176 = vpop.f32.mrb[0].mxu0
  %v177 = vadd.f32 0.0, %v176
  %v178 = vpop.f32.mrb[0].mxu0
  %179 = vmatprep.mubr.bf16.mxu0 0
  %180 = vmatmul.mubr.bf16.gmra.mrb[0].mxu0 %v109
  %v181 = vpop.f32.mrb[0].mxu0
  %v182 = vadd.f32 0.0, %v181
  %v183 = vpop.f32.mrb[0].mxu0
  %v184 = vpop.f32.mrb[0].mxu0
  %v185 = vadd.f32 0.0, %v184
  %v186 = vpop.f32.mrb[0].mxu0
  %187 = vmatprep.mubr.bf16.mxu0 0
  %188 = vmatmul.mubr.bf16.gmra.mrb[0].mxu0 %v112
  %v189 = vpop.f32.mrb[0].mxu0
  %v190 = vadd.f32 0.0, %v189
  %v191 = vpop.f32.mrb[0].mxu0
  %v192 = vpop.f32.mrb[0].mxu0
  %v193 = vadd.f32 0.0, %v192
  %v194 = vpop.f32.mrb[0].mxu0
  %195 = vmatprep.mubr.bf16.mxu0 0
  %196 = vmatmul.mubr.bf16.gmra.mrb[0].mxu0 %v115
  %v197 = vpop.f32.mrb[0].mxu0
  %v198 = vadd.f32 0.0, %v197
  %v199 = vpop.f32.mrb[0].mxu0
  %v200 = vpop.f32.mrb[0].mxu0
  %v201 = vadd.f32 0.0, %v200
  %v202 = vpop.f32.mrb[0].mxu0
  %203 = vmatprep.mubr.bf16.mxu0 0
  %204 = vmatmul.mubr.bf16.gmra.mrb[0].mxu0 %v118
  %v205 = vpop.f32.mrb[0].mxu0
  %v206 = vadd.f32 0.0, %v205
  %v207 = vpop.f32.mrb[0].mxu0
  %v208 = vpop.f32.mrb[0].mxu0
  %v209 = vadd.f32 0.0, %v208
  %v210 = vpop.f32.mrb[0].mxu0
  %211 = vmatprep.mubr.bf16.mxu0 0
  %212 = vmatmul.mubr.bf16.gmra.mrb[0].mxu0 %v121
  %v213 = vpop.f32.mrb[0].mxu0
  %v214 = vadd.f32 0.0, %v213
  %v215 = vpop.f32.mrb[0].mxu0
  %v216 = vpop.f32.mrb[0].mxu0
  %v217 = vadd.f32 0.0, %v216
  %v218 = vpop.f32.mrb[0].mxu0
  %219 = vdwg.mxu0
  %vm220 = vcmask 130048
  %v221 = vsel %vm220, %v158, 0.0
  %v222 = vsel %vm220, %v161, 0.0
  %v223 = vadd.f32 %v221, %v222
  %v224 = vsel %vm220, %v166, 0.0
  %v225 = vadd.f32 %v223, %v224
  %v226 = vsel %vm220, %v169, 0.0
  %v227 = vadd.f32 %v225, %v226
  %v228 = vsel %vm220, %v174, 0.0
  %v229 = vadd.f32 %v227, %v228
  %v230 = vsel %vm220, %v177, 0.0
  %v231 = vadd.f32 %v229, %v230
  %v232 = vsel %vm220, %v182, 0.0
  %v233 = vadd.f32 %v231, %v232
  %v234 = vsel %vm220, %v185, 0.0
  %v235 = vadd.f32 %v233, %v234
  %v236 = vsel %vm220, %v190, 0.0
  %v237 = vadd.f32 %v235, %v236
  %v238 = vsel %vm220, %v193, 0.0
  %v239 = vadd.f32 %v237, %v238
  %v240 = vsel %vm220, %v198, 0.0
  %v241 = vadd.f32 %v239, %v240
  %v242 = vsel %vm220, %v201, 0.0
  %v243 = vadd.f32 %v241, %v242
  %v244 = vsel %vm220, %v206, 0.0
  %v245 = vadd.f32 %v243, %v244
  %v246 = vsel %vm220, %v209, 0.0
  %v247 = vadd.f32 %v245, %v246
  %v248 = vsel %vm220, %v214, 0.0
  %v249 = vadd.f32 %v247, %v248
  %v250 = vsel %vm220, %v217, 0.0
  %v251 = vadd.f32 %v249, %v250
  %v252 = vrot.slane %v251, 4
  %v253 = vadd.f32 %v251, %v252
  %v254 = vrot.slane %v253, 2
  %v255 = vadd.f32 %v253, %v254
  %v256 = vrot.slane %v255, 1
  %v257 = vadd.f32 %v255, %v256
  %v258 = vrcp.pop 128.0
  %v259 = vmul.f32 %v257, %v258
  %v260 = vsub.f32 %v158, %v259
  %v261 = vsub.f32 %v161, %v259
  %v262 = vsub.f32 %v166, %v259
  %v263 = vsub.f32 %v169, %v259
  %v264 = vsub.f32 %v174, %v259
  %v265 = vsub.f32 %v177, %v259
  %v266 = vsub.f32 %v182, %v259
  %v267 = vsub.f32 %v185, %v259
  %v268 = vsub.f32 %v190, %v259
  %v269 = vsub.f32 %v193, %v259
  %v270 = vsub.f32 %v198, %v259
  %v271 = vsub.f32 %v201, %v259
  %v272 = vsub.f32 %v206, %v259
  %v273 = vsub.f32 %v209, %v259
  %v274 = vsub.f32 %v214, %v259
  %v275 = vsub.f32 %v217, %v259
  %v276 = vmul.f32 %v260, %v260
  %v277 = vmul.f32 %v261, %v261
  %v278 = vmul.f32 %v262, %v262
  %v279 = vmul.f32 %v263, %v263
  %v280 = vmul.f32 %v264, %v264
  %v281 = vmul.f32 %v265, %v265
  %v282 = vmul.f32 %v266, %v266
  %v283 = vmul.f32 %v267, %v267
  %v284 = vmul.f32 %v268, %v268
  %v285 = vmul.f32 %v269, %v269
  %v286 = vmul.f32 %v270, %v270
  %v287 = vmul.f32 %v271, %v271
  %v288 = vmul.f32 %v272, %v272
  %v289 = vmul.f32 %v273, %v273
  %v290 = vmul.f32 %v274, %v274
  %v291 = vmul.f32 %v275, %v275
  %v292 = vsel %vm220, %v276, 0.0
  %v293 = vsel %vm220, %v277, 0.0
  %v294 = vadd.f32 %v292, %v293
  %v295 = vsel %vm220, %v278, 0.0
  %v296 = vadd.f32 %v294, %v295
  %v297 = vsel %vm220, %v279, 0.0
  %v298 = vadd.f32 %v296, %v297
  %v299 = vsel %vm220, %v280, 0.0
  %v300 = vadd.f32 %v298, %v299
  %v301 = vsel %vm220, %v281, 0.0
  %v302 = vadd.f32 %v300, %v301
  %v303 = vsel %vm220, %v282, 0.0
  %v304 = vadd.f32 %v302, %v303
  %v305 = vsel %vm220, %v283, 0.0
  %v306 = vadd.f32 %v304, %v305
  %v307 = vsel %vm220, %v284, 0.0
  %v308 = vadd.f32 %v306, %v307
  %v309 = vsel %vm220, %v285, 0.0
  %v310 = vadd.f32 %v308, %v309
  %v311 = vsel %vm220, %v286, 0.0
  %v312 = vadd.f32 %v310, %v311
  %v313 = vsel %vm220, %v287, 0.0
  %v314 = vadd.f32 %v312, %v313
  %v315 = vsel %vm220, %v288, 0.0
  %v316 = vadd.f32 %v314, %v315
  %v317 = vsel %vm220, %v289, 0.0
  %v318 = vadd.f32 %v316, %v317
  %v319 = vsel %vm220, %v290, 0.0
  %v320 = vadd.f32 %v318, %v319
  %v321 = vsel %vm220, %v291, 0.0
  %v322 = vadd.f32 %v320, %v321
  %v323 = vrot.slane %v322, 4
  %v324 = vadd.f32 %v322, %v323
  %v325 = vrot.slane %v324, 2
  %v326 = vadd.f32 %v324, %v325
  %v327 = vrot.slane %v326, 1
  %v328 = vadd.f32 %v326, %v327
  %v329 = vmul.f32 %v328, %v258
  %v330 = vld [vmem:[%s2] sm:$0x1]
  %v331 = vadd.f32 %v329, 1e-05
  %v332 = vrsqrt.pop %v331
  %v333 = vmul.f32 %v330, %v332
  %v335 = vlaneseq
  %v336 = vshrl.u32 %v335, 7
  %v337 = vsub.s32 0, %v336
  %v338 = vrot.slane %v333, %v337
  %v340 = vmul.f32 %v260, %v338
  %v341 = vmul.f32 %v261, %v338
  %v342 = vmul.f32 %v262, %v338
  %v343 = vmul.f32 %v263, %v338
  %v344 = vmul.f32 %v264, %v338
  %v345 = vmul.f32 %v265, %v338
  %v346 = vmul.f32 %v266, %v338
  %v347 = vmul.f32 %v267, %v338
  %v348 = vmul.f32 %v268, %v338
  %v349 = vmul.f32 %v269, %v338
  %v350 = vmul.f32 %v270, %v338
  %v351 = vmul.f32 %v271, %v338
  %v352 = vmul.f32 %v272, %v338
  %v353 = vmul.f32 %v273, %v338
  %v354 = vmul.f32 %v274, %v338
  %v355 = vmul.f32 %v275, %v338
  %v356 = vld [vmem:[%s3] sm:$0x1]
  %v358 = vlaneseq
  %v359 = vshrl.u32 %v358, 7
  %v360 = vsub.s32 0, %v359
  %v361 = vrot.slane %v356, %v360
  %v363 = vadd.f32 %v340, %v361
  %v364 = vadd.f32 %v341, %v361
  %v365 = vadd.f32 %v342, %v361
  %v366 = vadd.f32 %v343, %v361
  %v367 = vadd.f32 %v344, %v361
  %v368 = vadd.f32 %v345, %v361
  %v369 = vadd.f32 %v346, %v361
  %v370 = vadd.f32 %v347, %v361
  %v371 = vadd.f32 %v348, %v361
  %v372 = vadd.f32 %v349, %v361
  %v373 = vadd.f32 %v350, %v361
  %v374 = vadd.f32 %v351, %v361
  %v375 = vadd.f32 %v352, %v361
  %v376 = vadd.f32 %v353, %v361
  %v377 = vadd.f32 %v354, %v361
  %v378 = vadd.f32 %v355, %v361
  %v379 = vmax.f32 %v363, 0.0
  %v380 = vmax.f32 %v364, 0.0
  %v381 = vmax.f32 %v365, 0.0
  %v382 = vmax.f32 %v366, 0.0
  %v383 = vmax.f32 %v367, 0.0
  %v384 = vmax.f32 %v368, 0.0
  %v385 = vmax.f32 %v369, 0.0
  %v386 = vmax.f32 %v370, 0.0
  %v387 = vmax.f32 %v371, 0.0
  %v388 = vmax.f32 %v372, 0.0
  %v389 = vmax.f32 %v373, 0.0
  %v390 = vmax.f32 %v374, 0.0
  %v391 = vmax.f32 %v375, 0.0
  %v392 = vmax.f32 %v376, 0.0
  %v393 = vmax.f32 %v377, 0.0
  %v394 = vmax.f32 %v378, 0.0
  %395 = vst.msk [vmem:[%s4] sm:$0xff] %vm220, %v379
  %396 = vst.msk [vmem:[%s4 + $0x8] sm:$0xff] %vm220, %v380
  %397 = vst.msk [vmem:[%s4 + $0x10] sm:$0xff] %vm220, %v381
  %398 = vst.msk [vmem:[%s4 + $0x18] sm:$0xff] %vm220, %v382
  %399 = vst.msk [vmem:[%s4 + $0x20] sm:$0xff] %vm220, %v383
  %400 = vst.msk [vmem:[%s4 + $0x28] sm:$0xff] %vm220, %v384
  %401 = vst.msk [vmem:[%s4 + $0x30] sm:$0xff] %vm220, %v385
  %402 = vst.msk [vmem:[%s4 + $0x38] sm:$0xff] %vm220, %v386
  %403 = vst.msk [vmem:[%s4 + $0x40] sm:$0xff] %vm220, %v387
  %404 = vst.msk [vmem:[%s4 + $0x48] sm:$0xff] %vm220, %v388
  %405 = vst.msk [vmem:[%s4 + $0x50] sm:$0xff] %vm220, %v389
  %406 = vst.msk [vmem:[%s4 + $0x58] sm:$0xff] %vm220, %v390
  %407 = vst.msk [vmem:[%s4 + $0x60] sm:$0xff] %vm220, %v391
  %408 = vst.msk [vmem:[%s4 + $0x68] sm:$0xff] %vm220, %v392
  %409 = vst.msk [vmem:[%s4 + $0x70] sm:$0xff] %vm220, %v393
  %410 = vst.msk [vmem:[%s4 + $0x78] sm:$0xff] %vm220, %v394
  // Predicated region
  $region18: #{autoencoder_forward.8} parent=0 // pred_check
    _
  $region19: #{autoencoder_forward.8} parent=0 // pred_check_branch
    %412 = sbr.rel (0) target = $region21
  $region20: #{autoencoder_forward.8} parent=0 // pred_region
    _
  $region21: #{autoencoder_forward.8} parent=0 // pred_fallthru
    _
  // Predicated region
  $region22: #{autoencoder_forward.8} parent=0 // pred_check
    _
  $region23: #{autoencoder_forward.8} parent=0 // pred_check_branch
    %414 = sbr.rel (0) target = $region25
  $region24: #{autoencoder_forward.8} parent=0 // pred_region
    _
  $region25: #{autoencoder_forward.8} parent=0 // pred_fallthru
    _

// kernel: autoencoder_forward.9
$region0: #{autoencoder_forward.9}
  #allocation0 [shape = 'u32[]', space=smem, size = 0x4, offset = 0x4, fixed_abs, tag = 'smem constant byte address 0x4 - core index']
  #allocation1 [shape = 'u32[144,128]{1,0:T(1,128)}', space=vmem, size = 0x12000, scoped, tag = 'internal scratch']
  %s0 = inlined_call_operand.vmem [shape: bf16[32,256], index: 0, kind: input, shape index: {}]
  %s1 = inlined_call_operand.vmem [shape: bf16[256,32], index: 1, kind: input, shape index: {}]
  %s2 = inlined_call_operand.vmem [shape: f32[1,32], index: 2, kind: input, shape index: {}]
  %s3 = inlined_call_operand.vmem [shape: f32[1,32], index: 3, kind: input, shape index: {}]
  %s4 = inlined_call_operand.vmem [shape: f32[32,32], index: 4, kind: output, shape index: {}]
  %s5 = sld [smem:[#allocation0]]
  $region26: #{autoencoder_forward.9} parent=0
    _
  %s7 = ssub.s32 1, %s5
  %s8 = scalar_select 0, %s7, %s5
  // Predicated region
  $region2: #{autoencoder_forward.9} parent=0 // pred_check
    _
  $region3: #{autoencoder_forward.9} parent=0 // pred_check_branch
    %10 = sbr.rel (0) target = $region5
  $region4: #{autoencoder_forward.9} parent=0 // pred_region
    _
  $region5: #{autoencoder_forward.9} parent=0 // pred_fallthru
    _
  // Predicated region
  $region6: #{autoencoder_forward.9} parent=0 // pred_check
    _
  $region7: #{autoencoder_forward.9} parent=0 // pred_check_branch
    %12 = sbr.rel (0) target = $region9
  $region8: #{autoencoder_forward.9} parent=0 // pred_region
    _
  $region9: #{autoencoder_forward.9} parent=0 // pred_fallthru
    _
  // Predicated region
  $region10: #{autoencoder_forward.9} parent=0 // pred_check
    _
  $region11: #{autoencoder_forward.9} parent=0 // pred_check_branch
    %14 = sbr.rel (0) target = $region13
  $region12: #{autoencoder_forward.9} parent=0 // pred_region
    _
  $region13: #{autoencoder_forward.9} parent=0 // pred_fallthru
    _
  // Predicated region
  $region14: #{autoencoder_forward.9} parent=0 // pred_check
    _
  $region15: #{autoencoder_forward.9} parent=0 // pred_check_branch
    %16 = sbr.rel (0) target = $region17
  $region16: #{autoencoder_forward.9} parent=0 // pred_region
    _
  $region17: #{autoencoder_forward.9} parent=0 // pred_fallthru
    _
  %v18 = vld [vmem:[%s0] sm:$0xff]
  %v19 = vld [vmem:[%s0 + $0x8] sm:$0xff]
  %v20 = vld [vmem:[%s0 + $0x10] sm:$0xff]
  %v21 = vld [vmem:[%s0 + $0x18] sm:$0xff]
  %v22 = vld [vmem:[%s1] sm:$0xf]
  %v23 = vld [vmem:[%s1 + $0x4] sm:$0xf]
  %v24 = vld [vmem:[%s1 + $0x8] sm:$0xf]
  %v25 = vld [vmem:[%s1 + $0xc] sm:$0xf]
  %v26 = vld [vmem:[%s1 + $0x10] sm:$0xf]
  %v27 = vld [vmem:[%s1 + $0x14] sm:$0xf]
  %v28 = vld [vmem:[%s1 + $0x18] sm:$0xf]
  %v29 = vld [vmem:[%s1 + $0x1c] sm:$0xf]
  %v30 = vld [vmem:[%s1 + $0x20] sm:$0xf]
  %v31 = vld [vmem:[%s1 + $0x24] sm:$0xf]
  %v32 = vld [vmem:[%s1 + $0x28] sm:$0xf]
  %v33 = vld [vmem:[%s1 + $0x2c] sm:$0xf]
  %v34 = vld [vmem:[%s1 + $0x30] sm:$0xf]
  %v35 = vld [vmem:[%s1 + $0x34] sm:$0xf]
  %v36 = vld [vmem:[%s1 + $0x38] sm:$0xf]
  %v37 = vld [vmem:[%s1 + $0x3c] sm:$0xf]
  %v38 = vld [vmem:[%s1 + $0x40] sm:$0xf]
  %v39 = vld [vmem:[%s1 + $0x44] sm:$0xf]
  %v40 = vld [vmem:[%s1 + $0x48] sm:$0xf]
  %v41 = vld [vmem:[%s1 + $0x4c] sm:$0xf]
  %v42 = vld [vmem:[%s1 + $0x50] sm:$0xf]
  %v43 = vld [vmem:[%s1 + $0x54] sm:$0xf]
  %v44 = vld [vmem:[%s1 + $0x58] sm:$0xf]
  %v45 = vld [vmem:[%s1 + $0x5c] sm:$0xf]
  %v46 = vld [vmem:[%s1 + $0x60] sm:$0xf]
  %v47 = vld [vmem:[%s1 + $0x64] sm:$0xf]
  %v48 = vld [vmem:[%s1 + $0x68] sm:$0xf]
  %v49 = vld [vmem:[%s1 + $0x6c] sm:$0xf]
  %v50 = vld [vmem:[%s1 + $0x70] sm:$0xf]
  %v51 = vld [vmem:[%s1 + $0x74] sm:$0xf]
  %v52 = vld [vmem:[%s1 + $0x78] sm:$0xf]
  %v53 = vld [vmem:[%s1 + $0x7c] sm:$0xf]
  %v58 = vunpack.c.l.b16 %v18
  %v59 = vunpack.c.h.b16 %v18
  %v60 = vunpack.c.l.b16 %v19
  %v61 = vunpack.c.h.b16 %v19
  %v62 = vunpack.c.l.b16 %v20
  %v63 = vunpack.c.h.b16 %v20
  %v64 = vunpack.c.l.b16 %v21
  %v65 = vunpack.c.h.b16 %v21
  %v66 = vpack.c.b16 %v60, %v58
  %v67 = vpack.c.b16 %v61, %v59
  %v68 = vpack.c.b16 %v64, %v62
  %v69 = vpack.c.b16 %v65, %v63
  %v106 = vunpack.c.l.b16 %v22
  %v107 = vunpack.c.l.b16 %v23
  %v108 = vunpack.c.l.b16 %v24
  %v109 = vunpack.c.l.b16 %v25
  %v110 = vunpack.c.l.b16 %v26
  %v111 = vunpack.c.l.b16 %v27
  %v112 = vunpack.c.l.b16 %v28
  %v113 = vunpack.c.l.b16 %v29
  %v114 = vunpack.c.l.b16 %v30
  %v115 = vunpack.c.l.b16 %v31
  %v116 = vunpack.c.l.b16 %v32
  %v117 = vunpack.c.l.b16 %v33
  %v118 = vunpack.c.l.b16 %v34
  %v119 = vunpack.c.l.b16 %v35
  %v120 = vunpack.c.l.b16 %v36
  %v121 = vunpack.c.l.b16 %v37
  %v122 = vunpack.c.l.b16 %v38
  %v123 = vunpack.c.l.b16 %v39
  %v124 = vunpack.c.l.b16 %v40
  %v125 = vunpack.c.l.b16 %v41
  %v126 = vunpack.c.l.b16 %v42
  %v127 = vunpack.c.l.b16 %v43
  %v128 = vunpack.c.l.b16 %v44
  %v129 = vunpack.c.l.b16 %v45
  %v130 = vunpack.c.l.b16 %v46
  %v131 = vunpack.c.l.b16 %v47
  %v132 = vunpack.c.l.b16 %v48
  %v133 = vunpack.c.l.b16 %v49
  %v134 = vunpack.c.l.b16 %v50
  %v135 = vunpack.c.l.b16 %v51
  %v136 = vunpack.c.l.b16 %v52
  %v137 = vunpack.c.l.b16 %v53
  %v138 = vpack.c.b16 %v107, %v106
  %v139 = vpack.c.b16 %v109, %v108
  %v140 = vpack.c.b16 %v111, %v110
  %v141 = vpack.c.b16 %v113, %v112
  %v142 = vpack.c.b16 %v115, %v114
  %v143 = vpack.c.b16 %v117, %v116
  %v144 = vpack.c.b16 %v119, %v118
  %v145 = vpack.c.b16 %v121, %v120
  %v146 = vpack.c.b16 %v123, %v122
  %v147 = vpack.c.b16 %v125, %v124
  %v148 = vpack.c.b16 %v127, %v126
  %v149 = vpack.c.b16 %v129, %v128
  %v150 = vpack.c.b16 %v131, %v130
  %v151 = vpack.c.b16 %v133, %v132
  %v152 = vpack.c.b16 %v135, %v134
  %v153 = vpack.c.b16 %v137, %v136
  %170 = vmatprep.subr.bf16.mxu0 0
  %171 = vmatpush1.bf16.msra.mxu0 %v138
  %172 = vmatprep.subr.bf16.mxu0 0
  %173 = vmatpush1.bf16.msra.mxu0 %v139
  %174 = vmatprep.subr.bf16.mxu0 0
  %175 = vmatpush1.bf16.msra.mxu0 %v140
  %176 = vmatprep.subr.bf16.mxu0 0
  %177 = vmatpush1.bf16.msra.mxu0 %v141
  %178 = vmatprep.subr.bf16.mxu0 0
  %179 = vmatpush1.bf16.msra.mxu0 %v142
  %180 = vmatprep.subr.bf16.mxu0 0
  %181 = vmatpush1.bf16.msra.mxu0 %v143
  %182 = vmatprep.subr.bf16.mxu0 0
  %183 = vmatpush1.bf16.msra.mxu0 %v144
  %184 = vmatprep.subr.bf16.mxu0 0
  %185 = vmatpush1.bf16.msra.mxu0 %v145
  %186 = vmatprep.subr.bf16.mxu0 0
  %187 = vmatpush1.bf16.msra.mxu0 %v146
  %188 = vmatprep.subr.bf16.mxu0 0
  %189 = vmatpush1.bf16.msra.mxu0 %v147
  %190 = vmatprep.subr.bf16.mxu0 0
  %191 = vmatpush1.bf16.msra.mxu0 %v148
  %192 = vmatprep.subr.bf16.mxu0 0
  %193 = vmatpush1.bf16.msra.mxu0 %v149
  %194 = vmatprep.subr.bf16.mxu0 0
  %195 = vmatpush1.bf16.msra.mxu0 %v150
  %196 = vmatprep.subr.bf16.mxu0 0
  %197 = vmatpush1.bf16.msra.mxu0 %v151
  %198 = vmatprep.subr.bf16.mxu0 0
  %199 = vmatpush1.bf16.msra.mxu0 %v152
  %200 = vmatprep.subr.bf16.mxu0 0
  %201 = vmatpush1.bf16.msra.mxu0 %v153
  %202 = vmatprep.mubr.bf16.mxu0 %v67
  %203 = vmatmul.mubr.bf16.gmra.mrb[0].mxu0 %v66
  %v204 = vpop.f32.mrb[0].mxu0
  %v205 = vadd.f32 0.0, %v204
  %v206 = vpop.f32.mrb[0].mxu0
  %v207 = vpop.f32.mrb[0].mxu0
  %v208 = vadd.f32 0.0, %v207
  %v209 = vpop.f32.mrb[0].mxu0
  %210 = vmatprep.mubr.bf16.mxu0 %v69
  %211 = vmatmul.mubr.bf16.gmra.mrb[0].mxu0 %v68
  %v212 = vpop.f32.mrb[0].mxu0
  %v213 = vadd.f32 0.0, %v212
  %v214 = vpop.f32.mrb[0].mxu0
  %v215 = vpop.f32.mrb[0].mxu0
  %v216 = vadd.f32 0.0, %v215
  %v217 = vpop.f32.mrb[0].mxu0
  %218 = vdwg.mxu0
  %vm219 = vcmask 261120
  %v220 = vsel %vm219, %v205, 0.0
  %v221 = vsel %vm219, %v208, 0.0
  %v222 = vadd.f32 %v220, %v221
  %v223 = vsel %vm219, %v213, 0.0
  %v224 = vadd.f32 %v222, %v223
  %v225 = vsel %vm219, %v216, 0.0
  %v226 = vadd.f32 %v224, %v225
  %v227 = vrot.slane %v226, 4
  %v228 = vadd.f32 %v226, %v227
  %v229 = vrot.slane %v228, 2
  %v230 = vadd.f32 %v228, %v229
  %v231 = vrot.slane %v230, 1
  %v232 = vadd.f32 %v230, %v231
  %v233 = vrcp.pop 32.0
  %v234 = vmul.f32 %v232, %v233
  %v235 = vsub.f32 %v205, %v234
  %v236 = vsub.f32 %v208, %v234
  %v237 = vsub.f32 %v213, %v234
  %v238 = vsub.f32 %v216, %v234
  %v239 = vmul.f32 %v235, %v235
  %v240 = vmul.f32 %v236, %v236
  %v241 = vmul.f32 %v237, %v237
  %v242 = vmul.f32 %v238, %v238
  %v243 = vsel %vm219, %v239, 0.0
  %v244 = vsel %vm219, %v240, 0.0
  %v245 = vadd.f32 %v243, %v244
  %v246 = vsel %vm219, %v241, 0.0
  %v247 = vadd.f32 %v245, %v246
  %v248 = vsel %vm219, %v242, 0.0
  %v249 = vadd.f32 %v247, %v248
  %v250 = vrot.slane %v249, 4
  %v251 = vadd.f32 %v249, %v250
  %v252 = vrot.slane %v251, 2
  %v253 = vadd.f32 %v251, %v252
  %v254 = vrot.slane %v253, 1
  %v255 = vadd.f32 %v253, %v254
  %v256 = vmul.f32 %v255, %v233
  %v257 = vld [vmem:[%s2] sm:$0x1]
  %v258 = vadd.f32 %v256, 1e-05
  %v259 = vrsqrt.pop %v258
  %v260 = vmul.f32 %v257, %v259
  %v262 = vlaneseq
  %v263 = vshrl.u32 %v262, 7
  %v264 = vsub.s32 0, %v263
  %v265 = vrot.slane %v260, %v264
  %v267 = vmul.f32 %v235, %v265
  %v268 = vmul.f32 %v236, %v265
  %v269 = vmul.f32 %v237, %v265
  %v270 = vmul.f32 %v238, %v265
  %v271 = vld [vmem:[%s3] sm:$0x1]
  %v273 = vlaneseq
  %v274 = vshrl.u32 %v273, 7
  %v275 = vsub.s32 0, %v274
  %v276 = vrot.slane %v271, %v275
  %v278 = vadd.f32 %v267, %v276
  %v279 = vadd.f32 %v268, %v276
  %v280 = vadd.f32 %v269, %v276
  %v281 = vadd.f32 %v270, %v276
  %v282 = vmax.f32 %v278, 0.0
  %v283 = vmax.f32 %v279, 0.0
  %v284 = vmax.f32 %v280, 0.0
  %v285 = vmax.f32 %v281, 0.0
  %286 = vst.msk [vmem:[%s4] sm:$0xff] %vm219, %v282
  %287 = vst.msk [vmem:[%s4 + $0x8] sm:$0xff] %vm219, %v283
  %288 = vst.msk [vmem:[%s4 + $0x10] sm:$0xff] %vm219, %v284
  %289 = vst.msk [vmem:[%s4 + $0x18] sm:$0xff] %vm219, %v285
  // Predicated region
  $region18: #{autoencoder_forward.9} parent=0 // pred_check
    _
  $region19: #{autoencoder_forward.9} parent=0 // pred_check_branch
    %291 = sbr.rel (0) target = $region21
  $region20: #{autoencoder_forward.9} parent=0 // pred_region
    _
  $region21: #{autoencoder_forward.9} parent=0 // pred_fallthru
    _
  // Predicated region
  $region22: #{autoencoder_forward.9} parent=0 // pred_check
    _
  $region23: #{autoencoder_forward.9} parent=0 // pred_check_branch
    %293 = sbr.rel (0) target = $region25
  $region24: #{autoencoder_forward.9} parent=0 // pred_region
    _
  $region25: #{autoencoder_forward.9} parent=0 // pred_fallthru
    _

// kernel: autoencoder_forward.10
$region0: #{autoencoder_forward.10}
  #allocation0 [shape = 'u32[]', space=smem, size = 0x4, offset = 0x4, fixed_abs, tag = 'smem constant byte address 0x4 - core index']
  #allocation1 [shape = 'u32[144,128]{1,0:T(1,128)}', space=vmem, size = 0x12000, scoped, tag = 'internal scratch']
  %s0 = inlined_call_operand.vmem [shape: bf16[8,512], index: 0, kind: input, shape index: {}]
  %s1 = inlined_call_operand.vmem [shape: bf16[512,64], index: 1, kind: input, shape index: {}]
  %s2 = inlined_call_operand.vmem [shape: f32[1,64], index: 2, kind: input, shape index: {}]
  %s3 = inlined_call_operand.vmem [shape: f32[1,64], index: 3, kind: input, shape index: {}]
  %s4 = inlined_call_operand.vmem [shape: f32[8,64], index: 4, kind: output, shape index: {}]
  %s5 = sld [smem:[#allocation0]]
  $region26: #{autoencoder_forward.10} parent=0
    _
  %s7 = ssub.s32 1, %s5
  %s8 = scalar_select 0, %s7, %s5
  // Predicated region
  $region2: #{autoencoder_forward.10} parent=0 // pred_check
    _
  $region3: #{autoencoder_forward.10} parent=0 // pred_check_branch
    %10 = sbr.rel (0) target = $region5
  $region4: #{autoencoder_forward.10} parent=0 // pred_region
    _
  $region5: #{autoencoder_forward.10} parent=0 // pred_fallthru
    _
  // Predicated region
  $region6: #{autoencoder_forward.10} parent=0 // pred_check
    _
  $region7: #{autoencoder_forward.10} parent=0 // pred_check_branch
    %12 = sbr.rel (0) target = $region9
  $region8: #{autoencoder_forward.10} parent=0 // pred_region
    _
  $region9: #{autoencoder_forward.10} parent=0 // pred_fallthru
    _
  // Predicated region
  $region10: #{autoencoder_forward.10} parent=0 // pred_check
    _
  $region11: #{autoencoder_forward.10} parent=0 // pred_check_branch
    %14 = sbr.rel (0) target = $region13
  $region12: #{autoencoder_forward.10} parent=0 // pred_region
    _
  $region13: #{autoencoder_forward.10} parent=0 // pred_fallthru
    _
  // Predicated region
  $region14: #{autoencoder_forward.10} parent=0 // pred_check
    _
  $region15: #{autoencoder_forward.10} parent=0 // pred_check_branch
    %16 = sbr.rel (0) target = $region17
  $region16: #{autoencoder_forward.10} parent=0 // pred_region
    _
  $region17: #{autoencoder_forward.10} parent=0 // pred_fallthru
    _
  %v18 = vld [vmem:[%s0] sm:$0xff]
  %v19 = vld [vmem:[%s0 + $0x8] sm:$0xff]
  %v20 = vld [vmem:[%s1] sm:$0xf]
  %v21 = vld [vmem:[%s1 + $0x4] sm:$0xf]
  %v22 = vld [vmem:[%s1 + $0x8] sm:$0xf]
  %v23 = vld [vmem:[%s1 + $0xc] sm:$0xf]
  %v24 = vld [vmem:[%s1 + $0x10] sm:$0xf]
  %v25 = vld [vmem:[%s1 + $0x14] sm:$0xf]
  %v26 = vld [vmem:[%s1 + $0x18] sm:$0xf]
  %v27 = vld [vmem:[%s1 + $0x1c] sm:$0xf]
  %v28 = vld [vmem:[%s1 + $0x20] sm:$0xf]
  %v29 = vld [vmem:[%s1 + $0x24] sm:$0xf]
  %v30 = vld [vmem:[%s1 + $0x28] sm:$0xf]
  %v31 = vld [vmem:[%s1 + $0x2c] sm:$0xf]
  %v32 = vld [vmem:[%s1 + $0x30] sm:$0xf]
  %v33 = vld [vmem:[%s1 + $0x34] sm:$0xf]
  %v34 = vld [vmem:[%s1 + $0x38] sm:$0xf]
  %v35 = vld [vmem:[%s1 + $0x3c] sm:$0xf]
  %v36 = vld [vmem:[%s1 + $0x40] sm:$0xf]
  %v37 = vld [vmem:[%s1 + $0x44] sm:$0xf]
  %v38 = vld [vmem:[%s1 + $0x48] sm:$0xf]
  %v39 = vld [vmem:[%s1 + $0x4c] sm:$0xf]
  %v40 = vld [vmem:[%s1 + $0x50] sm:$0xf]
  %v41 = vld [vmem:[%s1 + $0x54] sm:$0xf]
  %v42 = vld [vmem:[%s1 + $0x58] sm:$0xf]
  %v43 = vld [vmem:[%s1 + $0x5c] sm:$0xf]
  %v44 = vld [vmem:[%s1 + $0x60] sm:$0xf]
  %v45 = vld [vmem:[%s1 + $0x64] sm:$0xf]
  %v46 = vld [vmem:[%s1 + $0x68] sm:$0xf]
  %v47 = vld [vmem:[%s1 + $0x6c] sm:$0xf]
  %v48 = vld [vmem:[%s1 + $0x70] sm:$0xf]
  %v49 = vld [vmem:[%s1 + $0x74] sm:$0xf]
  %v50 = vld [vmem:[%s1 + $0x78] sm:$0xf]
  %v51 = vld [vmem:[%s1 + $0x7c] sm:$0xf]
  %v52 = vld [vmem:[%s1 + $0x80] sm:$0xf]
  %v53 = vld [vmem:[%s1 + $0x84] sm:$0xf]
  %v54 = vld [vmem:[%s1 + $0x88] sm:$0xf]
  %v55 = vld [vmem:[%s1 + $0x8c] sm:$0xf]
  %v56 = vld [vmem:[%s1 + $0x90] sm:$0xf]
  %v57 = vld [vmem:[%s1 + $0x94] sm:$0xf]
  %v58 = vld [vmem:[%s1 + $0x98] sm:$0xf]
  %v59 = vld [vmem:[%s1 + $0x9c] sm:$0xf]
  %v60 = vld [vmem:[%s1 + $0xa0] sm:$0xf]
  %v61 = vld [vmem:[%s1 + $0xa4] sm:$0xf]
  %v62 = vld [vmem:[%s1 + $0xa8] sm:$0xf]
  %v63 = vld [vmem:[%s1 + $0xac] sm:$0xf]
  %v64 = vld [vmem:[%s1 + $0xb0] sm:$0xf]
  %v65 = vld [vmem:[%s1 + $0xb4] sm:$0xf]
  %v66 = vld [vmem:[%s1 + $0xb8] sm:$0xf]
  %v67 = vld [vmem:[%s1 + $0xbc] sm:$0xf]
  %v68 = vld [vmem:[%s1 + $0xc0] sm:$0xf]
  %v69 = vld [vmem:[%s1 + $0xc4] sm:$0xf]
  %v70 = vld [vmem:[%s1 + $0xc8] sm:$0xf]
  %v71 = vld [vmem:[%s1 + $0xcc] sm:$0xf]
  %v72 = vld [vmem:[%s1 + $0xd0] sm:$0xf]
  %v73 = vld [vmem:[%s1 + $0xd4] sm:$0xf]
  %v74 = vld [vmem:[%s1 + $0xd8] sm:$0xf]
  %v75 = vld [vmem:[%s1 + $0xdc] sm:$0xf]
  %v76 = vld [vmem:[%s1 + $0xe0] sm:$0xf]
  %v77 = vld [vmem:[%s1 + $0xe4] sm:$0xf]
  %v78 = vld [vmem:[%s1 + $0xe8] sm:$0xf]
  %v79 = vld [vmem:[%s1 + $0xec] sm:$0xf]
  %v80 = vld [vmem:[%s1 + $0xf0] sm:$0xf]
  %v81 = vld [vmem:[%s1 + $0xf4] sm:$0xf]
  %v82 = vld [vmem:[%s1 + $0xf8] sm:$0xf]
  %v83 = vld [vmem:[%s1 + $0xfc] sm:$0xf]
  %v86 = vunpack.c.l.b16 %v18
  %v87 = vunpack.c.h.b16 %v18
  %v88 = vunpack.c.l.b16 %v19
  %v89 = vunpack.c.h.b16 %v19
  %v90 = vpack.c.b16 %v86, %v86
  %v91 = vpack.c.b16 %v87, %v87
  %v92 = vpack.c.b16 %v88, %v88
  %v93 = vpack.c.b16 %v89, %v89
  %v162 = vunpack.c.l.b16 %v20
  %v163 = vunpack.c.l.b16 %v21
  %v164 = vunpack.c.l.b16 %v22
  %v165 = vunpack.c.l.b16 %v23
  %v166 = vunpack.c.l.b16 %v24
  %v167 = vunpack.c.l.b16 %v25
  %v168 = vunpack.c.l.b16 %v26
  %v169 = vunpack.c.l.b16 %v27
  %v170 = vunpack.c.l.b16 %v28
  %v171 = vunpack.c.l.b16 %v29
  %v172 = vunpack.c.l.b16 %v30
  %v173 = vunpack.c.l.b16 %v31
  %v174 = vunpack.c.l.b16 %v32
  %v175 = vunpack.c.l.b16 %v33
  %v176 = vunpack.c.l.b16 %v34
  %v177 = vunpack.c.l.b16 %v35
  %v178 = vunpack.c.l.b16 %v36
  %v179 = vunpack.c.l.b16 %v37
  %v180 = vunpack.c.l.b16 %v38
  %v181 = vunpack.c.l.b16 %v39
  %v182 = vunpack.c.l.b16 %v40
  %v183 = vunpack.c.l.b16 %v41
  %v184 = vunpack.c.l.b16 %v42
  %v185 = vunpack.c.l.b16 %v43
  %v186 = vunpack.c.l.b16 %v44
  %v187 = vunpack.c.l.b16 %v45
  %v188 = vunpack.c.l.b16 %v46
  %v189 = vunpack.c.l.b16 %v47
  %v190 = vunpack.c.l.b16 %v48
  %v191 = vunpack.c.l.b16 %v49
  %v192 = vunpack.c.l.b16 %v50
  %v193 = vunpack.c.l.b16 %v51
  %v194 = vunpack.c.l.b16 %v52
  %v195 = vunpack.c.l.b16 %v53
  %v196 = vunpack.c.l.b16 %v54
  %v197 = vunpack.c.l.b16 %v55
  %v198 = vunpack.c.l.b16 %v56
  %v199 = vunpack.c.l.b16 %v57
  %v200 = vunpack.c.l.b16 %v58
  %v201 = vunpack.c.l.b16 %v59
  %v202 = vunpack.c.l.b16 %v60
  %v203 = vunpack.c.l.b16 %v61
  %v204 = vunpack.c.l.b16 %v62
  %v205 = vunpack.c.l.b16 %v63
  %v206 = vunpack.c.l.b16 %v64
  %v207 = vunpack.c.l.b16 %v65
  %v208 = vunpack.c.l.b16 %v66
  %v209 = vunpack.c.l.b16 %v67
  %v210 = vunpack.c.l.b16 %v68
  %v211 = vunpack.c.l.b16 %v69
  %v212 = vunpack.c.l.b16 %v70
  %v213 = vunpack.c.l.b16 %v71
  %v214 = vunpack.c.l.b16 %v72
  %v215 = vunpack.c.l.b16 %v73
  %v216 = vunpack.c.l.b16 %v74
  %v217 = vunpack.c.l.b16 %v75
  %v218 = vunpack.c.l.b16 %v76
  %v219 = vunpack.c.l.b16 %v77
  %v220 = vunpack.c.l.b16 %v78
  %v221 = vunpack.c.l.b16 %v79
  %v222 = vunpack.c.l.b16 %v80
  %v223 = vunpack.c.l.b16 %v81
  %v224 = vunpack.c.l.b16 %v82
  %v225 = vunpack.c.l.b16 %v83
  %v226 = vpack.c.b16 %v163, %v162
  %v227 = vpack.c.b16 %v165, %v164
  %v228 = vpack.c.b16 %v167, %v166
  %v229 = vpack.c.b16 %v169, %v168
  %v230 = vpack.c.b16 %v171, %v170
  %v231 = vpack.c.b16 %v173, %v172
  %v232 = vpack.c.b16 %v175, %v174
  %v233 = vpack.c.b16 %v177, %v176
  %v234 = vpack.c.b16 %v179, %v178
  %v235 = vpack.c.b16 %v181, %v180
  %v236 = vpack.c.b16 %v183, %v182
  %v237 = vpack.c.b16 %v185, %v184
  %v238 = vpack.c.b16 %v187, %v186
  %v239 = vpack.c.b16 %v189, %v188
  %v240 = vpack.c.b16 %v191, %v190
  %v241 = vpack.c.b16 %v193, %v192
  %v242 = vpack.c.b16 %v195, %v194
  %v243 = vpack.c.b16 %v197, %v196
  %v244 = vpack.c.b16 %v199, %v198
  %v245 = vpack.c.b16 %v201, %v200
  %v246 = vpack.c.b16 %v203, %v202
  %v247 = vpack.c.b16 %v205, %v204
  %v248 = vpack.c.b16 %v207, %v206
  %v249 = vpack.c.b16 %v209, %v208
  %v250 = vpack.c.b16 %v211, %v210
  %v251 = vpack.c.b16 %v213, %v212
  %v252 = vpack.c.b16 %v215, %v214
  %v253 = vpack.c.b16 %v217, %v216
  %v254 = vpack.c.b16 %v219, %v218
  %v255 = vpack.c.b16 %v221, %v220
  %v256 = vpack.c.b16 %v223, %v222
  %v257 = vpack.c.b16 %v225, %v224
  %290 = vmatprep.subr.bf16.mxu0 0
  %291 = vmatpush1.bf16.msra.mxu0 %v226
  %292 = vmatprep.subr.bf16.mxu0 0
  %293 = vmatpush1.bf16.msra.mxu0 %v227
  %294 = vmatprep.subr.bf16.mxu0 0
  %295 = vmatpush1.bf16.msra.mxu0 %v228
  %296 = vmatprep.subr.bf16.mxu0 0
  %297 = vmatpush1.bf16.msra.mxu0 %v229
  %298 = vmatprep.subr.bf16.mxu0 0
  %299 = vmatpush1.bf16.msra.mxu0 %v230
  %300 = vmatprep.subr.bf16.mxu0 0
  %301 = vmatpush1.bf16.msra.mxu0 %v231
  %302 = vmatprep.subr.bf16.mxu0 0
  %303 = vmatpush1.bf16.msra.mxu0 %v232
  %304 = vmatprep.subr.bf16.mxu0 0
  %305 = vmatpush1.bf16.msra.mxu0 %v233
  %306 = vmatprep.subr.bf16.mxu0 0
  %307 = vmatpush1.bf16.msra.mxu0 %v234
  %308 = vmatprep.subr.bf16.mxu0 0
  %309 = vmatpush1.bf16.msra.mxu0 %v235
  %310 = vmatprep.subr.bf16.mxu0 0
  %311 = vmatpush1.bf16.msra.mxu0 %v236
  %312 = vmatprep.subr.bf16.mxu0 0
  %313 = vmatpush1.bf16.msra.mxu0 %v237
  %314 = vmatprep.subr.bf16.mxu0 0
  %315 = vmatpush1.bf16.msra.mxu0 %v238
  %316 = vmatprep.subr.bf16.mxu0 0
  %317 = vmatpush1.bf16.msra.mxu0 %v239
  %318 = vmatprep.subr.bf16.mxu0 0
  %319 = vmatpush1.bf16.msra.mxu0 %v240
  %320 = vmatprep.subr.bf16.mxu0 0
  %321 = vmatpush1.bf16.msra.mxu0 %v241
  %322 = vmatprep.mubr.bf16.mxu0 %v91
  %323 = vmatmul.mubr.bf16.gmra.mrb[0].mxu0 %v90
  %v324 = vpop.f32.mrb[0].mxu0
  %v325 = vadd.f32 0.0, %v324
  %v326 = vpop.f32.mrb[0].mxu0
  %v327 = vpop.f32.mrb[0].mxu0
  %v328 = vpop.f32.mrb[0].mxu0
  %329 = vdwg.mxu0
  %330 = vmatprep.subr.bf16.mxu0 0
  %331 = vmatpush1.bf16.msra.mxu0 %v242
  %332 = vmatprep.subr.bf16.mxu0 0
  %333 = vmatpush1.bf16.msra.mxu0 %v243
  %334 = vmatprep.subr.bf16.mxu0 0
  %335 = vmatpush1.bf16.msra.mxu0 %v244
  %336 = vmatprep.subr.bf16.mxu0 0
  %337 = vmatpush1.bf16.msra.mxu0 %v245
  %338 = vmatprep.subr.bf16.mxu0 0
  %339 = vmatpush1.bf16.msra.mxu0 %v246
  %340 = vmatprep.subr.bf16.mxu0 0
  %341 = vmatpush1.bf16.msra.mxu0 %v247
  %342 = vmatprep.subr.bf16.mxu0 0
  %343 = vmatpush1.bf16.msra.mxu0 %v248
  %344 = vmatprep.subr.bf16.mxu0 0
  %345 = vmatpush1.bf16.msra.mxu0 %v249
  %346 = vmatprep.subr.bf16.mxu0 0
  %347 = vmatpush1.bf16.msra.mxu0 %v250
  %348 = vmatprep.subr.bf16.mxu0 0
  %349 = vmatpush1.bf16.msra.mxu0 %v251
  %350 = vmatprep.subr.bf16.mxu0 0
  %351 = vmatpush1.bf16.msra.mxu0 %v252
  %352 = vmatprep.subr.bf16.mxu0 0
  %353 = vmatpush1.bf16.msra.mxu0 %v253
  %354 = vmatprep.subr.bf16.mxu0 0
  %355 = vmatpush1.bf16.msra.mxu0 %v254
  %356 = vmatprep.subr.bf16.mxu0 0
  %357 = vmatpush1.bf16.msra.mxu0 %v255
  %358 = vmatprep.subr.bf16.mxu0 0
  %359 = vmatpush1.bf16.msra.mxu0 %v256
  %360 = vmatprep.subr.bf16.mxu0 0
  %361 = vmatpush1.bf16.msra.mxu0 %v257
  %362 = vmatprep.mubr.bf16.mxu0 %v93
  %363 = vmatmul.mubr.bf16.gmra.mrb[0].mxu0 %v92
  %v364 = vpop.f32.mrb[0].mxu0
  %v365 = vadd.f32 %v325, %v364
  %v366 = vpop.f32.mrb[0].mxu0
  %v367 = vpop.f32.mrb[0].mxu0
  %v368 = vpop.f32.mrb[0].mxu0
  %369 = vdwg.mxu0
  %vm370 = vcmask 523264
  %v371 = vsel %vm370, %v365, 0.0
  %v372 = vrot.slane %v371, 4
  %v373 = vadd.f32 %v371, %v372
  %v374 = vrot.slane %v373, 2
  %v375 = vadd.f32 %v373, %v374
  %v376 = vrot.slane %v375, 1
  %v377 = vadd.f32 %v375, %v376
  %v378 = vrcp.pop 8.0
  %v379 = vmul.f32 %v377, %v378
  %v380 = vsub.f32 %v365, %v379
  %v381 = vmul.f32 %v380, %v380
  %v382 = vsel %vm370, %v381, 0.0
  %v383 = vrot.slane %v382, 4
  %v384 = vadd.f32 %v382, %v383
  %v385 = vrot.slane %v384, 2
  %v386 = vadd.f32 %v384, %v385
  %v387 = vrot.slane %v386, 1
  %v388 = vadd.f32 %v386, %v387
  %v389 = vmul.f32 %v388, %v378
  %v390 = vld [vmem:[%s2] sm:$0x1]
  %v391 = vadd.f32 %v389, 1e-05
  %v392 = vrsqrt.pop %v391
  %v393 = vmul.f32 %v390, %v392
  %v395 = vlaneseq
  %v396 = vshrl.u32 %v395, 7
  %v397 = vsub.s32 0, %v396
  %v398 = vrot.slane %v393, %v397
  %v400 = vmul.f32 %v380, %v398
  %v401 = vld [vmem:[%s3] sm:$0x1]
  %v403 = vlaneseq
  %v404 = vshrl.u32 %v403, 7
  %v405 = vsub.s32 0, %v404
  %v406 = vrot.slane %v401, %v405
  %v408 = vadd.f32 %v400, %v406
  %v409 = vmax.f32 %v408, 0.0
  %410 = vst.msk [vmem:[%s4] sm:$0xff] %vm370, %v409
  // Predicated region
  $region18: #{autoencoder_forward.10} parent=0 // pred_check
    _
  $region19: #{autoencoder_forward.10} parent=0 // pred_check_branch
    %412 = sbr.rel (0) target = $region21
  $region20: #{autoencoder_forward.10} parent=0 // pred_region
    _
  $region21: #{autoencoder_forward.10} parent=0 // pred_fallthru
    _
  // Predicated region
  $region22: #{autoencoder_forward.10} parent=0 // pred_check
    _
  $region23: #{autoencoder_forward.10} parent=0 // pred_check_branch
    %414 = sbr.rel (0) target = $region25
  $region24: #{autoencoder_forward.10} parent=0 // pred_region
    _
  $region25: #{autoencoder_forward.10} parent=0 // pred_fallthru
    _

// kernel: autoencoder_forward.11
$region0: #{autoencoder_forward.11}
  #allocation0 [shape = 'u32[]', space=smem, size = 0x4, offset = 0x4, fixed_abs, tag = 'smem constant byte address 0x4 - core index']
  #allocation1 [shape = 'u32[144,128]{1,0:T(1,128)}', space=vmem, size = 0x12000, scoped, tag = 'internal scratch']
  %s0 = inlined_call_operand.vmem [shape: bf16[8,1024], index: 0, kind: input, shape index: {}]
  %s1 = inlined_call_operand.vmem [shape: bf16[1024,64], index: 1, kind: input, shape index: {}]
  %s2 = inlined_call_operand.vmem [shape: f32[1,64], index: 2, kind: input, shape index: {}]
  %s3 = inlined_call_operand.vmem [shape: f32[8,64], index: 3, kind: output, shape index: {}]
  %s4 = sld [smem:[#allocation0]]
  $region22: #{autoencoder_forward.11} parent=0
    _
  %s6 = ssub.s32 1, %s4
  %s7 = scalar_select 0, %s6, %s4
  // Predicated region
  $region2: #{autoencoder_forward.11} parent=0 // pred_check
    _
  $region3: #{autoencoder_forward.11} parent=0 // pred_check_branch
    %9 = sbr.rel (0) target = $region5
  $region4: #{autoencoder_forward.11} parent=0 // pred_region
    _
  $region5: #{autoencoder_forward.11} parent=0 // pred_fallthru
    _
  // Predicated region
  $region6: #{autoencoder_forward.11} parent=0 // pred_check
    _
  $region7: #{autoencoder_forward.11} parent=0 // pred_check_branch
    %11 = sbr.rel (0) target = $region9
  $region8: #{autoencoder_forward.11} parent=0 // pred_region
    _
  $region9: #{autoencoder_forward.11} parent=0 // pred_fallthru
    _
  // Predicated region
  $region10: #{autoencoder_forward.11} parent=0 // pred_check
    _
  $region11: #{autoencoder_forward.11} parent=0 // pred_check_branch
    %13 = sbr.rel (0) target = $region13
  $region12: #{autoencoder_forward.11} parent=0 // pred_region
    _
  $region13: #{autoencoder_forward.11} parent=0 // pred_fallthru
    _
  %v15 = vld [vmem:[%s0] sm:$0xff]
  %v16 = vld [vmem:[%s0 + $0x8] sm:$0xff]
  %v17 = vld [vmem:[%s0 + $0x10] sm:$0xff]
  %v18 = vld [vmem:[%s0 + $0x18] sm:$0xff]
  %v19 = vld [vmem:[%s1] sm:$0xf]
  %v20 = vld [vmem:[%s1 + $0x4] sm:$0xf]
  %v21 = vld [vmem:[%s1 + $0x8] sm:$0xf]
  %v22 = vld [vmem:[%s1 + $0xc] sm:$0xf]
  %v23 = vld [vmem:[%s1 + $0x10] sm:$0xf]
  %v24 = vld [vmem:[%s1 + $0x14] sm:$0xf]
  %v25 = vld [vmem:[%s1 + $0x18] sm:$0xf]
  %v26 = vld [vmem:[%s1 + $0x1c] sm:$0xf]
  %v27 = vld [vmem:[%s1 + $0x20] sm:$0xf]
  %v28 = vld [vmem:[%s1 + $0x24] sm:$0xf]
  %v29 = vld [vmem:[%s1 + $0x28] sm:$0xf]
  %v30 = vld [vmem:[%s1 + $0x2c] sm:$0xf]
  %v31 = vld [vmem:[%s1 + $0x30] sm:$0xf]
  %v32 = vld [vmem:[%s1 + $0x34] sm:$0xf]
  %v33 = vld [vmem:[%s1 + $0x38] sm:$0xf]
  %v34 = vld [vmem:[%s1 + $0x3c] sm:$0xf]
  %v35 = vld [vmem:[%s1 + $0x40] sm:$0xf]
  %v36 = vld [vmem:[%s1 + $0x44] sm:$0xf]
  %v37 = vld [vmem:[%s1 + $0x48] sm:$0xf]
  %v38 = vld [vmem:[%s1 + $0x4c] sm:$0xf]
  %v39 = vld [vmem:[%s1 + $0x50] sm:$0xf]
  %v40 = vld [vmem:[%s1 + $0x54] sm:$0xf]
  %v41 = vld [vmem:[%s1 + $0x58] sm:$0xf]
  %v42 = vld [vmem:[%s1 + $0x5c] sm:$0xf]
  %v43 = vld [vmem:[%s1 + $0x60] sm:$0xf]
  %v44 = vld [vmem:[%s1 + $0x64] sm:$0xf]
  %v45 = vld [vmem:[%s1 + $0x68] sm:$0xf]
  %v46 = vld [vmem:[%s1 + $0x6c] sm:$0xf]
  %v47 = vld [vmem:[%s1 + $0x70] sm:$0xf]
  %v48 = vld [vmem:[%s1 + $0x74] sm:$0xf]
  %v49 = vld [vmem:[%s1 + $0x78] sm:$0xf]
  %v50 = vld [vmem:[%s1 + $0x7c] sm:$0xf]
  %v51 = vld [vmem:[%s1 + $0x80] sm:$0xf]
  %v52 = vld [vmem:[%s1 + $0x84] sm:$0xf]
  %v53 = vld [vmem:[%s1 + $0x88] sm:$0xf]
  %v54 = vld [vmem:[%s1 + $0x8c] sm:$0xf]
  %v55 = vld [vmem:[%s1 + $0x90] sm:$0xf]
  %v56 = vld [vmem:[%s1 + $0x94] sm:$0xf]
  %v57 = vld [vmem:[%s1 + $0x98] sm:$0xf]
  %v58 = vld [vmem:[%s1 + $0x9c] sm:$0xf]
  %v59 = vld [vmem:[%s1 + $0xa0] sm:$0xf]
  %v60 = vld [vmem:[%s1 + $0xa4] sm:$0xf]
  %v61 = vld [vmem:[%s1 + $0xa8] sm:$0xf]
  %v62 = vld [vmem:[%s1 + $0xac] sm:$0xf]
  %v63 = vld [vmem:[%s1 + $0xb0] sm:$0xf]
  %v64 = vld [vmem:[%s1 + $0xb4] sm:$0xf]
  %v65 = vld [vmem:[%s1 + $0xb8] sm:$0xf]
  %v66 = vld [vmem:[%s1 + $0xbc] sm:$0xf]
  %v67 = vld [vmem:[%s1 + $0xc0] sm:$0xf]
  %v68 = vld [vmem:[%s1 + $0xc4] sm:$0xf]
  %v69 = vld [vmem:[%s1 + $0xc8] sm:$0xf]
  %v70 = vld [vmem:[%s1 + $0xcc] sm:$0xf]
  %v71 = vld [vmem:[%s1 + $0xd0] sm:$0xf]
  %v72 = vld [vmem:[%s1 + $0xd4] sm:$0xf]
  %v73 = vld [vmem:[%s1 + $0xd8] sm:$0xf]
  %v74 = vld [vmem:[%s1 + $0xdc] sm:$0xf]
  %v75 = vld [vmem:[%s1 + $0xe0] sm:$0xf]
  %v76 = vld [vmem:[%s1 + $0xe4] sm:$0xf]
  %v77 = vld [vmem:[%s1 + $0xe8] sm:$0xf]
  %v78 = vld [vmem:[%s1 + $0xec] sm:$0xf]
  %v79 = vld [vmem:[%s1 + $0xf0] sm:$0xf]
  %v80 = vld [vmem:[%s1 + $0xf4] sm:$0xf]
  %v81 = vld [vmem:[%s1 + $0xf8] sm:$0xf]
  %v82 = vld [vmem:[%s1 + $0xfc] sm:$0xf]
  %v83 = vld [vmem:[%s1 + $0x100] sm:$0xf]
  %v84 = vld [vmem:[%s1 + $0x104] sm:$0xf]
  %v85 = vld [vmem:[%s1 + $0x108] sm:$0xf]
  %v86 = vld [vmem:[%s1 + $0x10c] sm:$0xf]
  %v87 = vld [vmem:[%s1 + $0x110] sm:$0xf]
  %v88 = vld [vmem:[%s1 + $0x114] sm:$0xf]
  %v89 = vld [vmem:[%s1 + $0x118] sm:$0xf]
  %v90 = vld [vmem:[%s1 + $0x11c] sm:$0xf]
  %v91 = vld [vmem:[%s1 + $0x120] sm:$0xf]
  %v92 = vld [vmem:[%s1 + $0x124] sm:$0xf]
  %v93 = vld [vmem:[%s1 + $0x128] sm:$0xf]
  %v94 = vld [vmem:[%s1 + $0x12c] sm:$0xf]
  %v95 = vld [vmem:[%s1 + $0x130] sm:$0xf]
  %v96 = vld [vmem:[%s1 + $0x134] sm:$0xf]
  %v97 = vld [vmem:[%s1 + $0x138] sm:$0xf]
  %v98 = vld [vmem:[%s1 + $0x13c] sm:$0xf]
  %v99 = vld [vmem:[%s1 + $0x140] sm:$0xf]
  %v100 = vld [vmem:[%s1 + $0x144] sm:$0xf]
  %v101 = vld [vmem:[%s1 + $0x148] sm:$0xf]
  %v102 = vld [vmem:[%s1 + $0x14c] sm:$0xf]
  %v103 = vld [vmem:[%s1 + $0x150] sm:$0xf]
  %v104 = vld [vmem:[%s1 + $0x154] sm:$0xf]
  %v105 = vld [vmem:[%s1 + $0x158] sm:$0xf]
  %v106 = vld [vmem:[%s1 + $0x15c] sm:$0xf]
  %v107 = vld [vmem:[%s1 + $0x160] sm:$0xf]
  %v108 = vld [vmem:[%s1 + $0x164] sm:$0xf]
  %v109 = vld [vmem:[%s1 + $0x168] sm:$0xf]
  %v110 = vld [vmem:[%s1 + $0x16c] sm:$0xf]
  %v111 = vld [vmem:[%s1 + $0x170] sm:$0xf]
  %v112 = vld [vmem:[%s1 + $0x174] sm:$0xf]
  %v113 = vld [vmem:[%s1 + $0x178] sm:$0xf]
  %v114 = vld [vmem:[%s1 + $0x17c] sm:$0xf]
  %v115 = vld [vmem:[%s1 + $0x180] sm:$0xf]
  %v116 = vld [vmem:[%s1 + $0x184] sm:$0xf]
  %v117 = vld [vmem:[%s1 + $0x188] sm:$0xf]
  %v118 = vld [vmem:[%s1 + $0x18c] sm:$0xf]
  %v119 = vld [vmem:[%s1 + $0x190] sm:$0xf]
  %v120 = vld [vmem:[%s1 + $0x194] sm:$0xf]
  %v121 = vld [vmem:[%s1 + $0x198] sm:$0xf]
  %v122 = vld [vmem:[%s1 + $0x19c] sm:$0xf]
  %v123 = vld [vmem:[%s1 + $0x1a0] sm:$0xf]
  %v124 = vld [vmem:[%s1 + $0x1a4] sm:$0xf]
  %v125 = vld [vmem:[%s1 + $0x1a8] sm:$0xf]
  %v126 = vld [vmem:[%s1 + $0x1ac] sm:$0xf]
  %v127 = vld [vmem:[%s1 + $0x1b0] sm:$0xf]
  %v128 = vld [vmem:[%s1 + $0x1b4] sm:$0xf]
  %v129 = vld [vmem:[%s1 + $0x1b8] sm:$0xf]
  %v130 = vld [vmem:[%s1 + $0x1bc] sm:$0xf]
  %v131 = vld [vmem:[%s1 + $0x1c0] sm:$0xf]
  %v132 = vld [vmem:[%s1 + $0x1c4] sm:$0xf]
  %v133 = vld [vmem:[%s1 + $0x1c8] sm:$0xf]
  %v134 = vld [vmem:[%s1 + $0x1cc] sm:$0xf]
  %v135 = vld [vmem:[%s1 + $0x1d0] sm:$0xf]
  %v136 = vld [vmem:[%s1 + $0x1d4] sm:$0xf]
  %v137 = vld [vmem:[%s1 + $0x1d8] sm:$0xf]
  %v138 = vld [vmem:[%s1 + $0x1dc] sm:$0xf]
  %v139 = vld [vmem:[%s1 + $0x1e0] sm:$0xf]
  %v140 = vld [vmem:[%s1 + $0x1e4] sm:$0xf]
  %v141 = vld [vmem:[%s1 + $0x1e8] sm:$0xf]
  %v142 = vld [vmem:[%s1 + $0x1ec] sm:$0xf]
  %v143 = vld [vmem:[%s1 + $0x1f0] sm:$0xf]
  %v144 = vld [vmem:[%s1 + $0x1f4] sm:$0xf]
  %v145 = vld [vmem:[%s1 + $0x1f8] sm:$0xf]
  %v146 = vld [vmem:[%s1 + $0x1fc] sm:$0xf]
  %v147 = vld [vmem:[%s2] sm:$0x1]
  %v149 = vlaneseq
  %v150 = vshrl.u32 %v149, 7
  %v151 = vsub.s32 0, %v150
  %v152 = vrot.slane %v147, %v151
  %v158 = vunpack.c.l.b16 %v15
  %v159 = vunpack.c.h.b16 %v15
  %v160 = vunpack.c.l.b16 %v16
  %v161 = vunpack.c.h.b16 %v16
  %v162 = vunpack.c.l.b16 %v17
  %v163 = vunpack.c.h.b16 %v17
  %v164 = vunpack.c.l.b16 %v18
  %v165 = vunpack.c.h.b16 %v18
  %v166 = vpack.c.b16 %v158, %v158
  %v167 = vpack.c.b16 %v159, %v159
  %v168 = vpack.c.b16 %v160, %v160
  %v169 = vpack.c.b16 %v161, %v161
  %v170 = vpack.c.b16 %v162, %v162
  %v171 = vpack.c.b16 %v163, %v163
  %v172 = vpack.c.b16 %v164, %v164
  %v173 = vpack.c.b16 %v165, %v165
  %v310 = vunpack.c.l.b16 %v19
  %v311 = vunpack.c.l.b16 %v20
  %v312 = vunpack.c.l.b16 %v21
  %v313 = vunpack.c.l.b16 %v22
  %v314 = vunpack.c.l.b16 %v23
  %v315 = vunpack.c.l.b16 %v24
  %v316 = vunpack.c.l.b16 %v25
  %v317 = vunpack.c.l.b16 %v26
  %v318 = vunpack.c.l.b16 %v27
  %v319 = vunpack.c.l.b16 %v28
  %v320 = vunpack.c.l.b16 %v29
  %v321 = vunpack.c.l.b16 %v30
  %v322 = vunpack.c.l.b16 %v31
  %v323 = vunpack.c.l.b16 %v32
  %v324 = vunpack.c.l.b16 %v33
  %v325 = vunpack.c.l.b16 %v34
  %v326 = vunpack.c.l.b16 %v35
  %v327 = vunpack.c.l.b16 %v36
  %v328 = vunpack.c.l.b16 %v37
  %v329 = vunpack.c.l.b16 %v38
  %v330 = vunpack.c.l.b16 %v39
  %v331 = vunpack.c.l.b16 %v40
  %v332 = vunpack.c.l.b16 %v41
  %v333 = vunpack.c.l.b16 %v42
  %v334 = vunpack.c.l.b16 %v43
  %v335 = vunpack.c.l.b16 %v44
  %v336 = vunpack.c.l.b16 %v45
  %v337 = vunpack.c.l.b16 %v46
  %v338 = vunpack.c.l.b16 %v47
  %v339 = vunpack.c.l.b16 %v48
  %v340 = vunpack.c.l.b16 %v49
  %v341 = vunpack.c.l.b16 %v50
  %v342 = vunpack.c.l.b16 %v51
  %v343 = vunpack.c.l.b16 %v52
  %v344 = vunpack.c.l.b16 %v53
  %v345 = vunpack.c.l.b16 %v54
  %v346 = vunpack.c.l.b16 %v55
  %v347 = vunpack.c.l.b16 %v56
  %v348 = vunpack.c.l.b16 %v57
  %v349 = vunpack.c.l.b16 %v58
  %v350 = vunpack.c.l.b16 %v59
  %v351 = vunpack.c.l.b16 %v60
  %v352 = vunpack.c.l.b16 %v61
  %v353 = vunpack.c.l.b16 %v62
  %v354 = vunpack.c.l.b16 %v63
  %v355 = vunpack.c.l.b16 %v64
  %v356 = vunpack.c.l.b16 %v65
  %v357 = vunpack.c.l.b16 %v66
  %v358 = vunpack.c.l.b16 %v67
  %v359 = vunpack.c.l.b16 %v68
  %v360 = vunpack.c.l.b16 %v69
  %v361 = vunpack.c.l.b16 %v70
  %v362 = vunpack.c.l.b16 %v71
  %v363 = vunpack.c.l.b16 %v72
  %v364 = vunpack.c.l.b16 %v73
  %v365 = vunpack.c.l.b16 %v74
  %v366 = vunpack.c.l.b16 %v75
  %v367 = vunpack.c.l.b16 %v76
  %v368 = vunpack.c.l.b16 %v77
  %v369 = vunpack.c.l.b16 %v78
  %v370 = vunpack.c.l.b16 %v79
  %v371 = vunpack.c.l.b16 %v80
  %v372 = vunpack.c.l.b16 %v81
  %v373 = vunpack.c.l.b16 %v82
  %v374 = vunpack.c.l.b16 %v83
  %v375 = vunpack.c.l.b16 %v84
  %v376 = vunpack.c.l.b16 %v85
  %v377 = vunpack.c.l.b16 %v86
  %v378 = vunpack.c.l.b16 %v87
  %v379 = vunpack.c.l.b16 %v88
  %v380 = vunpack.c.l.b16 %v89
  %v381 = vunpack.c.l.b16 %v90
  %v382 = vunpack.c.l.b16 %v91
  %v383 = vunpack.c.l.b16 %v92
  %v384 = vunpack.c.l.b16 %v93
  %v385 = vunpack.c.l.b16 %v94
  %v386 = vunpack.c.l.b16 %v95
  %v387 = vunpack.c.l.b16 %v96
  %v388 = vunpack.c.l.b16 %v97
  %v389 = vunpack.c.l.b16 %v98
  %v390 = vunpack.c.l.b16 %v99
  %v391 = vunpack.c.l.b16 %v100
  %v392 = vunpack.c.l.b16 %v101
  %v393 = vunpack.c.l.b16 %v102
  %v394 = vunpack.c.l.b16 %v103
  %v395 = vunpack.c.l.b16 %v104
  %v396 = vunpack.c.l.b16 %v105
  %v397 = vunpack.c.l.b16 %v106
  %v398 = vunpack.c.l.b16 %v107
  %v399 = vunpack.c.l.b16 %v108
  %v400 = vunpack.c.l.b16 %v109
  %v401 = vunpack.c.l.b16 %v110
  %v402 = vunpack.c.l.b16 %v111
  %v403 = vunpack.c.l.b16 %v112
  %v404 = vunpack.c.l.b16 %v113
  %v405 = vunpack.c.l.b16 %v114
  %v406 = vunpack.c.l.b16 %v115
  %v407 = vunpack.c.l.b16 %v116
  %v408 = vunpack.c.l.b16 %v117
  %v409 = vunpack.c.l.b16 %v118
  %v410 = vunpack.c.l.b16 %v119
  %v411 = vunpack.c.l.b16 %v120
  %v412 = vunpack.c.l.b16 %v121
  %v413 = vunpack.c.l.b16 %v122
  %v414 = vunpack.c.l.b16 %v123
  %v415 = vunpack.c.l.b16 %v124
  %v416 = vunpack.c.l.b16 %v125
  %v417 = vunpack.c.l.b16 %v126
  %v418 = vunpack.c.l.b16 %v127
  %v419 = vunpack.c.l.b16 %v128
  %v420 = vunpack.c.l.b16 %v129
  %v421 = vunpack.c.l.b16 %v130
  %v422 = vunpack.c.l.b16 %v131
  %v423 = vunpack.c.l.b16 %v132
  %v424 = vunpack.c.l.b16 %v133
  %v425 = vunpack.c.l.b16 %v134
  %v426 = vunpack.c.l.b16 %v135
  %v427 = vunpack.c.l.b16 %v136
  %v428 = vunpack.c.l.b16 %v137
  %v429 = vunpack.c.l.b16 %v138
  %v430 = vunpack.c.l.b16 %v139
  %v431 = vunpack.c.l.b16 %v140
  %v432 = vunpack.c.l.b16 %v141
  %v433 = vunpack.c.l.b16 %v142
  %v434 = vunpack.c.l.b16 %v143
  %v435 = vunpack.c.l.b16 %v144
  %v436 = vunpack.c.l.b16 %v145
  %v437 = vunpack.c.l.b16 %v146
  %v438 = vpack.c.b16 %v311, %v310
  %v439 = vpack.c.b16 %v313, %v312
  %v440 = vpack.c.b16 %v315, %v314
  %v441 = vpack.c.b16 %v317, %v316
  %v442 = vpack.c.b16 %v319, %v318
  %v443 = vpack.c.b16 %v321, %v320
  %v444 = vpack.c.b16 %v323, %v322
  %v445 = vpack.c.b16 %v325, %v324
  %v446 = vpack.c.b16 %v327, %v326
  %v447 = vpack.c.b16 %v329, %v328
  %v448 = vpack.c.b16 %v331, %v330
  %v449 = vpack.c.b16 %v333, %v332
  %v450 = vpack.c.b16 %v335, %v334
  %v451 = vpack.c.b16 %v337, %v336
  %v452 = vpack.c.b16 %v339, %v338
  %v453 = vpack.c.b16 %v341, %v340
  %v454 = vpack.c.b16 %v343, %v342
  %v455 = vpack.c.b16 %v345, %v344
  %v456 = vpack.c.b16 %v347, %v346
  %v457 = vpack.c.b16 %v349, %v348
  %v458 = vpack.c.b16 %v351, %v350
  %v459 = vpack.c.b16 %v353, %v352
  %v460 = vpack.c.b16 %v355, %v354
  %v461 = vpack.c.b16 %v357, %v356
  %v462 = vpack.c.b16 %v359, %v358
  %v463 = vpack.c.b16 %v361, %v360
  %v464 = vpack.c.b16 %v363, %v362
  %v465 = vpack.c.b16 %v365, %v364
  %v466 = vpack.c.b16 %v367, %v366
  %v467 = vpack.c.b16 %v369, %v368
  %v468 = vpack.c.b16 %v371, %v370
  %v469 = vpack.c.b16 %v373, %v372
  %v470 = vpack.c.b16 %v375, %v374
  %v471 = vpack.c.b16 %v377, %v376
  %v472 = vpack.c.b16 %v379, %v378
  %v473 = vpack.c.b16 %v381, %v380
  %v474 = vpack.c.b16 %v383, %v382
  %v475 = vpack.c.b16 %v385, %v384
  %v476 = vpack.c.b16 %v387, %v386
  %v477 = vpack.c.b16 %v389, %v388
  %v478 = vpack.c.b16 %v391, %v390
  %v479 = vpack.c.b16 %v393, %v392
  %v480 = vpack.c.b16 %v395, %v394
  %v481 = vpack.c.b16 %v397, %v396
  %v482 = vpack.c.b16 %v399, %v398
  %v483 = vpack.c.b16 %v401, %v400
  %v484 = vpack.c.b16 %v403, %v402
  %v485 = vpack.c.b16 %v405, %v404
  %v486 = vpack.c.b16 %v407, %v406
  %v487 = vpack.c.b16 %v409, %v408
  %v488 = vpack.c.b16 %v411, %v410
  %v489 = vpack.c.b16 %v413, %v412
  %v490 = vpack.c.b16 %v415, %v414
  %v491 = vpack.c.b16 %v417, %v416
  %v492 = vpack.c.b16 %v419, %v418
  %v493 = vpack.c.b16 %v421, %v420
  %v494 = vpack.c.b16 %v423, %v422
  %v495 = vpack.c.b16 %v425, %v424
  %v496 = vpack.c.b16 %v427, %v426
  %v497 = vpack.c.b16 %v429, %v428
  %v498 = vpack.c.b16 %v431, %v430
  %v499 = vpack.c.b16 %v433, %v432
  %v500 = vpack.c.b16 %v435, %v434
  %v501 = vpack.c.b16 %v437, %v436
  %566 = vmatprep.subr.bf16.mxu0 0
  %567 = vmatpush1.bf16.msra.mxu0 %v438
  %568 = vmatprep.subr.bf16.mxu0 0
  %569 = vmatpush1.bf16.msra.mxu0 %v439
  %570 = vmatprep.subr.bf16.mxu0 0
  %571 = vmatpush1.bf16.msra.mxu0 %v440
  %572 = vmatprep.subr.bf16.mxu0 0
  %573 = vmatpush1.bf16.msra.mxu0 %v441
  %574 = vmatprep.subr.bf16.mxu0 0
  %575 = vmatpush1.bf16.msra.mxu0 %v442
  %576 = vmatprep.subr.bf16.mxu0 0
  %577 = vmatpush1.bf16.msra.mxu0 %v443
  %578 = vmatprep.subr.bf16.mxu0 0
  %579 = vmatpush1.bf16.msra.mxu0 %v444
  %580 = vmatprep.subr.bf16.mxu0 0
  %581 = vmatpush1.bf16.msra.mxu0 %v445
  %582 = vmatprep.subr.bf16.mxu0 0
  %583 = vmatpush1.bf16.msra.mxu0 %v446
  %584 = vmatprep.subr.bf16.mxu0 0
  %585 = vmatpush1.bf16.msra.mxu0 %v447
  %586 = vmatprep.subr.bf16.mxu0 0
  %587 = vmatpush1.bf16.msra.mxu0 %v448
  %588 = vmatprep.subr.bf16.mxu0 0
  %589 = vmatpush1.bf16.msra.mxu0 %v449
  %590 = vmatprep.subr.bf16.mxu0 0
  %591 = vmatpush1.bf16.msra.mxu0 %v450
  %592 = vmatprep.subr.bf16.mxu0 0
  %593 = vmatpush1.bf16.msra.mxu0 %v451
  %594 = vmatprep.subr.bf16.mxu0 0
  %595 = vmatpush1.bf16.msra.mxu0 %v452
  %596 = vmatprep.subr.bf16.mxu0 0
  %597 = vmatpush1.bf16.msra.mxu0 %v453
  %598 = vmatprep.mubr.bf16.mxu0 %v167
  %599 = vmatmul.mubr.bf16.gmra.mrb[0].mxu0 %v166
  %v600 = vpop.f32.mrb[0].mxu0
  %v601 = vadd.f32 %v152, %v600
  %v602 = vpop.f32.mrb[0].mxu0
  %v603 = vpop.f32.mrb[0].mxu0
  %v604 = vpop.f32.mrb[0].mxu0
  %605 = vdwg.mxu0
  %606 = vmatprep.subr.bf16.mxu0 0
  %607 = vmatpush1.bf16.msra.mxu0 %v454
  %608 = vmatprep.subr.bf16.mxu0 0
  %609 = vmatpush1.bf16.msra.mxu0 %v455
  %610 = vmatprep.subr.bf16.mxu0 0
  %611 = vmatpush1.bf16.msra.mxu0 %v456
  %612 = vmatprep.subr.bf16.mxu0 0
  %613 = vmatpush1.bf16.msra.mxu0 %v457
  %614 = vmatprep.subr.bf16.mxu0 0
  %615 = vmatpush1.bf16.msra.mxu0 %v458
  %616 = vmatprep.subr.bf16.mxu0 0
  %617 = vmatpush1.bf16.msra.mxu0 %v459
  %618 = vmatprep.subr.bf16.mxu0 0
  %619 = vmatpush1.bf16.msra.mxu0 %v460
  %620 = vmatprep.subr.bf16.mxu0 0
  %621 = vmatpush1.bf16.msra.mxu0 %v461
  %622 = vmatprep.subr.bf16.mxu0 0
  %623 = vmatpush1.bf16.msra.mxu0 %v462
  %624 = vmatprep.subr.bf16.mxu0 0
  %625 = vmatpush1.bf16.msra.mxu0 %v463
  %626 = vmatprep.subr.bf16.mxu0 0
  %627 = vmatpush1.bf16.msra.mxu0 %v464
  %628 = vmatprep.subr.bf16.mxu0 0
  %629 = vmatpush1.bf16.msra.mxu0 %v465
  %630 = vmatprep.subr.bf16.mxu0 0
  %631 = vmatpush1.bf16.msra.mxu0 %v466
  %632 = vmatprep.subr.bf16.mxu0 0
  %633 = vmatpush1.bf16.msra.mxu0 %v467
  %634 = vmatprep.subr.bf16.mxu0 0
  %635 = vmatpush1.bf16.msra.mxu0 %v468
  %636 = vmatprep.subr.bf16.mxu0 0
  %637 = vmatpush1.bf16.msra.mxu0 %v469
  %638 = vmatprep.mubr.bf16.mxu0 %v169
  %639 = vmatmul.mubr.bf16.gmra.mrb[0].mxu0 %v168
  %v640 = vpop.f32.mrb[0].mxu0
  %v641 = vadd.f32 %v601, %v640
  %v642 = vpop.f32.mrb[0].mxu0
  %v643 = vpop.f32.mrb[0].mxu0
  %v644 = vpop.f32.mrb[0].mxu0
  %645 = vdwg.mxu0
  %646 = vmatprep.subr.bf16.mxu0 0
  %647 = vmatpush1.bf16.msra.mxu0 %v470
  %648 = vmatprep.subr.bf16.mxu0 0
  %649 = vmatpush1.bf16.msra.mxu0 %v471
  %650 = vmatprep.subr.bf16.mxu0 0
  %651 = vmatpush1.bf16.msra.mxu0 %v472
  %652 = vmatprep.subr.bf16.mxu0 0
  %653 = vmatpush1.bf16.msra.mxu0 %v473
  %654 = vmatprep.subr.bf16.mxu0 0
  %655 = vmatpush1.bf16.msra.mxu0 %v474
  %656 = vmatprep.subr.bf16.mxu0 0
  %657 = vmatpush1.bf16.msra.mxu0 %v475
  %658 = vmatprep.subr.bf16.mxu0 0
  %659 = vmatpush1.bf16.msra.mxu0 %v476
  %660 = vmatprep.subr.bf16.mxu0 0
  %661 = vmatpush1.bf16.msra.mxu0 %v477
  %662 = vmatprep.subr.bf16.mxu0 0
  %663 = vmatpush1.bf16.msra.mxu0 %v478
  %664 = vmatprep.subr.bf16.mxu0 0
  %665 = vmatpush1.bf16.msra.mxu0 %v479
  %666 = vmatprep.subr.bf16.mxu0 0
  %667 = vmatpush1.bf16.msra.mxu0 %v480
  %668 = vmatprep.subr.bf16.mxu0 0
  %669 = vmatpush1.bf16.msra.mxu0 %v481
  %670 = vmatprep.subr.bf16.mxu0 0
  %671 = vmatpush1.bf16.msra.mxu0 %v482
  %672 = vmatprep.subr.bf16.mxu0 0
  %673 = vmatpush1.bf16.msra.mxu0 %v483
  %674 = vmatprep.subr.bf16.mxu0 0
  %675 = vmatpush1.bf16.msra.mxu0 %v484
  %676 = vmatprep.subr.bf16.mxu0 0
  %677 = vmatpush1.bf16.msra.mxu0 %v485
  %678 = vmatprep.mubr.bf16.mxu0 %v171
  %679 = vmatmul.mubr.bf16.gmra.mrb[0].mxu0 %v170
  %v680 = vpop.f32.mrb[0].mxu0
  %v681 = vadd.f32 %v641, %v680
  %v682 = vpop.f32.mrb[0].mxu0
  %v683 = vpop.f32.mrb[0].mxu0
  %v684 = vpop.f32.mrb[0].mxu0
  %685 = vdwg.mxu0
  %686 = vmatprep.subr.bf16.mxu0 0
  %687 = vmatpush1.bf16.msra.mxu0 %v486
  %688 = vmatprep.subr.bf16.mxu0 0
  %689 = vmatpush1.bf16.msra.mxu0 %v487
  %690 = vmatprep.subr.bf16.mxu0 0
  %691 = vmatpush1.bf16.msra.mxu0 %v488
  %692 = vmatprep.subr.bf16.mxu0 0
  %693 = vmatpush1.bf16.msra.mxu0 %v489
  %694 = vmatprep.subr.bf16.mxu0 0
  %695 = vmatpush1.bf16.msra.mxu0 %v490
  %696 = vmatprep.subr.bf16.mxu0 0
  %697 = vmatpush1.bf16.msra.mxu0 %v491
  %698 = vmatprep.subr.bf16.mxu0 0
  %699 = vmatpush1.bf16.msra.mxu0 %v492
  %700 = vmatprep.subr.bf16.mxu0 0
  %701 = vmatpush1.bf16.msra.mxu0 %v493
  %702 = vmatprep.subr.bf16.mxu0 0
  %703 = vmatpush1.bf16.msra.mxu0 %v494
  %704 = vmatprep.subr.bf16.mxu0 0
  %705 = vmatpush1.bf16.msra.mxu0 %v495
  %706 = vmatprep.subr.bf16.mxu0 0
  %707 = vmatpush1.bf16.msra.mxu0 %v496
  %708 = vmatprep.subr.bf16.mxu0 0
  %709 = vmatpush1.bf16.msra.mxu0 %v497
  %710 = vmatprep.subr.bf16.mxu0 0
  %711 = vmatpush1.bf16.msra.mxu0 %v498
  %712 = vmatprep.subr.bf16.mxu0 0
  %713 = vmatpush1.bf16.msra.mxu0 %v499
  %714 = vmatprep.subr.bf16.mxu0 0
  %715 = vmatpush1.bf16.msra.mxu0 %v500
  %716 = vmatprep.subr.bf16.mxu0 0
  %717 = vmatpush1.bf16.msra.mxu0 %v501
  %718 = vmatprep.mubr.bf16.mxu0 %v173
  %719 = vmatmul.mubr.bf16.gmra.mrb[0].mxu0 %v172
  %v720 = vpop.f32.mrb[0].mxu0
  %v721 = vadd.f32 %v681, %v720
  %v722 = vpop.f32.mrb[0].mxu0
  %v723 = vpop.f32.mrb[0].mxu0
  %v724 = vpop.f32.mrb[0].mxu0
  %725 = vdwg.mxu0
  %vm726 = vcmask 523264
  %727 = vst.msk [vmem:[%s3] sm:$0xff] %vm726, %v721
  // Predicated region
  $region14: #{autoencoder_forward.11} parent=0 // pred_check
    _
  $region15: #{autoencoder_forward.11} parent=0 // pred_check_branch
    %729 = sbr.rel (0) target = $region17
  $region16: #{autoencoder_forward.11} parent=0 // pred_region
    _
  $region17: #{autoencoder_forward.11} parent=0 // pred_fallthru
    _
  // Predicated region
  $region18: #{autoencoder_forward.11} parent=0 // pred_check
    _
  $region19: #{autoencoder_forward.11} parent=0 // pred_check_branch
    %731 = sbr.rel (0) target = $region21
  $region20: #{autoencoder_forward.11} parent=0 // pred_region
    _
  $region21: #{autoencoder_forward.11} parent=0 // pred_fallthru
    _

// kernel: autoencoder_forward.12
$region0: #{autoencoder_forward.12}
  #allocation0 [shape = 'u32[]', space=smem, size = 0x4, offset = 0x4, fixed_abs, tag = 'smem constant byte address 0x4 - core index']
  #allocation1 [shape = 'u32[144,128]{1,0:T(1,128)}', space=vmem, size = 0x12000, scoped, tag = 'internal scratch']
  %s0 = inlined_call_operand.vmem [shape: bf16[8,1024], index: 0, kind: input, shape index: {}]
  %s1 = inlined_call_operand.vmem [shape: bf16[1024,64], index: 1, kind: input, shape index: {}]
  %s2 = inlined_call_operand.vmem [shape: f32[1,64], index: 2, kind: input, shape index: {}]
  %s3 = inlined_call_operand.vmem [shape: f32[1,64], index: 3, kind: input, shape index: {}]
  %s4 = inlined_call_operand.vmem [shape: f32[8,64], index: 4, kind: output, shape index: {}]
  %s5 = sld [smem:[#allocation0]]
  $region26: #{autoencoder_forward.12} parent=0
    _
  %s7 = ssub.s32 1, %s5
  %s8 = scalar_select 0, %s7, %s5
  // Predicated region
  $region2: #{autoencoder_forward.12} parent=0 // pred_check
    _
  $region3: #{autoencoder_forward.12} parent=0 // pred_check_branch
    %10 = sbr.rel (0) target = $region5
  $region4: #{autoencoder_forward.12} parent=0 // pred_region
    _
  $region5: #{autoencoder_forward.12} parent=0 // pred_fallthru
    _
  // Predicated region
  $region6: #{autoencoder_forward.12} parent=0 // pred_check
    _
  $region7: #{autoencoder_forward.12} parent=0 // pred_check_branch
    %12 = sbr.rel (0) target = $region9
  $region8: #{autoencoder_forward.12} parent=0 // pred_region
    _
  $region9: #{autoencoder_forward.12} parent=0 // pred_fallthru
    _
  // Predicated region
  $region10: #{autoencoder_forward.12} parent=0 // pred_check
    _
  $region11: #{autoencoder_forward.12} parent=0 // pred_check_branch
    %14 = sbr.rel (0) target = $region13
  $region12: #{autoencoder_forward.12} parent=0 // pred_region
    _
  $region13: #{autoencoder_forward.12} parent=0 // pred_fallthru
    _
  // Predicated region
  $region14: #{autoencoder_forward.12} parent=0 // pred_check
    _
  $region15: #{autoencoder_forward.12} parent=0 // pred_check_branch
    %16 = sbr.rel (0) target = $region17
  $region16: #{autoencoder_forward.12} parent=0 // pred_region
    _
  $region17: #{autoencoder_forward.12} parent=0 // pred_fallthru
    _
  %v18 = vld [vmem:[%s0] sm:$0xff]
  %v19 = vld [vmem:[%s0 + $0x8] sm:$0xff]
  %v20 = vld [vmem:[%s0 + $0x10] sm:$0xff]
  %v21 = vld [vmem:[%s0 + $0x18] sm:$0xff]
  %v22 = vld [vmem:[%s1] sm:$0xf]
  %v23 = vld [vmem:[%s1 + $0x4] sm:$0xf]
  %v24 = vld [vmem:[%s1 + $0x8] sm:$0xf]
  %v25 = vld [vmem:[%s1 + $0xc] sm:$0xf]
  %v26 = vld [vmem:[%s1 + $0x10] sm:$0xf]
  %v27 = vld [vmem:[%s1 + $0x14] sm:$0xf]
  %v28 = vld [vmem:[%s1 + $0x18] sm:$0xf]
  %v29 = vld [vmem:[%s1 + $0x1c] sm:$0xf]
  %v30 = vld [vmem:[%s1 + $0x20] sm:$0xf]
  %v31 = vld [vmem:[%s1 + $0x24] sm:$0xf]
  %v32 = vld [vmem:[%s1 + $0x28] sm:$0xf]
  %v33 = vld [vmem:[%s1 + $0x2c] sm:$0xf]
  %v34 = vld [vmem:[%s1 + $0x30] sm:$0xf]
  %v35 = vld [vmem:[%s1 + $0x34] sm:$0xf]
  %v36 = vld [vmem:[%s1 + $0x38] sm:$0xf]
  %v37 = vld [vmem:[%s1 + $0x3c] sm:$0xf]
  %v38 = vld [vmem:[%s1 + $0x40] sm:$0xf]
  %v39 = vld [vmem:[%s1 + $0x44] sm:$0xf]
  %v40 = vld [vmem:[%s1 + $0x48] sm:$0xf]
  %v41 = vld [vmem:[%s1 + $0x4c] sm:$0xf]
  %v42 = vld [vmem:[%s1 + $0x50] sm:$0xf]
  %v43 = vld [vmem:[%s1 + $0x54] sm:$0xf]
  %v44 = vld [vmem:[%s1 + $0x58] sm:$0xf]
  %v45 = vld [vmem:[%s1 + $0x5c] sm:$0xf]
  %v46 = vld [vmem:[%s1 + $0x60] sm:$0xf]
  %v47 = vld [vmem:[%s1 + $0x64] sm:$0xf]
  %v48 = vld [vmem:[%s1 + $0x68] sm:$0xf]
  %v49 = vld [vmem:[%s1 + $0x6c] sm:$0xf]
  %v50 = vld [vmem:[%s1 + $0x70] sm:$0xf]
  %v51 = vld [vmem:[%s1 + $0x74] sm:$0xf]
  %v52 = vld [vmem:[%s1 + $0x78] sm:$0xf]
  %v53 = vld [vmem:[%s1 + $0x7c] sm:$0xf]
  %v54 = vld [vmem:[%s1 + $0x80] sm:$0xf]
  %v55 = vld [vmem:[%s1 + $0x84] sm:$0xf]
  %v56 = vld [vmem:[%s1 + $0x88] sm:$0xf]
  %v57 = vld [vmem:[%s1 + $0x8c] sm:$0xf]
  %v58 = vld [vmem:[%s1 + $0x90] sm:$0xf]
  %v59 = vld [vmem:[%s1 + $0x94] sm:$0xf]
  %v60 = vld [vmem:[%s1 + $0x98] sm:$0xf]
  %v61 = vld [vmem:[%s1 + $0x9c] sm:$0xf]
  %v62 = vld [vmem:[%s1 + $0xa0] sm:$0xf]
  %v63 = vld [vmem:[%s1 + $0xa4] sm:$0xf]
  %v64 = vld [vmem:[%s1 + $0xa8] sm:$0xf]
  %v65 = vld [vmem:[%s1 + $0xac] sm:$0xf]
  %v66 = vld [vmem:[%s1 + $0xb0] sm:$0xf]
  %v67 = vld [vmem:[%s1 + $0xb4] sm:$0xf]
  %v68 = vld [vmem:[%s1 + $0xb8] sm:$0xf]
  %v69 = vld [vmem:[%s1 + $0xbc] sm:$0xf]
  %v70 = vld [vmem:[%s1 + $0xc0] sm:$0xf]
  %v71 = vld [vmem:[%s1 + $0xc4] sm:$0xf]
  %v72 = vld [vmem:[%s1 + $0xc8] sm:$0xf]
  %v73 = vld [vmem:[%s1 + $0xcc] sm:$0xf]
  %v74 = vld [vmem:[%s1 + $0xd0] sm:$0xf]
  %v75 = vld [vmem:[%s1 + $0xd4] sm:$0xf]
  %v76 = vld [vmem:[%s1 + $0xd8] sm:$0xf]
  %v77 = vld [vmem:[%s1 + $0xdc] sm:$0xf]
  %v78 = vld [vmem:[%s1 + $0xe0] sm:$0xf]
  %v79 = vld [vmem:[%s1 + $0xe4] sm:$0xf]
  %v80 = vld [vmem:[%s1 + $0xe8] sm:$0xf]
  %v81 = vld [vmem:[%s1 + $0xec] sm:$0xf]
  %v82 = vld [vmem:[%s1 + $0xf0] sm:$0xf]
  %v83 = vld [vmem:[%s1 + $0xf4] sm:$0xf]
  %v84 = vld [vmem:[%s1 + $0xf8] sm:$0xf]
  %v85 = vld [vmem:[%s1 + $0xfc] sm:$0xf]
  %v86 = vld [vmem:[%s1 + $0x100] sm:$0xf]
  %v87 = vld [vmem:[%s1 + $0x104] sm:$0xf]
  %v88 = vld [vmem:[%s1 + $0x108] sm:$0xf]
  %v89 = vld [vmem:[%s1 + $0x10c] sm:$0xf]
  %v90 = vld [vmem:[%s1 + $0x110] sm:$0xf]
  %v91 = vld [vmem:[%s1 + $0x114] sm:$0xf]
  %v92 = vld [vmem:[%s1 + $0x118] sm:$0xf]
  %v93 = vld [vmem:[%s1 + $0x11c] sm:$0xf]
  %v94 = vld [vmem:[%s1 + $0x120] sm:$0xf]
  %v95 = vld [vmem:[%s1 + $0x124] sm:$0xf]
  %v96 = vld [vmem:[%s1 + $0x128] sm:$0xf]
  %v97 = vld [vmem:[%s1 + $0x12c] sm:$0xf]
  %v98 = vld [vmem:[%s1 + $0x130] sm:$0xf]
  %v99 = vld [vmem:[%s1 + $0x134] sm:$0xf]
  %v100 = vld [vmem:[%s1 + $0x138] sm:$0xf]
  %v101 = vld [vmem:[%s1 + $0x13c] sm:$0xf]
  %v102 = vld [vmem:[%s1 + $0x140] sm:$0xf]
  %v103 = vld [vmem:[%s1 + $0x144] sm:$0xf]
  %v104 = vld [vmem:[%s1 + $0x148] sm:$0xf]
  %v105 = vld [vmem:[%s1 + $0x14c] sm:$0xf]
  %v106 = vld [vmem:[%s1 + $0x150] sm:$0xf]
  %v107 = vld [vmem:[%s1 + $0x154] sm:$0xf]
  %v108 = vld [vmem:[%s1 + $0x158] sm:$0xf]
  %v109 = vld [vmem:[%s1 + $0x15c] sm:$0xf]
  %v110 = vld [vmem:[%s1 + $0x160] sm:$0xf]
  %v111 = vld [vmem:[%s1 + $0x164] sm:$0xf]
  %v112 = vld [vmem:[%s1 + $0x168] sm:$0xf]
  %v113 = vld [vmem:[%s1 + $0x16c] sm:$0xf]
  %v114 = vld [vmem:[%s1 + $0x170] sm:$0xf]
  %v115 = vld [vmem:[%s1 + $0x174] sm:$0xf]
  %v116 = vld [vmem:[%s1 + $0x178] sm:$0xf]
  %v117 = vld [vmem:[%s1 + $0x17c] sm:$0xf]
  %v118 = vld [vmem:[%s1 + $0x180] sm:$0xf]
  %v119 = vld [vmem:[%s1 + $0x184] sm:$0xf]
  %v120 = vld [vmem:[%s1 + $0x188] sm:$0xf]
  %v121 = vld [vmem:[%s1 + $0x18c] sm:$0xf]
  %v122 = vld [vmem:[%s1 + $0x190] sm:$0xf]
  %v123 = vld [vmem:[%s1 + $0x194] sm:$0xf]
  %v124 = vld [vmem:[%s1 + $0x198] sm:$0xf]
  %v125 = vld [vmem:[%s1 + $0x19c] sm:$0xf]
  %v126 = vld [vmem:[%s1 + $0x1a0] sm:$0xf]
  %v127 = vld [vmem:[%s1 + $0x1a4] sm:$0xf]
  %v128 = vld [vmem:[%s1 + $0x1a8] sm:$0xf]
  %v129 = vld [vmem:[%s1 + $0x1ac] sm:$0xf]
  %v130 = vld [vmem:[%s1 + $0x1b0] sm:$0xf]
  %v131 = vld [vmem:[%s1 + $0x1b4] sm:$0xf]
  %v132 = vld [vmem:[%s1 + $0x1b8] sm:$0xf]
  %v133 = vld [vmem:[%s1 + $0x1bc] sm:$0xf]
  %v134 = vld [vmem:[%s1 + $0x1c0] sm:$0xf]
  %v135 = vld [vmem:[%s1 + $0x1c4] sm:$0xf]
  %v136 = vld [vmem:[%s1 + $0x1c8] sm:$0xf]
  %v137 = vld [vmem:[%s1 + $0x1cc] sm:$0xf]
  %v138 = vld [vmem:[%s1 + $0x1d0] sm:$0xf]
  %v139 = vld [vmem:[%s1 + $0x1d4] sm:$0xf]
  %v140 = vld [vmem:[%s1 + $0x1d8] sm:$0xf]
  %v141 = vld [vmem:[%s1 + $0x1dc] sm:$0xf]
  %v142 = vld [vmem:[%s1 + $0x1e0] sm:$0xf]
  %v143 = vld [vmem:[%s1 + $0x1e4] sm:$0xf]
  %v144 = vld [vmem:[%s1 + $0x1e8] sm:$0xf]
  %v145 = vld [vmem:[%s1 + $0x1ec] sm:$0xf]
  %v146 = vld [vmem:[%s1 + $0x1f0] sm:$0xf]
  %v147 = vld [vmem:[%s1 + $0x1f4] sm:$0xf]
  %v148 = vld [vmem:[%s1 + $0x1f8] sm:$0xf]
  %v149 = vld [vmem:[%s1 + $0x1fc] sm:$0xf]
  %v154 = vunpack.c.l.b16 %v18
  %v155 = vunpack.c.h.b16 %v18
  %v156 = vunpack.c.l.b16 %v19
  %v157 = vunpack.c.h.b16 %v19
  %v158 = vunpack.c.l.b16 %v20
  %v159 = vunpack.c.h.b16 %v20
  %v160 = vunpack.c.l.b16 %v21
  %v161 = vunpack.c.h.b16 %v21
  %v162 = vpack.c.b16 %v154, %v154
  %v163 = vpack.c.b16 %v155, %v155
  %v164 = vpack.c.b16 %v156, %v156
  %v165 = vpack.c.b16 %v157, %v157
  %v166 = vpack.c.b16 %v158, %v158
  %v167 = vpack.c.b16 %v159, %v159
  %v168 = vpack.c.b16 %v160, %v160
  %v169 = vpack.c.b16 %v161, %v161
  %v306 = vunpack.c.l.b16 %v22
  %v307 = vunpack.c.l.b16 %v23
  %v308 = vunpack.c.l.b16 %v24
  %v309 = vunpack.c.l.b16 %v25
  %v310 = vunpack.c.l.b16 %v26
  %v311 = vunpack.c.l.b16 %v27
  %v312 = vunpack.c.l.b16 %v28
  %v313 = vunpack.c.l.b16 %v29
  %v314 = vunpack.c.l.b16 %v30
  %v315 = vunpack.c.l.b16 %v31
  %v316 = vunpack.c.l.b16 %v32
  %v317 = vunpack.c.l.b16 %v33
  %v318 = vunpack.c.l.b16 %v34
  %v319 = vunpack.c.l.b16 %v35
  %v320 = vunpack.c.l.b16 %v36
  %v321 = vunpack.c.l.b16 %v37
  %v322 = vunpack.c.l.b16 %v38
  %v323 = vunpack.c.l.b16 %v39
  %v324 = vunpack.c.l.b16 %v40
  %v325 = vunpack.c.l.b16 %v41
  %v326 = vunpack.c.l.b16 %v42
  %v327 = vunpack.c.l.b16 %v43
  %v328 = vunpack.c.l.b16 %v44
  %v329 = vunpack.c.l.b16 %v45
  %v330 = vunpack.c.l.b16 %v46
  %v331 = vunpack.c.l.b16 %v47
  %v332 = vunpack.c.l.b16 %v48
  %v333 = vunpack.c.l.b16 %v49
  %v334 = vunpack.c.l.b16 %v50
  %v335 = vunpack.c.l.b16 %v51
  %v336 = vunpack.c.l.b16 %v52
  %v337 = vunpack.c.l.b16 %v53
  %v338 = vunpack.c.l.b16 %v54
  %v339 = vunpack.c.l.b16 %v55
  %v340 = vunpack.c.l.b16 %v56
  %v341 = vunpack.c.l.b16 %v57
  %v342 = vunpack.c.l.b16 %v58
  %v343 = vunpack.c.l.b16 %v59
  %v344 = vunpack.c.l.b16 %v60
  %v345 = vunpack.c.l.b16 %v61
  %v346 = vunpack.c.l.b16 %v62
  %v347 = vunpack.c.l.b16 %v63
  %v348 = vunpack.c.l.b16 %v64
  %v349 = vunpack.c.l.b16 %v65
  %v350 = vunpack.c.l.b16 %v66
  %v351 = vunpack.c.l.b16 %v67
  %v352 = vunpack.c.l.b16 %v68
  %v353 = vunpack.c.l.b16 %v69
  %v354 = vunpack.c.l.b16 %v70
  %v355 = vunpack.c.l.b16 %v71
  %v356 = vunpack.c.l.b16 %v72
  %v357 = vunpack.c.l.b16 %v73
  %v358 = vunpack.c.l.b16 %v74
  %v359 = vunpack.c.l.b16 %v75
  %v360 = vunpack.c.l.b16 %v76
  %v361 = vunpack.c.l.b16 %v77
  %v362 = vunpack.c.l.b16 %v78
  %v363 = vunpack.c.l.b16 %v79
  %v364 = vunpack.c.l.b16 %v80
  %v365 = vunpack.c.l.b16 %v81
  %v366 = vunpack.c.l.b16 %v82
  %v367 = vunpack.c.l.b16 %v83
  %v368 = vunpack.c.l.b16 %v84
  %v369 = vunpack.c.l.b16 %v85
  %v370 = vunpack.c.l.b16 %v86
  %v371 = vunpack.c.l.b16 %v87
  %v372 = vunpack.c.l.b16 %v88
  %v373 = vunpack.c.l.b16 %v89
  %v374 = vunpack.c.l.b16 %v90
  %v375 = vunpack.c.l.b16 %v91
  %v376 = vunpack.c.l.b16 %v92
  %v377 = vunpack.c.l.b16 %v93
  %v378 = vunpack.c.l.b16 %v94
  %v379 = vunpack.c.l.b16 %v95
  %v380 = vunpack.c.l.b16 %v96
  %v381 = vunpack.c.l.b16 %v97
  %v382 = vunpack.c.l.b16 %v98
  %v383 = vunpack.c.l.b16 %v99
  %v384 = vunpack.c.l.b16 %v100
  %v385 = vunpack.c.l.b16 %v101
  %v386 = vunpack.c.l.b16 %v102
  %v387 = vunpack.c.l.b16 %v103
  %v388 = vunpack.c.l.b16 %v104
  %v389 = vunpack.c.l.b16 %v105
  %v390 = vunpack.c.l.b16 %v106
  %v391 = vunpack.c.l.b16 %v107
  %v392 = vunpack.c.l.b16 %v108
  %v393 = vunpack.c.l.b16 %v109
  %v394 = vunpack.c.l.b16 %v110
  %v395 = vunpack.c.l.b16 %v111
  %v396 = vunpack.c.l.b16 %v112
  %v397 = vunpack.c.l.b16 %v113
  %v398 = vunpack.c.l.b16 %v114
  %v399 = vunpack.c.l.b16 %v115
  %v400 = vunpack.c.l.b16 %v116
  %v401 = vunpack.c.l.b16 %v117
  %v402 = vunpack.c.l.b16 %v118
  %v403 = vunpack.c.l.b16 %v119
  %v404 = vunpack.c.l.b16 %v120
  %v405 = vunpack.c.l.b16 %v121
  %v406 = vunpack.c.l.b16 %v122
  %v407 = vunpack.c.l.b16 %v123
  %v408 = vunpack.c.l.b16 %v124
  %v409 = vunpack.c.l.b16 %v125
  %v410 = vunpack.c.l.b16 %v126
  %v411 = vunpack.c.l.b16 %v127
  %v412 = vunpack.c.l.b16 %v128
  %v413 = vunpack.c.l.b16 %v129
  %v414 = vunpack.c.l.b16 %v130
  %v415 = vunpack.c.l.b16 %v131
  %v416 = vunpack.c.l.b16 %v132
  %v417 = vunpack.c.l.b16 %v133
  %v418 = vunpack.c.l.b16 %v134
  %v419 = vunpack.c.l.b16 %v135
  %v420 = vunpack.c.l.b16 %v136
  %v421 = vunpack.c.l.b16 %v137
  %v422 = vunpack.c.l.b16 %v138
  %v423 = vunpack.c.l.b16 %v139
  %v424 = vunpack.c.l.b16 %v140
  %v425 = vunpack.c.l.b16 %v141
  %v426 = vunpack.c.l.b16 %v142
  %v427 = vunpack.c.l.b16 %v143
  %v428 = vunpack.c.l.b16 %v144
  %v429 = vunpack.c.l.b16 %v145
  %v430 = vunpack.c.l.b16 %v146
  %v431 = vunpack.c.l.b16 %v147
  %v432 = vunpack.c.l.b16 %v148
  %v433 = vunpack.c.l.b16 %v149
  %v434 = vpack.c.b16 %v307, %v306
  %v435 = vpack.c.b16 %v309, %v308
  %v436 = vpack.c.b16 %v311, %v310
  %v437 = vpack.c.b16 %v313, %v312
  %v438 = vpack.c.b16 %v315, %v314
  %v439 = vpack.c.b16 %v317, %v316
  %v440 = vpack.c.b16 %v319, %v318
  %v441 = vpack.c.b16 %v321, %v320
  %v442 = vpack.c.b16 %v323, %v322
  %v443 = vpack.c.b16 %v325, %v324
  %v444 = vpack.c.b16 %v327, %v326
  %v445 = vpack.c.b16 %v329, %v328
  %v446 = vpack.c.b16 %v331, %v330
  %v447 = vpack.c.b16 %v333, %v332
  %v448 = vpack.c.b16 %v335, %v334
  %v449 = vpack.c.b16 %v337, %v336
  %v450 = vpack.c.b16 %v339, %v338
  %v451 = vpack.c.b16 %v341, %v340
  %v452 = vpack.c.b16 %v343, %v342
  %v453 = vpack.c.b16 %v345, %v344
  %v454 = vpack.c.b16 %v347, %v346
  %v455 = vpack.c.b16 %v349, %v348
  %v456 = vpack.c.b16 %v351, %v350
  %v457 = vpack.c.b16 %v353, %v352
  %v458 = vpack.c.b16 %v355, %v354
  %v459 = vpack.c.b16 %v357, %v356
  %v460 = vpack.c.b16 %v359, %v358
  %v461 = vpack.c.b16 %v361, %v360
  %v462 = vpack.c.b16 %v363, %v362
  %v463 = vpack.c.b16 %v365, %v364
  %v464 = vpack.c.b16 %v367, %v366
  %v465 = vpack.c.b16 %v369, %v368
  %v466 = vpack.c.b16 %v371, %v370
  %v467 = vpack.c.b16 %v373, %v372
  %v468 = vpack.c.b16 %v375, %v374
  %v469 = vpack.c.b16 %v377, %v376
  %v470 = vpack.c.b16 %v379, %v378
  %v471 = vpack.c.b16 %v381, %v380
  %v472 = vpack.c.b16 %v383, %v382
  %v473 = vpack.c.b16 %v385, %v384
  %v474 = vpack.c.b16 %v387, %v386
  %v475 = vpack.c.b16 %v389, %v388
  %v476 = vpack.c.b16 %v391, %v390
  %v477 = vpack.c.b16 %v393, %v392
  %v478 = vpack.c.b16 %v395, %v394
  %v479 = vpack.c.b16 %v397, %v396
  %v480 = vpack.c.b16 %v399, %v398
  %v481 = vpack.c.b16 %v401, %v400
  %v482 = vpack.c.b16 %v403, %v402
  %v483 = vpack.c.b16 %v405, %v404
  %v484 = vpack.c.b16 %v407, %v406
  %v485 = vpack.c.b16 %v409, %v408
  %v486 = vpack.c.b16 %v411, %v410
  %v487 = vpack.c.b16 %v413, %v412
  %v488 = vpack.c.b16 %v415, %v414
  %v489 = vpack.c.b16 %v417, %v416
  %v490 = vpack.c.b16 %v419, %v418
  %v491 = vpack.c.b16 %v421, %v420
  %v492 = vpack.c.b16 %v423, %v422
  %v493 = vpack.c.b16 %v425, %v424
  %v494 = vpack.c.b16 %v427, %v426
  %v495 = vpack.c.b16 %v429, %v428
  %v496 = vpack.c.b16 %v431, %v430
  %v497 = vpack.c.b16 %v433, %v432
  %562 = vmatprep.subr.bf16.mxu0 0
  %563 = vmatpush1.bf16.msra.mxu0 %v434
  %564 = vmatprep.subr.bf16.mxu0 0
  %565 = vmatpush1.bf16.msra.mxu0 %v435
  %566 = vmatprep.subr.bf16.mxu0 0
  %567 = vmatpush1.bf16.msra.mxu0 %v436
  %568 = vmatprep.subr.bf16.mxu0 0
  %569 = vmatpush1.bf16.msra.mxu0 %v437
  %570 = vmatprep.subr.bf16.mxu0 0
  %571 = vmatpush1.bf16.msra.mxu0 %v438
  %572 = vmatprep.subr.bf16.mxu0 0
  %573 = vmatpush1.bf16.msra.mxu0 %v439
  %574 = vmatprep.subr.bf16.mxu0 0
  %575 = vmatpush1.bf16.msra.mxu0 %v440
  %576 = vmatprep.subr.bf16.mxu0 0
  %577 = vmatpush1.bf16.msra.mxu0 %v441
  %578 = vmatprep.subr.bf16.mxu0 0
  %579 = vmatpush1.bf16.msra.mxu0 %v442
  %580 = vmatprep.subr.bf16.mxu0 0
  %581 = vmatpush1.bf16.msra.mxu0 %v443
  %582 = vmatprep.subr.bf16.mxu0 0
  %583 = vmatpush1.bf16.msra.mxu0 %v444
  %584 = vmatprep.subr.bf16.mxu0 0
  %585 = vmatpush1.bf16.msra.mxu0 %v445
  %586 = vmatprep.subr.bf16.mxu0 0
  %587 = vmatpush1.bf16.msra.mxu0 %v446
  %588 = vmatprep.subr.bf16.mxu0 0
  %589 = vmatpush1.bf16.msra.mxu0 %v447
  %590 = vmatprep.subr.bf16.mxu0 0
  %591 = vmatpush1.bf16.msra.mxu0 %v448
  %592 = vmatprep.subr.bf16.mxu0 0
  %593 = vmatpush1.bf16.msra.mxu0 %v449
  %594 = vmatprep.mubr.bf16.mxu0 %v163
  %595 = vmatmul.mubr.bf16.gmra.mrb[0].mxu0 %v162
  %v596 = vpop.f32.mrb[0].mxu0
  %v597 = vadd.f32 0.0, %v596
  %v598 = vpop.f32.mrb[0].mxu0
  %v599 = vpop.f32.mrb[0].mxu0
  %v600 = vpop.f32.mrb[0].mxu0
  %601 = vdwg.mxu0
  %602 = vmatprep.subr.bf16.mxu0 0
  %603 = vmatpush1.bf16.msra.mxu0 %v450
  %604 = vmatprep.subr.bf16.mxu0 0
  %605 = vmatpush1.bf16.msra.mxu0 %v451
  %606 = vmatprep.subr.bf16.mxu0 0
  %607 = vmatpush1.bf16.msra.mxu0 %v452
  %608 = vmatprep.subr.bf16.mxu0 0
  %609 = vmatpush1.bf16.msra.mxu0 %v453
  %610 = vmatprep.subr.bf16.mxu0 0
  %611 = vmatpush1.bf16.msra.mxu0 %v454
  %612 = vmatprep.subr.bf16.mxu0 0
  %613 = vmatpush1.bf16.msra.mxu0 %v455
  %614 = vmatprep.subr.bf16.mxu0 0
  %615 = vmatpush1.bf16.msra.mxu0 %v456
  %616 = vmatprep.subr.bf16.mxu0 0
  %617 = vmatpush1.bf16.msra.mxu0 %v457
  %618 = vmatprep.subr.bf16.mxu0 0
  %619 = vmatpush1.bf16.msra.mxu0 %v458
  %620 = vmatprep.subr.bf16.mxu0 0
  %621 = vmatpush1.bf16.msra.mxu0 %v459
  %622 = vmatprep.subr.bf16.mxu0 0
  %623 = vmatpush1.bf16.msra.mxu0 %v460
  %624 = vmatprep.subr.bf16.mxu0 0
  %625 = vmatpush1.bf16.msra.mxu0 %v461
  %626 = vmatprep.subr.bf16.mxu0 0
  %627 = vmatpush1.bf16.msra.mxu0 %v462
  %628 = vmatprep.subr.bf16.mxu0 0
  %629 = vmatpush1.bf16.msra.mxu0 %v463
  %630 = vmatprep.subr.bf16.mxu0 0
  %631 = vmatpush1.bf16.msra.mxu0 %v464
  %632 = vmatprep.subr.bf16.mxu0 0
  %633 = vmatpush1.bf16.msra.mxu0 %v465
  %634 = vmatprep.mubr.bf16.mxu0 %v165
  %635 = vmatmul.mubr.bf16.gmra.mrb[0].mxu0 %v164
  %v636 = vpop.f32.mrb[0].mxu0
  %v637 = vadd.f32 %v597, %v636
  %v638 = vpop.f32.mrb[0].mxu0
  %v639 = vpop.f32.mrb[0].mxu0
  %v640 = vpop.f32.mrb[0].mxu0
  %641 = vdwg.mxu0
  %642 = vmatprep.subr.bf16.mxu0 0
  %643 = vmatpush1.bf16.msra.mxu0 %v466
  %644 = vmatprep.subr.bf16.mxu0 0
  %645 = vmatpush1.bf16.msra.mxu0 %v467
  %646 = vmatprep.subr.bf16.mxu0 0
  %647 = vmatpush1.bf16.msra.mxu0 %v468
  %648 = vmatprep.subr.bf16.mxu0 0
  %649 = vmatpush1.bf16.msra.mxu0 %v469
  %650 = vmatprep.subr.bf16.mxu0 0
  %651 = vmatpush1.bf16.msra.mxu0 %v470
  %652 = vmatprep.subr.bf16.mxu0 0
  %653 = vmatpush1.bf16.msra.mxu0 %v471
  %654 = vmatprep.subr.bf16.mxu0 0
  %655 = vmatpush1.bf16.msra.mxu0 %v472
  %656 = vmatprep.subr.bf16.mxu0 0
  %657 = vmatpush1.bf16.msra.mxu0 %v473
  %658 = vmatprep.subr.bf16.mxu0 0
  %659 = vmatpush1.bf16.msra.mxu0 %v474
  %660 = vmatprep.subr.bf16.mxu0 0
  %661 = vmatpush1.bf16.msra.mxu0 %v475
  %662 = vmatprep.subr.bf16.mxu0 0
  %663 = vmatpush1.bf16.msra.mxu0 %v476
  %664 = vmatprep.subr.bf16.mxu0 0
  %665 = vmatpush1.bf16.msra.mxu0 %v477
  %666 = vmatprep.subr.bf16.mxu0 0
  %667 = vmatpush1.bf16.msra.mxu0 %v478
  %668 = vmatprep.subr.bf16.mxu0 0
  %669 = vmatpush1.bf16.msra.mxu0 %v479
  %670 = vmatprep.subr.bf16.mxu0 0
  %671 = vmatpush1.bf16.msra.mxu0 %v480
  %672 = vmatprep.subr.bf16.mxu0 0
  %673 = vmatpush1.bf16.msra.mxu0 %v481
  %674 = vmatprep.mubr.bf16.mxu0 %v167
  %675 = vmatmul.mubr.bf16.gmra.mrb[0].mxu0 %v166
  %v676 = vpop.f32.mrb[0].mxu0
  %v677 = vadd.f32 %v637, %v676
  %v678 = vpop.f32.mrb[0].mxu0
  %v679 = vpop.f32.mrb[0].mxu0
  %v680 = vpop.f32.mrb[0].mxu0
  %681 = vdwg.mxu0
  %682 = vmatprep.subr.bf16.mxu0 0
  %683 = vmatpush1.bf16.msra.mxu0 %v482
  %684 = vmatprep.subr.bf16.mxu0 0
  %685 = vmatpush1.bf16.msra.mxu0 %v483
  %686 = vmatprep.subr.bf16.mxu0 0
  %687 = vmatpush1.bf16.msra.mxu0 %v484
  %688 = vmatprep.subr.bf16.mxu0 0
  %689 = vmatpush1.bf16.msra.mxu0 %v485
  %690 = vmatprep.subr.bf16.mxu0 0
  %691 = vmatpush1.bf16.msra.mxu0 %v486
  %692 = vmatprep.subr.bf16.mxu0 0
  %693 = vmatpush1.bf16.msra.mxu0 %v487
  %694 = vmatprep.subr.bf16.mxu0 0
  %695 = vmatpush1.bf16.msra.mxu0 %v488
  %696 = vmatprep.subr.bf16.mxu0 0
  %697 = vmatpush1.bf16.msra.mxu0 %v489
  %698 = vmatprep.subr.bf16.mxu0 0
  %699 = vmatpush1.bf16.msra.mxu0 %v490
  %700 = vmatprep.subr.bf16.mxu0 0
  %701 = vmatpush1.bf16.msra.mxu0 %v491
  %702 = vmatprep.subr.bf16.mxu0 0
  %703 = vmatpush1.bf16.msra.mxu0 %v492
  %704 = vmatprep.subr.bf16.mxu0 0
  %705 = vmatpush1.bf16.msra.mxu0 %v493
  %706 = vmatprep.subr.bf16.mxu0 0
  %707 = vmatpush1.bf16.msra.mxu0 %v494
  %708 = vmatprep.subr.bf16.mxu0 0
  %709 = vmatpush1.bf16.msra.mxu0 %v495
  %710 = vmatprep.subr.bf16.mxu0 0
  %711 = vmatpush1.bf16.msra.mxu0 %v496
  %712 = vmatprep.subr.bf16.mxu0 0
  %713 = vmatpush1.bf16.msra.mxu0 %v497
  %714 = vmatprep.mubr.bf16.mxu0 %v169
  %715 = vmatmul.mubr.bf16.gmra.mrb[0].mxu0 %v168
  %v716 = vpop.f32.mrb[0].mxu0
  %v717 = vadd.f32 %v677, %v716
  %v718 = vpop.f32.mrb[0].mxu0
  %v719 = vpop.f32.mrb[0].mxu0
  %v720 = vpop.f32.mrb[0].mxu0
  %721 = vdwg.mxu0
  %vm722 = vcmask 523264
  %v723 = vsel %vm722, %v717, 0.0
  %v724 = vrot.slane %v723, 4
  %v725 = vadd.f32 %v723, %v724
  %v726 = vrot.slane %v725, 2
  %v727 = vadd.f32 %v725, %v726
  %v728 = vrot.slane %v727, 1
  %v729 = vadd.f32 %v727, %v728
  %v730 = vrcp.pop 8.0
  %v731 = vmul.f32 %v729, %v730
  %v732 = vsub.f32 %v717, %v731
  %v733 = vmul.f32 %v732, %v732
  %v734 = vsel %vm722, %v733, 0.0
  %v735 = vrot.slane %v734, 4
  %v736 = vadd.f32 %v734, %v735
  %v737 = vrot.slane %v736, 2
  %v738 = vadd.f32 %v736, %v737
  %v739 = vrot.slane %v738, 1
  %v740 = vadd.f32 %v738, %v739
  %v741 = vmul.f32 %v740, %v730
  %v742 = vld [vmem:[%s2] sm:$0x1]
  %v743 = vadd.f32 %v741, 1e-05
  %v744 = vrsqrt.pop %v743
  %v745 = vmul.f32 %v742, %v744
  %v747 = vlaneseq
  %v748 = vshrl.u32 %v747, 7
  %v749 = vsub.s32 0, %v748
  %v750 = vrot.slane %v745, %v749
  %v752 = vmul.f32 %v732, %v750
  %v753 = vld [vmem:[%s3] sm:$0x1]
  %v755 = vlaneseq
  %v756 = vshrl.u32 %v755, 7
  %v757 = vsub.s32 0, %v756
  %v758 = vrot.slane %v753, %v757
  %v760 = vadd.f32 %v752, %v758
  %v761 = vmax.f32 %v760, 0.0
  %762 = vst.msk [vmem:[%s4] sm:$0xff] %vm722, %v761
  // Predicated region
  $region18: #{autoencoder_forward.12} parent=0 // pred_check
    _
  $region19: #{autoencoder_forward.12} parent=0 // pred_check_branch
    %764 = sbr.rel (0) target = $region21
  $region20: #{autoencoder_forward.12} parent=0 // pred_region
    _
  $region21: #{autoencoder_forward.12} parent=0 // pred_fallthru
    _
  // Predicated region
  $region22: #{autoencoder_forward.12} parent=0 // pred_check
    _
  $region23: #{autoencoder_forward.12} parent=0 // pred_check_branch
    %766 = sbr.rel (0) target = $region25
  $region24: #{autoencoder_forward.12} parent=0 // pred_region
    _
  $region25: #{autoencoder_forward.12} parent=0 // pred_fallthru
    _

// kernel: autoencoder_forward.13
$region0: #{autoencoder_forward.13}
  #allocation0 [shape = 'u32[]', space=smem, size = 0x4, offset = 0x4, fixed_abs, tag = 'smem constant byte address 0x4 - core index']
  #allocation1 [shape = 'u32[144,128]{1,0:T(1,128)}', space=vmem, size = 0x12000, scoped, tag = 'internal scratch']
  %s0 = inlined_call_operand.vmem [shape: bf16[32,1024], index: 0, kind: input, shape index: {}]
  %s1 = inlined_call_operand.vmem [shape: bf16[1024,32], index: 1, kind: input, shape index: {}]
  %s2 = inlined_call_operand.vmem [shape: f32[1,32], index: 2, kind: input, shape index: {}]
  %s3 = inlined_call_operand.vmem [shape: f32[1,32], index: 3, kind: input, shape index: {}]
  %s4 = inlined_call_operand.vmem [shape: f32[32,32], index: 4, kind: output, shape index: {}]
  %s5 = sld [smem:[#allocation0]]
  $region26: #{autoencoder_forward.13} parent=0
    _
  %s7 = ssub.s32 1, %s5
  %s8 = scalar_select 0, %s7, %s5
  // Predicated region
  $region2: #{autoencoder_forward.13} parent=0 // pred_check
    _
  $region3: #{autoencoder_forward.13} parent=0 // pred_check_branch
    %10 = sbr.rel (0) target = $region5
  $region4: #{autoencoder_forward.13} parent=0 // pred_region
    _
  $region5: #{autoencoder_forward.13} parent=0 // pred_fallthru
    _
  // Predicated region
  $region6: #{autoencoder_forward.13} parent=0 // pred_check
    _
  $region7: #{autoencoder_forward.13} parent=0 // pred_check_branch
    %12 = sbr.rel (0) target = $region9
  $region8: #{autoencoder_forward.13} parent=0 // pred_region
    _
  $region9: #{autoencoder_forward.13} parent=0 // pred_fallthru
    _
  // Predicated region
  $region10: #{autoencoder_forward.13} parent=0 // pred_check
    _
  $region11: #{autoencoder_forward.13} parent=0 // pred_check_branch
    %14 = sbr.rel (0) target = $region13
  $region12: #{autoencoder_forward.13} parent=0 // pred_region
    _
  $region13: #{autoencoder_forward.13} parent=0 // pred_fallthru
    _
  // Predicated region
  $region14: #{autoencoder_forward.13} parent=0 // pred_check
    _
  $region15: #{autoencoder_forward.13} parent=0 // pred_check_branch
    %16 = sbr.rel (0) target = $region17
  $region16: #{autoencoder_forward.13} parent=0 // pred_region
    _
  $region17: #{autoencoder_forward.13} parent=0 // pred_fallthru
    _
  %v18 = vld [vmem:[%s0] sm:$0xff]
  %v19 = vld [vmem:[%s0 + $0x8] sm:$0xff]
  %v20 = vld [vmem:[%s0 + $0x10] sm:$0xff]
  %v21 = vld [vmem:[%s0 + $0x18] sm:$0xff]
  %v22 = vld [vmem:[%s0 + $0x20] sm:$0xff]
  %v23 = vld [vmem:[%s0 + $0x28] sm:$0xff]
  %v24 = vld [vmem:[%s0 + $0x30] sm:$0xff]
  %v25 = vld [vmem:[%s0 + $0x38] sm:$0xff]
  %v26 = vld [vmem:[%s0 + $0x40] sm:$0xff]
  %v27 = vld [vmem:[%s0 + $0x48] sm:$0xff]
  %v28 = vld [vmem:[%s0 + $0x50] sm:$0xff]
  %v29 = vld [vmem:[%s0 + $0x58] sm:$0xff]
  %v30 = vld [vmem:[%s0 + $0x60] sm:$0xff]
  %v31 = vld [vmem:[%s0 + $0x68] sm:$0xff]
  %v32 = vld [vmem:[%s0 + $0x70] sm:$0xff]
  %v33 = vld [vmem:[%s0 + $0x78] sm:$0xff]
  %v34 = vld [vmem:[%s1] sm:$0xf]
  %v35 = vld [vmem:[%s1 + $0x4] sm:$0xf]
  %v36 = vld [vmem:[%s1 + $0x8] sm:$0xf]
  %v37 = vld [vmem:[%s1 + $0xc] sm:$0xf]
  %v38 = vld [vmem:[%s1 + $0x10] sm:$0xf]
  %v39 = vld [vmem:[%s1 + $0x14] sm:$0xf]
  %v40 = vld [vmem:[%s1 + $0x18] sm:$0xf]
  %v41 = vld [vmem:[%s1 + $0x1c] sm:$0xf]
  %v42 = vld [vmem:[%s1 + $0x20] sm:$0xf]
  %v43 = vld [vmem:[%s1 + $0x24] sm:$0xf]
  %v44 = vld [vmem:[%s1 + $0x28] sm:$0xf]
  %v45 = vld [vmem:[%s1 + $0x2c] sm:$0xf]
  %v46 = vld [vmem:[%s1 + $0x30] sm:$0xf]
  %v47 = vld [vmem:[%s1 + $0x34] sm:$0xf]
  %v48 = vld [vmem:[%s1 + $0x38] sm:$0xf]
  %v49 = vld [vmem:[%s1 + $0x3c] sm:$0xf]
  %v50 = vld [vmem:[%s1 + $0x40] sm:$0xf]
  %v51 = vld [vmem:[%s1 + $0x44] sm:$0xf]
  %v52 = vld [vmem:[%s1 + $0x48] sm:$0xf]
  %v53 = vld [vmem:[%s1 + $0x4c] sm:$0xf]
  %v54 = vld [vmem:[%s1 + $0x50] sm:$0xf]
  %v55 = vld [vmem:[%s1 + $0x54] sm:$0xf]
  %v56 = vld [vmem:[%s1 + $0x58] sm:$0xf]
  %v57 = vld [vmem:[%s1 + $0x5c] sm:$0xf]
  %v58 = vld [vmem:[%s1 + $0x60] sm:$0xf]
  %v59 = vld [vmem:[%s1 + $0x64] sm:$0xf]
  %v60 = vld [vmem:[%s1 + $0x68] sm:$0xf]
  %v61 = vld [vmem:[%s1 + $0x6c] sm:$0xf]
  %v62 = vld [vmem:[%s1 + $0x70] sm:$0xf]
  %v63 = vld [vmem:[%s1 + $0x74] sm:$0xf]
  %v64 = vld [vmem:[%s1 + $0x78] sm:$0xf]
  %v65 = vld [vmem:[%s1 + $0x7c] sm:$0xf]
  %v66 = vld [vmem:[%s1 + $0x80] sm:$0xf]
  %v67 = vld [vmem:[%s1 + $0x84] sm:$0xf]
  %v68 = vld [vmem:[%s1 + $0x88] sm:$0xf]
  %v69 = vld [vmem:[%s1 + $0x8c] sm:$0xf]
  %v70 = vld [vmem:[%s1 + $0x90] sm:$0xf]
  %v71 = vld [vmem:[%s1 + $0x94] sm:$0xf]
  %v72 = vld [vmem:[%s1 + $0x98] sm:$0xf]
  %v73 = vld [vmem:[%s1 + $0x9c] sm:$0xf]
  %v74 = vld [vmem:[%s1 + $0xa0] sm:$0xf]
  %v75 = vld [vmem:[%s1 + $0xa4] sm:$0xf]
  %v76 = vld [vmem:[%s1 + $0xa8] sm:$0xf]
  %v77 = vld [vmem:[%s1 + $0xac] sm:$0xf]
  %v78 = vld [vmem:[%s1 + $0xb0] sm:$0xf]
  %v79 = vld [vmem:[%s1 + $0xb4] sm:$0xf]
  %v80 = vld [vmem:[%s1 + $0xb8] sm:$0xf]
  %v81 = vld [vmem:[%s1 + $0xbc] sm:$0xf]
  %v82 = vld [vmem:[%s1 + $0xc0] sm:$0xf]
  %v83 = vld [vmem:[%s1 + $0xc4] sm:$0xf]
  %v84 = vld [vmem:[%s1 + $0xc8] sm:$0xf]
  %v85 = vld [vmem:[%s1 + $0xcc] sm:$0xf]
  %v86 = vld [vmem:[%s1 + $0xd0] sm:$0xf]
  %v87 = vld [vmem:[%s1 + $0xd4] sm:$0xf]
  %v88 = vld [vmem:[%s1 + $0xd8] sm:$0xf]
  %v89 = vld [vmem:[%s1 + $0xdc] sm:$0xf]
  %v90 = vld [vmem:[%s1 + $0xe0] sm:$0xf]
  %v91 = vld [vmem:[%s1 + $0xe4] sm:$0xf]
  %v92 = vld [vmem:[%s1 + $0xe8] sm:$0xf]
  %v93 = vld [vmem:[%s1 + $0xec] sm:$0xf]
  %v94 = vld [vmem:[%s1 + $0xf0] sm:$0xf]
  %v95 = vld [vmem:[%s1 + $0xf4] sm:$0xf]
  %v96 = vld [vmem:[%s1 + $0xf8] sm:$0xf]
  %v97 = vld [vmem:[%s1 + $0xfc] sm:$0xf]
  %v98 = vld [vmem:[%s1 + $0x100] sm:$0xf]
  %v99 = vld [vmem:[%s1 + $0x104] sm:$0xf]
  %v100 = vld [vmem:[%s1 + $0x108] sm:$0xf]
  %v101 = vld [vmem:[%s1 + $0x10c] sm:$0xf]
  %v102 = vld [vmem:[%s1 + $0x110] sm:$0xf]
  %v103 = vld [vmem:[%s1 + $0x114] sm:$0xf]
  %v104 = vld [vmem:[%s1 + $0x118] sm:$0xf]
  %v105 = vld [vmem:[%s1 + $0x11c] sm:$0xf]
  %v106 = vld [vmem:[%s1 + $0x120] sm:$0xf]
  %v107 = vld [vmem:[%s1 + $0x124] sm:$0xf]
  %v108 = vld [vmem:[%s1 + $0x128] sm:$0xf]
  %v109 = vld [vmem:[%s1 + $0x12c] sm:$0xf]
  %v110 = vld [vmem:[%s1 + $0x130] sm:$0xf]
  %v111 = vld [vmem:[%s1 + $0x134] sm:$0xf]
  %v112 = vld [vmem:[%s1 + $0x138] sm:$0xf]
  %v113 = vld [vmem:[%s1 + $0x13c] sm:$0xf]
  %v114 = vld [vmem:[%s1 + $0x140] sm:$0xf]
  %v115 = vld [vmem:[%s1 + $0x144] sm:$0xf]
  %v116 = vld [vmem:[%s1 + $0x148] sm:$0xf]
  %v117 = vld [vmem:[%s1 + $0x14c] sm:$0xf]
  %v118 = vld [vmem:[%s1 + $0x150] sm:$0xf]
  %v119 = vld [vmem:[%s1 + $0x154] sm:$0xf]
  %v120 = vld [vmem:[%s1 + $0x158] sm:$0xf]
  %v121 = vld [vmem:[%s1 + $0x15c] sm:$0xf]
  %v122 = vld [vmem:[%s1 + $0x160] sm:$0xf]
  %v123 = vld [vmem:[%s1 + $0x164] sm:$0xf]
  %v124 = vld [vmem:[%s1 + $0x168] sm:$0xf]
  %v125 = vld [vmem:[%s1 + $0x16c] sm:$0xf]
  %v126 = vld [vmem:[%s1 + $0x170] sm:$0xf]
  %v127 = vld [vmem:[%s1 + $0x174] sm:$0xf]
  %v128 = vld [vmem:[%s1 + $0x178] sm:$0xf]
  %v129 = vld [vmem:[%s1 + $0x17c] sm:$0xf]
  %v130 = vld [vmem:[%s1 + $0x180] sm:$0xf]
  %v131 = vld [vmem:[%s1 + $0x184] sm:$0xf]
  %v132 = vld [vmem:[%s1 + $0x188] sm:$0xf]
  %v133 = vld [vmem:[%s1 + $0x18c] sm:$0xf]
  %v134 = vld [vmem:[%s1 + $0x190] sm:$0xf]
  %v135 = vld [vmem:[%s1 + $0x194] sm:$0xf]
  %v136 = vld [vmem:[%s1 + $0x198] sm:$0xf]
  %v137 = vld [vmem:[%s1 + $0x19c] sm:$0xf]
  %v138 = vld [vmem:[%s1 + $0x1a0] sm:$0xf]
  %v139 = vld [vmem:[%s1 + $0x1a4] sm:$0xf]
  %v140 = vld [vmem:[%s1 + $0x1a8] sm:$0xf]
  %v141 = vld [vmem:[%s1 + $0x1ac] sm:$0xf]
  %v142 = vld [vmem:[%s1 + $0x1b0] sm:$0xf]
  %v143 = vld [vmem:[%s1 + $0x1b4] sm:$0xf]
  %v144 = vld [vmem:[%s1 + $0x1b8] sm:$0xf]
  %v145 = vld [vmem:[%s1 + $0x1bc] sm:$0xf]
  %v146 = vld [vmem:[%s1 + $0x1c0] sm:$0xf]
  %v147 = vld [vmem:[%s1 + $0x1c4] sm:$0xf]
  %v148 = vld [vmem:[%s1 + $0x1c8] sm:$0xf]
  %v149 = vld [vmem:[%s1 + $0x1cc] sm:$0xf]
  %v150 = vld [vmem:[%s1 + $0x1d0] sm:$0xf]
  %v151 = vld [vmem:[%s1 + $0x1d4] sm:$0xf]
  %v152 = vld [vmem:[%s1 + $0x1d8] sm:$0xf]
  %v153 = vld [vmem:[%s1 + $0x1dc] sm:$0xf]
  %v154 = vld [vmem:[%s1 + $0x1e0] sm:$0xf]
  %v155 = vld [vmem:[%s1 + $0x1e4] sm:$0xf]
  %v156 = vld [vmem:[%s1 + $0x1e8] sm:$0xf]
  %v157 = vld [vmem:[%s1 + $0x1ec] sm:$0xf]
  %v158 = vld [vmem:[%s1 + $0x1f0] sm:$0xf]
  %v159 = vld [vmem:[%s1 + $0x1f4] sm:$0xf]
  %v160 = vld [vmem:[%s1 + $0x1f8] sm:$0xf]
  %v161 = vld [vmem:[%s1 + $0x1fc] sm:$0xf]
  %v178 = vunpack.c.l.b16 %v18
  %v179 = vunpack.c.h.b16 %v18
  %v180 = vunpack.c.l.b16 %v19
  %v181 = vunpack.c.h.b16 %v19
  %v182 = vunpack.c.l.b16 %v20
  %v183 = vunpack.c.h.b16 %v20
  %v184 = vunpack.c.l.b16 %v21
  %v185 = vunpack.c.h.b16 %v21
  %v186 = vunpack.c.l.b16 %v22
  %v187 = vunpack.c.h.b16 %v22
  %v188 = vunpack.c.l.b16 %v23
  %v189 = vunpack.c.h.b16 %v23
  %v190 = vunpack.c.l.b16 %v24
  %v191 = vunpack.c.h.b16 %v24
  %v192 = vunpack.c.l.b16 %v25
  %v193 = vunpack.c.h.b16 %v25
  %v194 = vunpack.c.l.b16 %v26
  %v195 = vunpack.c.h.b16 %v26
  %v196 = vunpack.c.l.b16 %v27
  %v197 = vunpack.c.h.b16 %v27
  %v198 = vunpack.c.l.b16 %v28
  %v199 = vunpack.c.h.b16 %v28
  %v200 = vunpack.c.l.b16 %v29
  %v201 = vunpack.c.h.b16 %v29
  %v202 = vunpack.c.l.b16 %v30
  %v203 = vunpack.c.h.b16 %v30
  %v204 = vunpack.c.l.b16 %v31
  %v205 = vunpack.c.h.b16 %v31
  %v206 = vunpack.c.l.b16 %v32
  %v207 = vunpack.c.h.b16 %v32
  %v208 = vunpack.c.l.b16 %v33
  %v209 = vunpack.c.h.b16 %v33
  %v210 = vpack.c.b16 %v186, %v178
  %v211 = vpack.c.b16 %v187, %v179
  %v212 = vpack.c.b16 %v188, %v180
  %v213 = vpack.c.b16 %v189, %v181
  %v214 = vpack.c.b16 %v190, %v182
  %v215 = vpack.c.b16 %v191, %v183
  %v216 = vpack.c.b16 %v192, %v184
  %v217 = vpack.c.b16 %v193, %v185
  %v218 = vpack.c.b16 %v202, %v194
  %v219 = vpack.c.b16 %v203, %v195
  %v220 = vpack.c.b16 %v204, %v196
  %v221 = vpack.c.b16 %v205, %v197
  %v222 = vpack.c.b16 %v206, %v198
  %v223 = vpack.c.b16 %v207, %v199
  %v224 = vpack.c.b16 %v208, %v200
  %v225 = vpack.c.b16 %v209, %v201
  %v370 = vunpack.c.l.b16 %v34
  %v371 = vunpack.c.l.b16 %v35
  %v372 = vunpack.c.l.b16 %v36
  %v373 = vunpack.c.l.b16 %v37
  %v374 = vunpack.c.l.b16 %v38
  %v375 = vunpack.c.l.b16 %v39
  %v376 = vunpack.c.l.b16 %v40
  %v377 = vunpack.c.l.b16 %v41
  %v378 = vunpack.c.l.b16 %v42
  %v379 = vunpack.c.l.b16 %v43
  %v380 = vunpack.c.l.b16 %v44
  %v381 = vunpack.c.l.b16 %v45
  %v382 = vunpack.c.l.b16 %v46
  %v383 = vunpack.c.l.b16 %v47
  %v384 = vunpack.c.l.b16 %v48
  %v385 = vunpack.c.l.b16 %v49
  %v386 = vunpack.c.l.b16 %v50
  %v387 = vunpack.c.l.b16 %v51
  %v388 = vunpack.c.l.b16 %v52
  %v389 = vunpack.c.l.b16 %v53
  %v390 = vunpack.c.l.b16 %v54
  %v391 = vunpack.c.l.b16 %v55
  %v392 = vunpack.c.l.b16 %v56
  %v393 = vunpack.c.l.b16 %v57
  %v394 = vunpack.c.l.b16 %v58
  %v395 = vunpack.c.l.b16 %v59
  %v396 = vunpack.c.l.b16 %v60
  %v397 = vunpack.c.l.b16 %v61
  %v398 = vunpack.c.l.b16 %v62
  %v399 = vunpack.c.l.b16 %v63
  %v400 = vunpack.c.l.b16 %v64
  %v401 = vunpack.c.l.b16 %v65
  %v402 = vunpack.c.l.b16 %v66
  %v403 = vunpack.c.l.b16 %v67
  %v404 = vunpack.c.l.b16 %v68
  %v405 = vunpack.c.l.b16 %v69
  %v406 = vunpack.c.l.b16 %v70
  %v407 = vunpack.c.l.b16 %v71
  %v408 = vunpack.c.l.b16 %v72
  %v409 = vunpack.c.l.b16 %v73
  %v410 = vunpack.c.l.b16 %v74
  %v411 = vunpack.c.l.b16 %v75
  %v412 = vunpack.c.l.b16 %v76
  %v413 = vunpack.c.l.b16 %v77
  %v414 = vunpack.c.l.b16 %v78
  %v415 = vunpack.c.l.b16 %v79
  %v416 = vunpack.c.l.b16 %v80
  %v417 = vunpack.c.l.b16 %v81
  %v418 = vunpack.c.l.b16 %v82
  %v419 = vunpack.c.l.b16 %v83
  %v420 = vunpack.c.l.b16 %v84
  %v421 = vunpack.c.l.b16 %v85
  %v422 = vunpack.c.l.b16 %v86
  %v423 = vunpack.c.l.b16 %v87
  %v424 = vunpack.c.l.b16 %v88
  %v425 = vunpack.c.l.b16 %v89
  %v426 = vunpack.c.l.b16 %v90
  %v427 = vunpack.c.l.b16 %v91
  %v428 = vunpack.c.l.b16 %v92
  %v429 = vunpack.c.l.b16 %v93
  %v430 = vunpack.c.l.b16 %v94
  %v431 = vunpack.c.l.b16 %v95
  %v432 = vunpack.c.l.b16 %v96
  %v433 = vunpack.c.l.b16 %v97
  %v434 = vunpack.c.l.b16 %v98
  %v435 = vunpack.c.l.b16 %v99
  %v436 = vunpack.c.l.b16 %v100
  %v437 = vunpack.c.l.b16 %v101
  %v438 = vunpack.c.l.b16 %v102
  %v439 = vunpack.c.l.b16 %v103
  %v440 = vunpack.c.l.b16 %v104
  %v441 = vunpack.c.l.b16 %v105
  %v442 = vunpack.c.l.b16 %v106
  %v443 = vunpack.c.l.b16 %v107
  %v444 = vunpack.c.l.b16 %v108
  %v445 = vunpack.c.l.b16 %v109
  %v446 = vunpack.c.l.b16 %v110
  %v447 = vunpack.c.l.b16 %v111
  %v448 = vunpack.c.l.b16 %v112
  %v449 = vunpack.c.l.b16 %v113
  %v450 = vunpack.c.l.b16 %v114
  %v451 = vunpack.c.l.b16 %v115
  %v452 = vunpack.c.l.b16 %v116
  %v453 = vunpack.c.l.b16 %v117
  %v454 = vunpack.c.l.b16 %v118
  %v455 = vunpack.c.l.b16 %v119
  %v456 = vunpack.c.l.b16 %v120
  %v457 = vunpack.c.l.b16 %v121
  %v458 = vunpack.c.l.b16 %v122
  %v459 = vunpack.c.l.b16 %v123
  %v460 = vunpack.c.l.b16 %v124
  %v461 = vunpack.c.l.b16 %v125
  %v462 = vunpack.c.l.b16 %v126
  %v463 = vunpack.c.l.b16 %v127
  %v464 = vunpack.c.l.b16 %v128
  %v465 = vunpack.c.l.b16 %v129
  %v466 = vunpack.c.l.b16 %v130
  %v467 = vunpack.c.l.b16 %v131
  %v468 = vunpack.c.l.b16 %v132
  %v469 = vunpack.c.l.b16 %v133
  %v470 = vunpack.c.l.b16 %v134
  %v471 = vunpack.c.l.b16 %v135
  %v472 = vunpack.c.l.b16 %v136
  %v473 = vunpack.c.l.b16 %v137
  %v474 = vunpack.c.l.b16 %v138
  %v475 = vunpack.c.l.b16 %v139
  %v476 = vunpack.c.l.b16 %v140
  %v477 = vunpack.c.l.b16 %v141
  %v478 = vunpack.c.l.b16 %v142
  %v479 = vunpack.c.l.b16 %v143
  %v480 = vunpack.c.l.b16 %v144
  %v481 = vunpack.c.l.b16 %v145
  %v482 = vunpack.c.l.b16 %v146
  %v483 = vunpack.c.l.b16 %v147
  %v484 = vunpack.c.l.b16 %v148
  %v485 = vunpack.c.l.b16 %v149
  %v486 = vunpack.c.l.b16 %v150
  %v487 = vunpack.c.l.b16 %v151
  %v488 = vunpack.c.l.b16 %v152
  %v489 = vunpack.c.l.b16 %v153
  %v490 = vunpack.c.l.b16 %v154
  %v491 = vunpack.c.l.b16 %v155
  %v492 = vunpack.c.l.b16 %v156
  %v493 = vunpack.c.l.b16 %v157
  %v494 = vunpack.c.l.b16 %v158
  %v495 = vunpack.c.l.b16 %v159
  %v496 = vunpack.c.l.b16 %v160
  %v497 = vunpack.c.l.b16 %v161
  %v498 = vpack.c.b16 %v371, %v370
  %v499 = vpack.c.b16 %v373, %v372
  %v500 = vpack.c.b16 %v375, %v374
  %v501 = vpack.c.b16 %v377, %v376
  %v502 = vpack.c.b16 %v379, %v378
  %v503 = vpack.c.b16 %v381, %v380
  %v504 = vpack.c.b16 %v383, %v382
  %v505 = vpack.c.b16 %v385, %v384
  %v506 = vpack.c.b16 %v387, %v386
  %v507 = vpack.c.b16 %v389, %v388
  %v508 = vpack.c.b16 %v391, %v390
  %v509 = vpack.c.b16 %v393, %v392
  %v510 = vpack.c.b16 %v395, %v394
  %v511 = vpack.c.b16 %v397, %v396
  %v512 = vpack.c.b16 %v399, %v398
  %v513 = vpack.c.b16 %v401, %v400
  %v514 = vpack.c.b16 %v403, %v402
  %v515 = vpack.c.b16 %v405, %v404
  %v516 = vpack.c.b16 %v407, %v406
  %v517 = vpack.c.b16 %v409, %v408
  %v518 = vpack.c.b16 %v411, %v410
  %v519 = vpack.c.b16 %v413, %v412
  %v520 = vpack.c.b16 %v415, %v414
  %v521 = vpack.c.b16 %v417, %v416
  %v522 = vpack.c.b16 %v419, %v418
  %v523 = vpack.c.b16 %v421, %v420
  %v524 = vpack.c.b16 %v423, %v422
  %v525 = vpack.c.b16 %v425, %v424
  %v526 = vpack.c.b16 %v427, %v426
  %v527 = vpack.c.b16 %v429, %v428
  %v528 = vpack.c.b16 %v431, %v430
  %v529 = vpack.c.b16 %v433, %v432
  %v530 = vpack.c.b16 %v435, %v434
  %v531 = vpack.c.b16 %v437, %v436
  %v532 = vpack.c.b16 %v439, %v438
  %v533 = vpack.c.b16 %v441, %v440
  %v534 = vpack.c.b16 %v443, %v442
  %v535 = vpack.c.b16 %v445, %v444
  %v536 = vpack.c.b16 %v447, %v446
  %v537 = vpack.c.b16 %v449, %v448
  %v538 = vpack.c.b16 %v451, %v450
  %v539 = vpack.c.b16 %v453, %v452
  %v540 = vpack.c.b16 %v455, %v454
  %v541 = vpack.c.b16 %v457, %v456
  %v542 = vpack.c.b16 %v459, %v458
  %v543 = vpack.c.b16 %v461, %v460
  %v544 = vpack.c.b16 %v463, %v462
  %v545 = vpack.c.b16 %v465, %v464
  %v546 = vpack.c.b16 %v467, %v466
  %v547 = vpack.c.b16 %v469, %v468
  %v548 = vpack.c.b16 %v471, %v470
  %v549 = vpack.c.b16 %v473, %v472
  %v550 = vpack.c.b16 %v475, %v474
  %v551 = vpack.c.b16 %v477, %v476
  %v552 = vpack.c.b16 %v479, %v478
  %v553 = vpack.c.b16 %v481, %v480
  %v554 = vpack.c.b16 %v483, %v482
  %v555 = vpack.c.b16 %v485, %v484
  %v556 = vpack.c.b16 %v487, %v486
  %v557 = vpack.c.b16 %v489, %v488
  %v558 = vpack.c.b16 %v491, %v490
  %v559 = vpack.c.b16 %v493, %v492
  %v560 = vpack.c.b16 %v495, %v494
  %v561 = vpack.c.b16 %v497, %v496
  %626 = vmatprep.subr.bf16.mxu0 0
  %627 = vmatpush1.bf16.msra.mxu0 %v498
  %628 = vmatprep.subr.bf16.mxu0 0
  %629 = vmatpush1.bf16.msra.mxu0 %v499
  %630 = vmatprep.subr.bf16.mxu0 0
  %631 = vmatpush1.bf16.msra.mxu0 %v500
  %632 = vmatprep.subr.bf16.mxu0 0
  %633 = vmatpush1.bf16.msra.mxu0 %v501
  %634 = vmatprep.subr.bf16.mxu0 0
  %635 = vmatpush1.bf16.msra.mxu0 %v502
  %636 = vmatprep.subr.bf16.mxu0 0
  %637 = vmatpush1.bf16.msra.mxu0 %v503
  %638 = vmatprep.subr.bf16.mxu0 0
  %639 = vmatpush1.bf16.msra.mxu0 %v504
  %640 = vmatprep.subr.bf16.mxu0 0
  %641 = vmatpush1.bf16.msra.mxu0 %v505
  %642 = vmatprep.subr.bf16.mxu0 0
  %643 = vmatpush1.bf16.msra.mxu0 %v506
  %644 = vmatprep.subr.bf16.mxu0 0
  %645 = vmatpush1.bf16.msra.mxu0 %v507
  %646 = vmatprep.subr.bf16.mxu0 0
  %647 = vmatpush1.bf16.msra.mxu0 %v508
  %648 = vmatprep.subr.bf16.mxu0 0
  %649 = vmatpush1.bf16.msra.mxu0 %v509
  %650 = vmatprep.subr.bf16.mxu0 0
  %651 = vmatpush1.bf16.msra.mxu0 %v510
  %652 = vmatprep.subr.bf16.mxu0 0
  %653 = vmatpush1.bf16.msra.mxu0 %v511
  %654 = vmatprep.subr.bf16.mxu0 0
  %655 = vmatpush1.bf16.msra.mxu0 %v512
  %656 = vmatprep.subr.bf16.mxu0 0
  %657 = vmatpush1.bf16.msra.mxu0 %v513
  %658 = vmatprep.mubr.bf16.mxu0 %v211
  %659 = vmatmul.mubr.bf16.gmra.mrb[0].mxu0 %v210
  %v660 = vpop.f32.mrb[0].mxu0
  %v661 = vadd.f32 0.0, %v660
  %v662 = vpop.f32.mrb[0].mxu0
  %v663 = vpop.f32.mrb[0].mxu0
  %v664 = vadd.f32 0.0, %v663
  %v665 = vpop.f32.mrb[0].mxu0
  %666 = vmatprep.mubr.bf16.mxu0 %v219
  %667 = vmatmul.mubr.bf16.gmra.mrb[0].mxu0 %v218
  %v668 = vpop.f32.mrb[0].mxu0
  %v669 = vadd.f32 0.0, %v668
  %v670 = vpop.f32.mrb[0].mxu0
  %v671 = vpop.f32.mrb[0].mxu0
  %v672 = vadd.f32 0.0, %v671
  %v673 = vpop.f32.mrb[0].mxu0
  %674 = vdwg.mxu0
  %675 = vmatprep.subr.bf16.mxu0 0
  %676 = vmatpush1.bf16.msra.mxu0 %v514
  %677 = vmatprep.subr.bf16.mxu0 0
  %678 = vmatpush1.bf16.msra.mxu0 %v515
  %679 = vmatprep.subr.bf16.mxu0 0
  %680 = vmatpush1.bf16.msra.mxu0 %v516
  %681 = vmatprep.subr.bf16.mxu0 0
  %682 = vmatpush1.bf16.msra.mxu0 %v517
  %683 = vmatprep.subr.bf16.mxu0 0
  %684 = vmatpush1.bf16.msra.mxu0 %v518
  %685 = vmatprep.subr.bf16.mxu0 0
  %686 = vmatpush1.bf16.msra.mxu0 %v519
  %687 = vmatprep.subr.bf16.mxu0 0
  %688 = vmatpush1.bf16.msra.mxu0 %v520
  %689 = vmatprep.subr.bf16.mxu0 0
  %690 = vmatpush1.bf16.msra.mxu0 %v521
  %691 = vmatprep.subr.bf16.mxu0 0
  %692 = vmatpush1.bf16.msra.mxu0 %v522
  %693 = vmatprep.subr.bf16.mxu0 0
  %694 = vmatpush1.bf16.msra.mxu0 %v523
  %695 = vmatprep.subr.bf16.mxu0 0
  %696 = vmatpush1.bf16.msra.mxu0 %v524
  %697 = vmatprep.subr.bf16.mxu0 0
  %698 = vmatpush1.bf16.msra.mxu0 %v525
  %699 = vmatprep.subr.bf16.mxu0 0
  %700 = vmatpush1.bf16.msra.mxu0 %v526
  %701 = vmatprep.subr.bf16.mxu0 0
  %702 = vmatpush1.bf16.msra.mxu0 %v527
  %703 = vmatprep.subr.bf16.mxu0 0
  %704 = vmatpush1.bf16.msra.mxu0 %v528
  %705 = vmatprep.subr.bf16.mxu0 0
  %706 = vmatpush1.bf16.msra.mxu0 %v529
  %707 = vmatprep.mubr.bf16.mxu0 %v213
  %708 = vmatmul.mubr.bf16.gmra.mrb[0].mxu0 %v212
  %v709 = vpop.f32.mrb[0].mxu0
  %v710 = vadd.f32 %v661, %v709
  %v711 = vpop.f32.mrb[0].mxu0
  %v712 = vpop.f32.mrb[0].mxu0
  %v713 = vadd.f32 %v664, %v712
  %v714 = vpop.f32.mrb[0].mxu0
  %715 = vmatprep.mubr.bf16.mxu0 %v221
  %716 = vmatmul.mubr.bf16.gmra.mrb[0].mxu0 %v220
  %v717 = vpop.f32.mrb[0].mxu0
  %v718 = vadd.f32 %v669, %v717
  %v719 = vpop.f32.mrb[0].mxu0
  %v720 = vpop.f32.mrb[0].mxu0
  %v721 = vadd.f32 %v672, %v720
  %v722 = vpop.f32.mrb[0].mxu0
  %723 = vdwg.mxu0
  %724 = vmatprep.subr.bf16.mxu0 0
  %725 = vmatpush1.bf16.msra.mxu0 %v530
  %726 = vmatprep.subr.bf16.mxu0 0
  %727 = vmatpush1.bf16.msra.mxu0 %v531
  %728 = vmatprep.subr.bf16.mxu0 0
  %729 = vmatpush1.bf16.msra.mxu0 %v532
  %730 = vmatprep.subr.bf16.mxu0 0
  %731 = vmatpush1.bf16.msra.mxu0 %v533
  %732 = vmatprep.subr.bf16.mxu0 0
  %733 = vmatpush1.bf16.msra.mxu0 %v534
  %734 = vmatprep.subr.bf16.mxu0 0
  %735 = vmatpush1.bf16.msra.mxu0 %v535
  %736 = vmatprep.subr.bf16.mxu0 0
  %737 = vmatpush1.bf16.msra.mxu0 %v536
  %738 = vmatprep.subr.bf16.mxu0 0
  %739 = vmatpush1.bf16.msra.mxu0 %v537
  %740 = vmatprep.subr.bf16.mxu0 0
  %741 = vmatpush1.bf16.msra.mxu0 %v538
  %742 = vmatprep.subr.bf16.mxu0 0
  %743 = vmatpush1.bf16.msra.mxu0 %v539
  %744 = vmatprep.subr.bf16.mxu0 0
  %745 = vmatpush1.bf16.msra.mxu0 %v540
  %746 = vmatprep.subr.bf16.mxu0 0
  %747 = vmatpush1.bf16.msra.mxu0 %v541
  %748 = vmatprep.subr.bf16.mxu0 0
  %749 = vmatpush1.bf16.msra.mxu0 %v542
  %750 = vmatprep.subr.bf16.mxu0 0
  %751 = vmatpush1.bf16.msra.mxu0 %v543
  %752 = vmatprep.subr.bf16.mxu0 0
  %753 = vmatpush1.bf16.msra.mxu0 %v544
  %754 = vmatprep.subr.bf16.mxu0 0
  %755 = vmatpush1.bf16.msra.mxu0 %v545
  %756 = vmatprep.mubr.bf16.mxu0 %v215
  %757 = vmatmul.mubr.bf16.gmra.mrb[0].mxu0 %v214
  %v758 = vpop.f32.mrb[0].mxu0
  %v759 = vadd.f32 %v710, %v758
  %v760 = vpop.f32.mrb[0].mxu0
  %v761 = vpop.f32.mrb[0].mxu0
  %v762 = vadd.f32 %v713, %v761
  %v763 = vpop.f32.mrb[0].mxu0
  %764 = vmatprep.mubr.bf16.mxu0 %v223
  %765 = vmatmul.mubr.bf16.gmra.mrb[0].mxu0 %v222
  %v766 = vpop.f32.mrb[0].mxu0
  %v767 = vadd.f32 %v718, %v766
  %v768 = vpop.f32.mrb[0].mxu0
  %v769 = vpop.f32.mrb[0].mxu0
  %v770 = vadd.f32 %v721, %v769
  %v771 = vpop.f32.mrb[0].mxu0
  %772 = vdwg.mxu0
  %773 = vmatprep.subr.bf16.mxu0 0
  %774 = vmatpush1.bf16.msra.mxu0 %v546
  %775 = vmatprep.subr.bf16.mxu0 0
  %776 = vmatpush1.bf16.msra.mxu0 %v547
  %777 = vmatprep.subr.bf16.mxu0 0
  %778 = vmatpush1.bf16.msra.mxu0 %v548
  %779 = vmatprep.subr.bf16.mxu0 0
  %780 = vmatpush1.bf16.msra.mxu0 %v549
  %781 = vmatprep.subr.bf16.mxu0 0
  %782 = vmatpush1.bf16.msra.mxu0 %v550
  %783 = vmatprep.subr.bf16.mxu0 0
  %784 = vmatpush1.bf16.msra.mxu0 %v551
  %785 = vmatprep.subr.bf16.mxu0 0
  %786 = vmatpush1.bf16.msra.mxu0 %v552
  %787 = vmatprep.subr.bf16.mxu0 0
  %788 = vmatpush1.bf16.msra.mxu0 %v553
  %789 = vmatprep.subr.bf16.mxu0 0
  %790 = vmatpush1.bf16.msra.mxu0 %v554
  %791 = vmatprep.subr.bf16.mxu0 0
  %792 = vmatpush1.bf16.msra.mxu0 %v555
  %793 = vmatprep.subr.bf16.mxu0 0
  %794 = vmatpush1.bf16.msra.mxu0 %v556
  %795 = vmatprep.subr.bf16.mxu0 0
  %796 = vmatpush1.bf16.msra.mxu0 %v557
  %797 = vmatprep.subr.bf16.mxu0 0
  %798 = vmatpush1.bf16.msra.mxu0 %v558
  %799 = vmatprep.subr.bf16.mxu0 0
  %800 = vmatpush1.bf16.msra.mxu0 %v559
  %801 = vmatprep.subr.bf16.mxu0 0
  %802 = vmatpush1.bf16.msra.mxu0 %v560
  %803 = vmatprep.subr.bf16.mxu0 0
  %804 = vmatpush1.bf16.msra.mxu0 %v561
  %805 = vmatprep.mubr.bf16.mxu0 %v217
  %806 = vmatmul.mubr.bf16.gmra.mrb[0].mxu0 %v216
  %v807 = vpop.f32.mrb[0].mxu0
  %v808 = vadd.f32 %v759, %v807
  %v809 = vpop.f32.mrb[0].mxu0
  %v810 = vpop.f32.mrb[0].mxu0
  %v811 = vadd.f32 %v762, %v810
  %v812 = vpop.f32.mrb[0].mxu0
  %813 = vmatprep.mubr.bf16.mxu0 %v225
  %814 = vmatmul.mubr.bf16.gmra.mrb[0].mxu0 %v224
  %v815 = vpop.f32.mrb[0].mxu0
  %v816 = vadd.f32 %v767, %v815
  %v817 = vpop.f32.mrb[0].mxu0
  %v818 = vpop.f32.mrb[0].mxu0
  %v819 = vadd.f32 %v770, %v818
  %v820 = vpop.f32.mrb[0].mxu0
  %821 = vdwg.mxu0
  %vm822 = vcmask 261120
  %v823 = vsel %vm822, %v808, 0.0
  %v824 = vsel %vm822, %v811, 0.0
  %v825 = vadd.f32 %v823, %v824
  %v826 = vsel %vm822, %v816, 0.0
  %v827 = vadd.f32 %v825, %v826
  %v828 = vsel %vm822, %v819, 0.0
  %v829 = vadd.f32 %v827, %v828
  %v830 = vrot.slane %v829, 4
  %v831 = vadd.f32 %v829, %v830
  %v832 = vrot.slane %v831, 2
  %v833 = vadd.f32 %v831, %v832
  %v834 = vrot.slane %v833, 1
  %v835 = vadd.f32 %v833, %v834
  %v836 = vrcp.pop 32.0
  %v837 = vmul.f32 %v835, %v836
  %v838 = vsub.f32 %v808, %v837
  %v839 = vsub.f32 %v811, %v837
  %v840 = vsub.f32 %v816, %v837
  %v841 = vsub.f32 %v819, %v837
  %v842 = vmul.f32 %v838, %v838
  %v843 = vmul.f32 %v839, %v839
  %v844 = vmul.f32 %v840, %v840
  %v845 = vmul.f32 %v841, %v841
  %v846 = vsel %vm822, %v842, 0.0
  %v847 = vsel %vm822, %v843, 0.0
  %v848 = vadd.f32 %v846, %v847
  %v849 = vsel %vm822, %v844, 0.0
  %v850 = vadd.f32 %v848, %v849
  %v851 = vsel %vm822, %v845, 0.0
  %v852 = vadd.f32 %v850, %v851
  %v853 = vrot.slane %v852, 4
  %v854 = vadd.f32 %v852, %v853
  %v855 = vrot.slane %v854, 2
  %v856 = vadd.f32 %v854, %v855
  %v857 = vrot.slane %v856, 1
  %v858 = vadd.f32 %v856, %v857
  %v859 = vmul.f32 %v858, %v836
  %v860 = vld [vmem:[%s2] sm:$0x1]
  %v861 = vadd.f32 %v859, 1e-05
  %v862 = vrsqrt.pop %v861
  %v863 = vmul.f32 %v860, %v862
  %v865 = vlaneseq
  %v866 = vshrl.u32 %v865, 7
  %v867 = vsub.s32 0, %v866
  %v868 = vrot.slane %v863, %v867
  %v870 = vmul.f32 %v838, %v868
  %v871 = vmul.f32 %v839, %v868
  %v872 = vmul.f32 %v840, %v868
  %v873 = vmul.f32 %v841, %v868
  %v874 = vld [vmem:[%s3] sm:$0x1]
  %v876 = vlaneseq
  %v877 = vshrl.u32 %v876, 7
  %v878 = vsub.s32 0, %v877
  %v879 = vrot.slane %v874, %v878
  %v881 = vadd.f32 %v870, %v879
  %v882 = vadd.f32 %v871, %v879
  %v883 = vadd.f32 %v872, %v879
  %v884 = vadd.f32 %v873, %v879
  %v885 = vmax.f32 %v881, 0.0
  %v886 = vmax.f32 %v882, 0.0
  %v887 = vmax.f32 %v883, 0.0
  %v888 = vmax.f32 %v884, 0.0
  %889 = vst.msk [vmem:[%s4] sm:$0xff] %vm822, %v885
  %890 = vst.msk [vmem:[%s4 + $0x8] sm:$0xff] %vm822, %v886
  %891 = vst.msk [vmem:[%s4 + $0x10] sm:$0xff] %vm822, %v887
  %892 = vst.msk [vmem:[%s4 + $0x18] sm:$0xff] %vm822, %v888
  // Predicated region
  $region18: #{autoencoder_forward.13} parent=0 // pred_check
    _
  $region19: #{autoencoder_forward.13} parent=0 // pred_check_branch
    %894 = sbr.rel (0) target = $region21
  $region20: #{autoencoder_forward.13} parent=0 // pred_region
    _
  $region21: #{autoencoder_forward.13} parent=0 // pred_fallthru
    _
  // Predicated region
  $region22: #{autoencoder_forward.13} parent=0 // pred_check
    _
  $region23: #{autoencoder_forward.13} parent=0 // pred_check_branch
    %896 = sbr.rel (0) target = $region25
  $region24: #{autoencoder_forward.13} parent=0 // pred_region
    _
  $region25: #{autoencoder_forward.13} parent=0 // pred_fallthru
    _

// kernel: autoencoder_forward.14
$region0: #{autoencoder_forward.14}
  #allocation0 [shape = 'u32[]', space=smem, size = 0x4, offset = 0x4, fixed_abs, tag = 'smem constant byte address 0x4 - core index']
  #allocation1 [shape = 'u32[144,128]{1,0:T(1,128)}', space=vmem, size = 0x12000, scoped, tag = 'internal scratch']
  %s0 = inlined_call_operand.vmem [shape: bf16[128,512], index: 0, kind: input, shape index: {}]
  %s1 = inlined_call_operand.vmem [shape: bf16[512,16], index: 1, kind: input, shape index: {}]
  %s2 = inlined_call_operand.vmem [shape: f32[1,16], index: 2, kind: input, shape index: {}]
  %s3 = inlined_call_operand.vmem [shape: f32[1,16], index: 3, kind: input, shape index: {}]
  %s4 = inlined_call_operand.vmem [shape: f32[128,16], index: 4, kind: output, shape index: {}]
  %s5 = sld [smem:[#allocation0]]
  $region26: #{autoencoder_forward.14} parent=0
    _
  %s7 = ssub.s32 1, %s5
  %s8 = scalar_select 0, %s7, %s5
  // Predicated region
  $region2: #{autoencoder_forward.14} parent=0 // pred_check
    _
  $region3: #{autoencoder_forward.14} parent=0 // pred_check_branch
    %10 = sbr.rel (0) target = $region5
  $region4: #{autoencoder_forward.14} parent=0 // pred_region
    _
  $region5: #{autoencoder_forward.14} parent=0 // pred_fallthru
    _
  // Predicated region
  $region6: #{autoencoder_forward.14} parent=0 // pred_check
    _
  $region7: #{autoencoder_forward.14} parent=0 // pred_check_branch
    %12 = sbr.rel (0) target = $region9
  $region8: #{autoencoder_forward.14} parent=0 // pred_region
    _
  $region9: #{autoencoder_forward.14} parent=0 // pred_fallthru
    _
  // Predicated region
  $region10: #{autoencoder_forward.14} parent=0 // pred_check
    _
  $region11: #{autoencoder_forward.14} parent=0 // pred_check_branch
    %14 = sbr.rel (0) target = $region13
  $region12: #{autoencoder_forward.14} parent=0 // pred_region
    _
  $region13: #{autoencoder_forward.14} parent=0 // pred_fallthru
    _
  // Predicated region
  $region14: #{autoencoder_forward.14} parent=0 // pred_check
    _
  $region15: #{autoencoder_forward.14} parent=0 // pred_check_branch
    %16 = sbr.rel (0) target = $region17
  $region16: #{autoencoder_forward.14} parent=0 // pred_region
    _
  $region17: #{autoencoder_forward.14} parent=0 // pred_fallthru
    _
  %v18 = vld [vmem:[%s0] sm:$0xff]
  %v19 = vld [vmem:[%s0 + $0x8] sm:$0xff]
  %v20 = vld [vmem:[%s0 + $0x10] sm:$0xff]
  %v21 = vld [vmem:[%s0 + $0x18] sm:$0xff]
  %v22 = vld [vmem:[%s0 + $0x20] sm:$0xff]
  %v23 = vld [vmem:[%s0 + $0x28] sm:$0xff]
  %v24 = vld [vmem:[%s0 + $0x30] sm:$0xff]
  %v25 = vld [vmem:[%s0 + $0x38] sm:$0xff]
  %v26 = vld [vmem:[%s0 + $0x40] sm:$0xff]
  %v27 = vld [vmem:[%s0 + $0x48] sm:$0xff]
  %v28 = vld [vmem:[%s0 + $0x50] sm:$0xff]
  %v29 = vld [vmem:[%s0 + $0x58] sm:$0xff]
  %v30 = vld [vmem:[%s0 + $0x60] sm:$0xff]
  %v31 = vld [vmem:[%s0 + $0x68] sm:$0xff]
  %v32 = vld [vmem:[%s0 + $0x70] sm:$0xff]
  %v33 = vld [vmem:[%s0 + $0x78] sm:$0xff]
  %v34 = vld [vmem:[%s0 + $0x80] sm:$0xff]
  %v35 = vld [vmem:[%s0 + $0x88] sm:$0xff]
  %v36 = vld [vmem:[%s0 + $0x90] sm:$0xff]
  %v37 = vld [vmem:[%s0 + $0x98] sm:$0xff]
  %v38 = vld [vmem:[%s0 + $0xa0] sm:$0xff]
  %v39 = vld [vmem:[%s0 + $0xa8] sm:$0xff]
  %v40 = vld [vmem:[%s0 + $0xb0] sm:$0xff]
  %v41 = vld [vmem:[%s0 + $0xb8] sm:$0xff]
  %v42 = vld [vmem:[%s0 + $0xc0] sm:$0xff]
  %v43 = vld [vmem:[%s0 + $0xc8] sm:$0xff]
  %v44 = vld [vmem:[%s0 + $0xd0] sm:$0xff]
  %v45 = vld [vmem:[%s0 + $0xd8] sm:$0xff]
  %v46 = vld [vmem:[%s0 + $0xe0] sm:$0xff]
  %v47 = vld [vmem:[%s0 + $0xe8] sm:$0xff]
  %v48 = vld [vmem:[%s0 + $0xf0] sm:$0xff]
  %v49 = vld [vmem:[%s0 + $0xf8] sm:$0xff]
  %v50 = vld [vmem:[%s1] sm:$0xf]
  %v51 = vld [vmem:[%s1 + $0x4] sm:$0xf]
  %v52 = vld [vmem:[%s1 + $0x8] sm:$0xf]
  %v53 = vld [vmem:[%s1 + $0xc] sm:$0xf]
  %v54 = vld [vmem:[%s1 + $0x10] sm:$0xf]
  %v55 = vld [vmem:[%s1 + $0x14] sm:$0xf]
  %v56 = vld [vmem:[%s1 + $0x18] sm:$0xf]
  %v57 = vld [vmem:[%s1 + $0x1c] sm:$0xf]
  %v58 = vld [vmem:[%s1 + $0x20] sm:$0xf]
  %v59 = vld [vmem:[%s1 + $0x24] sm:$0xf]
  %v60 = vld [vmem:[%s1 + $0x28] sm:$0xf]
  %v61 = vld [vmem:[%s1 + $0x2c] sm:$0xf]
  %v62 = vld [vmem:[%s1 + $0x30] sm:$0xf]
  %v63 = vld [vmem:[%s1 + $0x34] sm:$0xf]
  %v64 = vld [vmem:[%s1 + $0x38] sm:$0xf]
  %v65 = vld [vmem:[%s1 + $0x3c] sm:$0xf]
  %v66 = vld [vmem:[%s1 + $0x40] sm:$0xf]
  %v67 = vld [vmem:[%s1 + $0x44] sm:$0xf]
  %v68 = vld [vmem:[%s1 + $0x48] sm:$0xf]
  %v69 = vld [vmem:[%s1 + $0x4c] sm:$0xf]
  %v70 = vld [vmem:[%s1 + $0x50] sm:$0xf]
  %v71 = vld [vmem:[%s1 + $0x54] sm:$0xf]
  %v72 = vld [vmem:[%s1 + $0x58] sm:$0xf]
  %v73 = vld [vmem:[%s1 + $0x5c] sm:$0xf]
  %v74 = vld [vmem:[%s1 + $0x60] sm:$0xf]
  %v75 = vld [vmem:[%s1 + $0x64] sm:$0xf]
  %v76 = vld [vmem:[%s1 + $0x68] sm:$0xf]
  %v77 = vld [vmem:[%s1 + $0x6c] sm:$0xf]
  %v78 = vld [vmem:[%s1 + $0x70] sm:$0xf]
  %v79 = vld [vmem:[%s1 + $0x74] sm:$0xf]
  %v80 = vld [vmem:[%s1 + $0x78] sm:$0xf]
  %v81 = vld [vmem:[%s1 + $0x7c] sm:$0xf]
  %v82 = vld [vmem:[%s1 + $0x80] sm:$0xf]
  %v83 = vld [vmem:[%s1 + $0x84] sm:$0xf]
  %v84 = vld [vmem:[%s1 + $0x88] sm:$0xf]
  %v85 = vld [vmem:[%s1 + $0x8c] sm:$0xf]
  %v86 = vld [vmem:[%s1 + $0x90] sm:$0xf]
  %v87 = vld [vmem:[%s1 + $0x94] sm:$0xf]
  %v88 = vld [vmem:[%s1 + $0x98] sm:$0xf]
  %v89 = vld [vmem:[%s1 + $0x9c] sm:$0xf]
  %v90 = vld [vmem:[%s1 + $0xa0] sm:$0xf]
  %v91 = vld [vmem:[%s1 + $0xa4] sm:$0xf]
  %v92 = vld [vmem:[%s1 + $0xa8] sm:$0xf]
  %v93 = vld [vmem:[%s1 + $0xac] sm:$0xf]
  %v94 = vld [vmem:[%s1 + $0xb0] sm:$0xf]
  %v95 = vld [vmem:[%s1 + $0xb4] sm:$0xf]
  %v96 = vld [vmem:[%s1 + $0xb8] sm:$0xf]
  %v97 = vld [vmem:[%s1 + $0xbc] sm:$0xf]
  %v98 = vld [vmem:[%s1 + $0xc0] sm:$0xf]
  %v99 = vld [vmem:[%s1 + $0xc4] sm:$0xf]
  %v100 = vld [vmem:[%s1 + $0xc8] sm:$0xf]
  %v101 = vld [vmem:[%s1 + $0xcc] sm:$0xf]
  %v102 = vld [vmem:[%s1 + $0xd0] sm:$0xf]
  %v103 = vld [vmem:[%s1 + $0xd4] sm:$0xf]
  %v104 = vld [vmem:[%s1 + $0xd8] sm:$0xf]
  %v105 = vld [vmem:[%s1 + $0xdc] sm:$0xf]
  %v106 = vld [vmem:[%s1 + $0xe0] sm:$0xf]
  %v107 = vld [vmem:[%s1 + $0xe4] sm:$0xf]
  %v108 = vld [vmem:[%s1 + $0xe8] sm:$0xf]
  %v109 = vld [vmem:[%s1 + $0xec] sm:$0xf]
  %v110 = vld [vmem:[%s1 + $0xf0] sm:$0xf]
  %v111 = vld [vmem:[%s1 + $0xf4] sm:$0xf]
  %v112 = vld [vmem:[%s1 + $0xf8] sm:$0xf]
  %v113 = vld [vmem:[%s1 + $0xfc] sm:$0xf]
  %v146 = vunpack.c.l.b16 %v18
  %v147 = vunpack.c.h.b16 %v18
  %v148 = vunpack.c.l.b16 %v19
  %v149 = vunpack.c.h.b16 %v19
  %v150 = vunpack.c.l.b16 %v20
  %v151 = vunpack.c.h.b16 %v20
  %v152 = vunpack.c.l.b16 %v21
  %v153 = vunpack.c.h.b16 %v21
  %v154 = vunpack.c.l.b16 %v22
  %v155 = vunpack.c.h.b16 %v22
  %v156 = vunpack.c.l.b16 %v23
  %v157 = vunpack.c.h.b16 %v23
  %v158 = vunpack.c.l.b16 %v24
  %v159 = vunpack.c.h.b16 %v24
  %v160 = vunpack.c.l.b16 %v25
  %v161 = vunpack.c.h.b16 %v25
  %v162 = vunpack.c.l.b16 %v26
  %v163 = vunpack.c.h.b16 %v26
  %v164 = vunpack.c.l.b16 %v27
  %v165 = vunpack.c.h.b16 %v27
  %v166 = vunpack.c.l.b16 %v28
  %v167 = vunpack.c.h.b16 %v28
  %v168 = vunpack.c.l.b16 %v29
  %v169 = vunpack.c.h.b16 %v29
  %v170 = vunpack.c.l.b16 %v30
  %v171 = vunpack.c.h.b16 %v30
  %v172 = vunpack.c.l.b16 %v31
  %v173 = vunpack.c.h.b16 %v31
  %v174 = vunpack.c.l.b16 %v32
  %v175 = vunpack.c.h.b16 %v32
  %v176 = vunpack.c.l.b16 %v33
  %v177 = vunpack.c.h.b16 %v33
  %v178 = vunpack.c.l.b16 %v34
  %v179 = vunpack.c.h.b16 %v34
  %v180 = vunpack.c.l.b16 %v35
  %v181 = vunpack.c.h.b16 %v35
  %v182 = vunpack.c.l.b16 %v36
  %v183 = vunpack.c.h.b16 %v36
  %v184 = vunpack.c.l.b16 %v37
  %v185 = vunpack.c.h.b16 %v37
  %v186 = vunpack.c.l.b16 %v38
  %v187 = vunpack.c.h.b16 %v38
  %v188 = vunpack.c.l.b16 %v39
  %v189 = vunpack.c.h.b16 %v39
  %v190 = vunpack.c.l.b16 %v40
  %v191 = vunpack.c.h.b16 %v40
  %v192 = vunpack.c.l.b16 %v41
  %v193 = vunpack.c.h.b16 %v41
  %v194 = vunpack.c.l.b16 %v42
  %v195 = vunpack.c.h.b16 %v42
  %v196 = vunpack.c.l.b16 %v43
  %v197 = vunpack.c.h.b16 %v43
  %v198 = vunpack.c.l.b16 %v44
  %v199 = vunpack.c.h.b16 %v44
  %v200 = vunpack.c.l.b16 %v45
  %v201 = vunpack.c.h.b16 %v45
  %v202 = vunpack.c.l.b16 %v46
  %v203 = vunpack.c.h.b16 %v46
  %v204 = vunpack.c.l.b16 %v47
  %v205 = vunpack.c.h.b16 %v47
  %v206 = vunpack.c.l.b16 %v48
  %v207 = vunpack.c.h.b16 %v48
  %v208 = vunpack.c.l.b16 %v49
  %v209 = vunpack.c.h.b16 %v49
  %v210 = vpack.c.b16 %v150, %v146
  %v211 = vpack.c.b16 %v151, %v147
  %v212 = vpack.c.b16 %v152, %v148
  %v213 = vpack.c.b16 %v153, %v149
  %v214 = vpack.c.b16 %v158, %v154
  %v215 = vpack.c.b16 %v159, %v155
  %v216 = vpack.c.b16 %v160, %v156
  %v217 = vpack.c.b16 %v161, %v157
  %v218 = vpack.c.b16 %v166, %v162
  %v219 = vpack.c.b16 %v167, %v163
  %v220 = vpack.c.b16 %v168, %v164
  %v221 = vpack.c.b16 %v169, %v165
  %v222 = vpack.c.b16 %v174, %v170
  %v223 = vpack.c.b16 %v175, %v171
  %v224 = vpack.c.b16 %v176, %v172
  %v225 = vpack.c.b16 %v177, %v173
  %v226 = vpack.c.b16 %v182, %v178
  %v227 = vpack.c.b16 %v183, %v179
  %v228 = vpack.c.b16 %v184, %v180
  %v229 = vpack.c.b16 %v185, %v181
  %v230 = vpack.c.b16 %v190, %v186
  %v231 = vpack.c.b16 %v191, %v187
  %v232 = vpack.c.b16 %v192, %v188
  %v233 = vpack.c.b16 %v193, %v189
  %v234 = vpack.c.b16 %v198, %v194
  %v235 = vpack.c.b16 %v199, %v195
  %v236 = vpack.c.b16 %v200, %v196
  %v237 = vpack.c.b16 %v201, %v197
  %v238 = vpack.c.b16 %v206, %v202
  %v239 = vpack.c.b16 %v207, %v203
  %v240 = vpack.c.b16 %v208, %v204
  %v241 = vpack.c.b16 %v209, %v205
  %v338 = vunpack.c.l.b16 %v50
  %v339 = vunpack.c.l.b16 %v51
  %v340 = vunpack.c.l.b16 %v52
  %v341 = vunpack.c.l.b16 %v53
  %v342 = vunpack.c.l.b16 %v54
  %v343 = vunpack.c.l.b16 %v55
  %v344 = vunpack.c.l.b16 %v56
  %v345 = vunpack.c.l.b16 %v57
  %v346 = vunpack.c.l.b16 %v58
  %v347 = vunpack.c.l.b16 %v59
  %v348 = vunpack.c.l.b16 %v60
  %v349 = vunpack.c.l.b16 %v61
  %v350 = vunpack.c.l.b16 %v62
  %v351 = vunpack.c.l.b16 %v63
  %v352 = vunpack.c.l.b16 %v64
  %v353 = vunpack.c.l.b16 %v65
  %v354 = vunpack.c.l.b16 %v66
  %v355 = vunpack.c.l.b16 %v67
  %v356 = vunpack.c.l.b16 %v68
  %v357 = vunpack.c.l.b16 %v69
  %v358 = vunpack.c.l.b16 %v70
  %v359 = vunpack.c.l.b16 %v71
  %v360 = vunpack.c.l.b16 %v72
  %v361 = vunpack.c.l.b16 %v73
  %v362 = vunpack.c.l.b16 %v74
  %v363 = vunpack.c.l.b16 %v75
  %v364 = vunpack.c.l.b16 %v76
  %v365 = vunpack.c.l.b16 %v77
  %v366 = vunpack.c.l.b16 %v78
  %v367 = vunpack.c.l.b16 %v79
  %v368 = vunpack.c.l.b16 %v80
  %v369 = vunpack.c.l.b16 %v81
  %v370 = vunpack.c.l.b16 %v82
  %v371 = vunpack.c.l.b16 %v83
  %v372 = vunpack.c.l.b16 %v84
  %v373 = vunpack.c.l.b16 %v85
  %v374 = vunpack.c.l.b16 %v86
  %v375 = vunpack.c.l.b16 %v87
  %v376 = vunpack.c.l.b16 %v88
  %v377 = vunpack.c.l.b16 %v89
  %v378 = vunpack.c.l.b16 %v90
  %v379 = vunpack.c.l.b16 %v91
  %v380 = vunpack.c.l.b16 %v92
  %v381 = vunpack.c.l.b16 %v93
  %v382 = vunpack.c.l.b16 %v94
  %v383 = vunpack.c.l.b16 %v95
  %v384 = vunpack.c.l.b16 %v96
  %v385 = vunpack.c.l.b16 %v97
  %v386 = vunpack.c.l.b16 %v98
  %v387 = vunpack.c.l.b16 %v99
  %v388 = vunpack.c.l.b16 %v100
  %v389 = vunpack.c.l.b16 %v101
  %v390 = vunpack.c.l.b16 %v102
  %v391 = vunpack.c.l.b16 %v103
  %v392 = vunpack.c.l.b16 %v104
  %v393 = vunpack.c.l.b16 %v105
  %v394 = vunpack.c.l.b16 %v106
  %v395 = vunpack.c.l.b16 %v107
  %v396 = vunpack.c.l.b16 %v108
  %v397 = vunpack.c.l.b16 %v109
  %v398 = vunpack.c.l.b16 %v110
  %v399 = vunpack.c.l.b16 %v111
  %v400 = vunpack.c.l.b16 %v112
  %v401 = vunpack.c.l.b16 %v113
  %v402 = vpack.c.b16 %v339, %v338
  %v403 = vpack.c.b16 %v341, %v340
  %v404 = vpack.c.b16 %v343, %v342
  %v405 = vpack.c.b16 %v345, %v344
  %v406 = vpack.c.b16 %v347, %v346
  %v407 = vpack.c.b16 %v349, %v348
  %v408 = vpack.c.b16 %v351, %v350
  %v409 = vpack.c.b16 %v353, %v352
  %v410 = vpack.c.b16 %v355, %v354
  %v411 = vpack.c.b16 %v357, %v356
  %v412 = vpack.c.b16 %v359, %v358
  %v413 = vpack.c.b16 %v361, %v360
  %v414 = vpack.c.b16 %v363, %v362
  %v415 = vpack.c.b16 %v365, %v364
  %v416 = vpack.c.b16 %v367, %v366
  %v417 = vpack.c.b16 %v369, %v368
  %v418 = vpack.c.b16 %v371, %v370
  %v419 = vpack.c.b16 %v373, %v372
  %v420 = vpack.c.b16 %v375, %v374
  %v421 = vpack.c.b16 %v377, %v376
  %v422 = vpack.c.b16 %v379, %v378
  %v423 = vpack.c.b16 %v381, %v380
  %v424 = vpack.c.b16 %v383, %v382
  %v425 = vpack.c.b16 %v385, %v384
  %v426 = vpack.c.b16 %v387, %v386
  %v427 = vpack.c.b16 %v389, %v388
  %v428 = vpack.c.b16 %v391, %v390
  %v429 = vpack.c.b16 %v393, %v392
  %v430 = vpack.c.b16 %v395, %v394
  %v431 = vpack.c.b16 %v397, %v396
  %v432 = vpack.c.b16 %v399, %v398
  %v433 = vpack.c.b16 %v401, %v400
  %466 = vmatprep.subr.bf16.mxu0 0
  %467 = vmatpush1.bf16.msra.mxu0 %v402
  %468 = vmatprep.subr.bf16.mxu0 0
  %469 = vmatpush1.bf16.msra.mxu0 %v403
  %470 = vmatprep.subr.bf16.mxu0 0
  %471 = vmatpush1.bf16.msra.mxu0 %v404
  %472 = vmatprep.subr.bf16.mxu0 0
  %473 = vmatpush1.bf16.msra.mxu0 %v405
  %474 = vmatprep.subr.bf16.mxu0 0
  %475 = vmatpush1.bf16.msra.mxu0 %v406
  %476 = vmatprep.subr.bf16.mxu0 0
  %477 = vmatpush1.bf16.msra.mxu0 %v407
  %478 = vmatprep.subr.bf16.mxu0 0
  %479 = vmatpush1.bf16.msra.mxu0 %v408
  %480 = vmatprep.subr.bf16.mxu0 0
  %481 = vmatpush1.bf16.msra.mxu0 %v409
  %482 = vmatprep.subr.bf16.mxu0 0
  %483 = vmatpush1.bf16.msra.mxu0 %v410
  %484 = vmatprep.subr.bf16.mxu0 0
  %485 = vmatpush1.bf16.msra.mxu0 %v411
  %486 = vmatprep.subr.bf16.mxu0 0
  %487 = vmatpush1.bf16.msra.mxu0 %v412
  %488 = vmatprep.subr.bf16.mxu0 0
  %489 = vmatpush1.bf16.msra.mxu0 %v413
  %490 = vmatprep.subr.bf16.mxu0 0
  %491 = vmatpush1.bf16.msra.mxu0 %v414
  %492 = vmatprep.subr.bf16.mxu0 0
  %493 = vmatpush1.bf16.msra.mxu0 %v415
  %494 = vmatprep.subr.bf16.mxu0 0
  %495 = vmatpush1.bf16.msra.mxu0 %v416
  %496 = vmatprep.subr.bf16.mxu0 0
  %497 = vmatpush1.bf16.msra.mxu0 %v417
  %498 = vmatprep.mubr.bf16.mxu0 %v211
  %499 = vmatmul.mubr.bf16.gmra.mrb[0].mxu0 %v210
  %v500 = vpop.f32.mrb[0].mxu0
  %v501 = vadd.f32 0.0, %v500
  %v502 = vpop.f32.mrb[0].mxu0
  %v503 = vpop.f32.mrb[0].mxu0
  %v504 = vadd.f32 0.0, %v503
  %v505 = vpop.f32.mrb[0].mxu0
  %506 = vmatprep.mubr.bf16.mxu0 %v215
  %507 = vmatmul.mubr.bf16.gmra.mrb[0].mxu0 %v214
  %v508 = vpop.f32.mrb[0].mxu0
  %v509 = vadd.f32 0.0, %v508
  %v510 = vpop.f32.mrb[0].mxu0
  %v511 = vpop.f32.mrb[0].mxu0
  %v512 = vadd.f32 0.0, %v511
  %v513 = vpop.f32.mrb[0].mxu0
  %514 = vmatprep.mubr.bf16.mxu0 %v219
  %515 = vmatmul.mubr.bf16.gmra.mrb[0].mxu0 %v218
  %v516 = vpop.f32.mrb[0].mxu0
  %v517 = vadd.f32 0.0, %v516
  %v518 = vpop.f32.mrb[0].mxu0
  %v519 = vpop.f32.mrb[0].mxu0
  %v520 = vadd.f32 0.0, %v519
  %v521 = vpop.f32.mrb[0].mxu0
  %522 = vmatprep.mubr.bf16.mxu0 %v223
  %523 = vmatmul.mubr.bf16.gmra.mrb[0].mxu0 %v222
  %v524 = vpop.f32.mrb[0].mxu0
  %v525 = vadd.f32 0.0, %v524
  %v526 = vpop.f32.mrb[0].mxu0
  %v527 = vpop.f32.mrb[0].mxu0
  %v528 = vadd.f32 0.0, %v527
  %v529 = vpop.f32.mrb[0].mxu0
  %530 = vmatprep.mubr.bf16.mxu0 %v227
  %531 = vmatmul.mubr.bf16.gmra.mrb[0].mxu0 %v226
  %v532 = vpop.f32.mrb[0].mxu0
  %v533 = vadd.f32 0.0, %v532
  %v534 = vpop.f32.mrb[0].mxu0
  %v535 = vpop.f32.mrb[0].mxu0
  %v536 = vadd.f32 0.0, %v535
  %v537 = vpop.f32.mrb[0].mxu0
  %538 = vmatprep.mubr.bf16.mxu0 %v231
  %539 = vmatmul.mubr.bf16.gmra.mrb[0].mxu0 %v230
  %v540 = vpop.f32.mrb[0].mxu0
  %v541 = vadd.f32 0.0, %v540
  %v542 = vpop.f32.mrb[0].mxu0
  %v543 = vpop.f32.mrb[0].mxu0
  %v544 = vadd.f32 0.0, %v543
  %v545 = vpop.f32.mrb[0].mxu0
  %546 = vmatprep.mubr.bf16.mxu0 %v235
  %547 = vmatmul.mubr.bf16.gmra.mrb[0].mxu0 %v234
  %v548 = vpop.f32.mrb[0].mxu0
  %v549 = vadd.f32 0.0, %v548
  %v550 = vpop.f32.mrb[0].mxu0
  %v551 = vpop.f32.mrb[0].mxu0
  %v552 = vadd.f32 0.0, %v551
  %v553 = vpop.f32.mrb[0].mxu0
  %554 = vmatprep.mubr.bf16.mxu0 %v239
  %555 = vmatmul.mubr.bf16.gmra.mrb[0].mxu0 %v238
  %v556 = vpop.f32.mrb[0].mxu0
  %v557 = vadd.f32 0.0, %v556
  %v558 = vpop.f32.mrb[0].mxu0
  %v559 = vpop.f32.mrb[0].mxu0
  %v560 = vadd.f32 0.0, %v559
  %v561 = vpop.f32.mrb[0].mxu0
  %562 = vdwg.mxu0
  %563 = vmatprep.subr.bf16.mxu0 0
  %564 = vmatpush1.bf16.msra.mxu0 %v418
  %565 = vmatprep.subr.bf16.mxu0 0
  %566 = vmatpush1.bf16.msra.mxu0 %v419
  %567 = vmatprep.subr.bf16.mxu0 0
  %568 = vmatpush1.bf16.msra.mxu0 %v420
  %569 = vmatprep.subr.bf16.mxu0 0
  %570 = vmatpush1.bf16.msra.mxu0 %v421
  %571 = vmatprep.subr.bf16.mxu0 0
  %572 = vmatpush1.bf16.msra.mxu0 %v422
  %573 = vmatprep.subr.bf16.mxu0 0
  %574 = vmatpush1.bf16.msra.mxu0 %v423
  %575 = vmatprep.subr.bf16.mxu0 0
  %576 = vmatpush1.bf16.msra.mxu0 %v424
  %577 = vmatprep.subr.bf16.mxu0 0
  %578 = vmatpush1.bf16.msra.mxu0 %v425
  %579 = vmatprep.subr.bf16.mxu0 0
  %580 = vmatpush1.bf16.msra.mxu0 %v426
  %581 = vmatprep.subr.bf16.mxu0 0
  %582 = vmatpush1.bf16.msra.mxu0 %v427
  %583 = vmatprep.subr.bf16.mxu0 0
  %584 = vmatpush1.bf16.msra.mxu0 %v428
  %585 = vmatprep.subr.bf16.mxu0 0
  %586 = vmatpush1.bf16.msra.mxu0 %v429
  %587 = vmatprep.subr.bf16.mxu0 0
  %588 = vmatpush1.bf16.msra.mxu0 %v430
  %589 = vmatprep.subr.bf16.mxu0 0
  %590 = vmatpush1.bf16.msra.mxu0 %v431
  %591 = vmatprep.subr.bf16.mxu0 0
  %592 = vmatpush1.bf16.msra.mxu0 %v432
  %593 = vmatprep.subr.bf16.mxu0 0
  %594 = vmatpush1.bf16.msra.mxu0 %v433
  %595 = vmatprep.mubr.bf16.mxu0 %v213
  %596 = vmatmul.mubr.bf16.gmra.mrb[0].mxu0 %v212
  %v597 = vpop.f32.mrb[0].mxu0
  %v598 = vadd.f32 %v501, %v597
  %v599 = vpop.f32.mrb[0].mxu0
  %v600 = vpop.f32.mrb[0].mxu0
  %v601 = vadd.f32 %v504, %v600
  %v602 = vpop.f32.mrb[0].mxu0
  %603 = vmatprep.mubr.bf16.mxu0 %v217
  %604 = vmatmul.mubr.bf16.gmra.mrb[0].mxu0 %v216
  %v605 = vpop.f32.mrb[0].mxu0
  %v606 = vadd.f32 %v509, %v605
  %v607 = vpop.f32.mrb[0].mxu0
  %v608 = vpop.f32.mrb[0].mxu0
  %v609 = vadd.f32 %v512, %v608
  %v610 = vpop.f32.mrb[0].mxu0
  %611 = vmatprep.mubr.bf16.mxu0 %v221
  %612 = vmatmul.mubr.bf16.gmra.mrb[0].mxu0 %v220
  %v613 = vpop.f32.mrb[0].mxu0
  %v614 = vadd.f32 %v517, %v613
  %v615 = vpop.f32.mrb[0].mxu0
  %v616 = vpop.f32.mrb[0].mxu0
  %v617 = vadd.f32 %v520, %v616
  %v618 = vpop.f32.mrb[0].mxu0
  %619 = vmatprep.mubr.bf16.mxu0 %v225
  %620 = vmatmul.mubr.bf16.gmra.mrb[0].mxu0 %v224
  %v621 = vpop.f32.mrb[0].mxu0
  %v622 = vadd.f32 %v525, %v621
  %v623 = vpop.f32.mrb[0].mxu0
  %v624 = vpop.f32.mrb[0].mxu0
  %v625 = vadd.f32 %v528, %v624
  %v626 = vpop.f32.mrb[0].mxu0
  %627 = vmatprep.mubr.bf16.mxu0 %v229
  %628 = vmatmul.mubr.bf16.gmra.mrb[0].mxu0 %v228
  %v629 = vpop.f32.mrb[0].mxu0
  %v630 = vadd.f32 %v533, %v629
  %v631 = vpop.f32.mrb[0].mxu0
  %v632 = vpop.f32.mrb[0].mxu0
  %v633 = vadd.f32 %v536, %v632
  %v634 = vpop.f32.mrb[0].mxu0
  %635 = vmatprep.mubr.bf16.mxu0 %v233
  %636 = vmatmul.mubr.bf16.gmra.mrb[0].mxu0 %v232
  %v637 = vpop.f32.mrb[0].mxu0
  %v638 = vadd.f32 %v541, %v637
  %v639 = vpop.f32.mrb[0].mxu0
  %v640 = vpop.f32.mrb[0].mxu0
  %v641 = vadd.f32 %v544, %v640
  %v642 = vpop.f32.mrb[0].mxu0
  %643 = vmatprep.mubr.bf16.mxu0 %v237
  %644 = vmatmul.mubr.bf16.gmra.mrb[0].mxu0 %v236
  %v645 = vpop.f32.mrb[0].mxu0
  %v646 = vadd.f32 %v549, %v645
  %v647 = vpop.f32.mrb[0].mxu0
  %v648 = vpop.f32.mrb[0].mxu0
  %v649 = vadd.f32 %v552, %v648
  %v650 = vpop.f32.mrb[0].mxu0
  %651 = vmatprep.mubr.bf16.mxu0 %v241
  %652 = vmatmul.mubr.bf16.gmra.mrb[0].mxu0 %v240
  %v653 = vpop.f32.mrb[0].mxu0
  %v654 = vadd.f32 %v557, %v653
  %v655 = vpop.f32.mrb[0].mxu0
  %v656 = vpop.f32.mrb[0].mxu0
  %v657 = vadd.f32 %v560, %v656
  %v658 = vpop.f32.mrb[0].mxu0
  %659 = vdwg.mxu0
  %vm660 = vcmask 130048
  %v661 = vsel %vm660, %v598, 0.0
  %v662 = vsel %vm660, %v601, 0.0
  %v663 = vadd.f32 %v661, %v662
  %v664 = vsel %vm660, %v606, 0.0
  %v665 = vadd.f32 %v663, %v664
  %v666 = vsel %vm660, %v609, 0.0
  %v667 = vadd.f32 %v665, %v666
  %v668 = vsel %vm660, %v614, 0.0
  %v669 = vadd.f32 %v667, %v668
  %v670 = vsel %vm660, %v617, 0.0
  %v671 = vadd.f32 %v669, %v670
  %v672 = vsel %vm660, %v622, 0.0
  %v673 = vadd.f32 %v671, %v672
  %v674 = vsel %vm660, %v625, 0.0
  %v675 = vadd.f32 %v673, %v674
  %v676 = vsel %vm660, %v630, 0.0
  %v677 = vadd.f32 %v675, %v676
  %v678 = vsel %vm660, %v633, 0.0
  %v679 = vadd.f32 %v677, %v678
  %v680 = vsel %vm660, %v638, 0.0
  %v681 = vadd.f32 %v679, %v680
  %v682 = vsel %vm660, %v641, 0.0
  %v683 = vadd.f32 %v681, %v682
  %v684 = vsel %vm660, %v646, 0.0
  %v685 = vadd.f32 %v683, %v684
  %v686 = vsel %vm660, %v649, 0.0
  %v687 = vadd.f32 %v685, %v686
  %v688 = vsel %vm660, %v654, 0.0
  %v689 = vadd.f32 %v687, %v688
  %v690 = vsel %vm660, %v657, 0.0
  %v691 = vadd.f32 %v689, %v690
  %v692 = vrot.slane %v691, 4
  %v693 = vadd.f32 %v691, %v692
  %v694 = vrot.slane %v693, 2
  %v695 = vadd.f32 %v693, %v694
  %v696 = vrot.slane %v695, 1
  %v697 = vadd.f32 %v695, %v696
  %v698 = vrcp.pop 128.0
  %v699 = vmul.f32 %v697, %v698
  %v700 = vsub.f32 %v598, %v699
  %v701 = vsub.f32 %v601, %v699
  %v702 = vsub.f32 %v606, %v699
  %v703 = vsub.f32 %v609, %v699
  %v704 = vsub.f32 %v614, %v699
  %v705 = vsub.f32 %v617, %v699
  %v706 = vsub.f32 %v622, %v699
  %v707 = vsub.f32 %v625, %v699
  %v708 = vsub.f32 %v630, %v699
  %v709 = vsub.f32 %v633, %v699
  %v710 = vsub.f32 %v638, %v699
  %v711 = vsub.f32 %v641, %v699
  %v712 = vsub.f32 %v646, %v699
  %v713 = vsub.f32 %v649, %v699
  %v714 = vsub.f32 %v654, %v699
  %v715 = vsub.f32 %v657, %v699
  %v716 = vmul.f32 %v700, %v700
  %v717 = vmul.f32 %v701, %v701
  %v718 = vmul.f32 %v702, %v702
  %v719 = vmul.f32 %v703, %v703
  %v720 = vmul.f32 %v704, %v704
  %v721 = vmul.f32 %v705, %v705
  %v722 = vmul.f32 %v706, %v706
  %v723 = vmul.f32 %v707, %v707
  %v724 = vmul.f32 %v708, %v708
  %v725 = vmul.f32 %v709, %v709
  %v726 = vmul.f32 %v710, %v710
  %v727 = vmul.f32 %v711, %v711
  %v728 = vmul.f32 %v712, %v712
  %v729 = vmul.f32 %v713, %v713
  %v730 = vmul.f32 %v714, %v714
  %v731 = vmul.f32 %v715, %v715
  %v732 = vsel %vm660, %v716, 0.0
  %v733 = vsel %vm660, %v717, 0.0
  %v734 = vadd.f32 %v732, %v733
  %v735 = vsel %vm660, %v718, 0.0
  %v736 = vadd.f32 %v734, %v735
  %v737 = vsel %vm660, %v719, 0.0
  %v738 = vadd.f32 %v736, %v737
  %v739 = vsel %vm660, %v720, 0.0
  %v740 = vadd.f32 %v738, %v739
  %v741 = vsel %vm660, %v721, 0.0
  %v742 = vadd.f32 %v740, %v741
  %v743 = vsel %vm660, %v722, 0.0
  %v744 = vadd.f32 %v742, %v743
  %v745 = vsel %vm660, %v723, 0.0
  %v746 = vadd.f32 %v744, %v745
  %v747 = vsel %vm660, %v724, 0.0
  %v748 = vadd.f32 %v746, %v747
  %v749 = vsel %vm660, %v725, 0.0
  %v750 = vadd.f32 %v748, %v749
  %v751 = vsel %vm660, %v726, 0.0
  %v752 = vadd.f32 %v750, %v751
  %v753 = vsel %vm660, %v727, 0.0
  %v754 = vadd.f32 %v752, %v753
  %v755 = vsel %vm660, %v728, 0.0
  %v756 = vadd.f32 %v754, %v755
  %v757 = vsel %vm660, %v729, 0.0
  %v758 = vadd.f32 %v756, %v757
  %v759 = vsel %vm660, %v730, 0.0
  %v760 = vadd.f32 %v758, %v759
  %v761 = vsel %vm660, %v731, 0.0
  %v762 = vadd.f32 %v760, %v761
  %v763 = vrot.slane %v762, 4
  %v764 = vadd.f32 %v762, %v763
  %v765 = vrot.slane %v764, 2
  %v766 = vadd.f32 %v764, %v765
  %v767 = vrot.slane %v766, 1
  %v768 = vadd.f32 %v766, %v767
  %v769 = vmul.f32 %v768, %v698
  %v770 = vld [vmem:[%s2] sm:$0x1]
  %v771 = vadd.f32 %v769, 1e-05
  %v772 = vrsqrt.pop %v771
  %v773 = vmul.f32 %v770, %v772
  %v775 = vlaneseq
  %v776 = vshrl.u32 %v775, 7
  %v777 = vsub.s32 0, %v776
  %v778 = vrot.slane %v773, %v777
  %v780 = vmul.f32 %v700, %v778
  %v781 = vmul.f32 %v701, %v778
  %v782 = vmul.f32 %v702, %v778
  %v783 = vmul.f32 %v703, %v778
  %v784 = vmul.f32 %v704, %v778
  %v785 = vmul.f32 %v705, %v778
  %v786 = vmul.f32 %v706, %v778
  %v787 = vmul.f32 %v707, %v778
  %v788 = vmul.f32 %v708, %v778
  %v789 = vmul.f32 %v709, %v778
  %v790 = vmul.f32 %v710, %v778
  %v791 = vmul.f32 %v711, %v778
  %v792 = vmul.f32 %v712, %v778
  %v793 = vmul.f32 %v713, %v778
  %v794 = vmul.f32 %v714, %v778
  %v795 = vmul.f32 %v715, %v778
  %v796 = vld [vmem:[%s3] sm:$0x1]
  %v798 = vlaneseq
  %v799 = vshrl.u32 %v798, 7
  %v800 = vsub.s32 0, %v799
  %v801 = vrot.slane %v796, %v800
  %v803 = vadd.f32 %v780, %v801
  %v804 = vadd.f32 %v781, %v801
  %v805 = vadd.f32 %v782, %v801
  %v806 = vadd.f32 %v783, %v801
  %v807 = vadd.f32 %v784, %v801
  %v808 = vadd.f32 %v785, %v801
  %v809 = vadd.f32 %v786, %v801
  %v810 = vadd.f32 %v787, %v801
  %v811 = vadd.f32 %v788, %v801
  %v812 = vadd.f32 %v789, %v801
  %v813 = vadd.f32 %v790, %v801
  %v814 = vadd.f32 %v791, %v801
  %v815 = vadd.f32 %v792, %v801
  %v816 = vadd.f32 %v793, %v801
  %v817 = vadd.f32 %v794, %v801
  %v818 = vadd.f32 %v795, %v801
  %v819 = vmax.f32 %v803, 0.0
  %v820 = vmax.f32 %v804, 0.0
  %v821 = vmax.f32 %v805, 0.0
  %v822 = vmax.f32 %v806, 0.0
  %v823 = vmax.f32 %v807, 0.0
  %v824 = vmax.f32 %v808, 0.0
  %v825 = vmax.f32 %v809, 0.0
  %v826 = vmax.f32 %v810, 0.0
  %v827 = vmax.f32 %v811, 0.0
  %v828 = vmax.f32 %v812, 0.0
  %v829 = vmax.f32 %v813, 0.0
  %v830 = vmax.f32 %v814, 0.0
  %v831 = vmax.f32 %v815, 0.0
  %v832 = vmax.f32 %v816, 0.0
  %v833 = vmax.f32 %v817, 0.0
  %v834 = vmax.f32 %v818, 0.0
  %835 = vst.msk [vmem:[%s4] sm:$0xff] %vm660, %v819
  %836 = vst.msk [vmem:[%s4 + $0x8] sm:$0xff] %vm660, %v820
  %837 = vst.msk [vmem:[%s4 + $0x10] sm:$0xff] %vm660, %v821
  %838 = vst.msk [vmem:[%s4 + $0x18] sm:$0xff] %vm660, %v822
  %839 = vst.msk [vmem:[%s4 + $0x20] sm:$0xff] %vm660, %v823
  %840 = vst.msk [vmem:[%s4 + $0x28] sm:$0xff] %vm660, %v824
  %841 = vst.msk [vmem:[%s4 + $0x30] sm:$0xff] %vm660, %v825
  %842 = vst.msk [vmem:[%s4 + $0x38] sm:$0xff] %vm660, %v826
  %843 = vst.msk [vmem:[%s4 + $0x40] sm:$0xff] %vm660, %v827
  %844 = vst.msk [vmem:[%s4 + $0x48] sm:$0xff] %vm660, %v828
  %845 = vst.msk [vmem:[%s4 + $0x50] sm:$0xff] %vm660, %v829
  %846 = vst.msk [vmem:[%s4 + $0x58] sm:$0xff] %vm660, %v830
  %847 = vst.msk [vmem:[%s4 + $0x60] sm:$0xff] %vm660, %v831
  %848 = vst.msk [vmem:[%s4 + $0x68] sm:$0xff] %vm660, %v832
  %849 = vst.msk [vmem:[%s4 + $0x70] sm:$0xff] %vm660, %v833
  %850 = vst.msk [vmem:[%s4 + $0x78] sm:$0xff] %vm660, %v834
  // Predicated region
  $region18: #{autoencoder_forward.14} parent=0 // pred_check
    _
  $region19: #{autoencoder_forward.14} parent=0 // pred_check_branch
    %852 = sbr.rel (0) target = $region21
  $region20: #{autoencoder_forward.14} parent=0 // pred_region
    _
  $region21: #{autoencoder_forward.14} parent=0 // pred_fallthru
    _
  // Predicated region
  $region22: #{autoencoder_forward.14} parent=0 // pred_check
    _
  $region23: #{autoencoder_forward.14} parent=0 // pred_check_branch
    %854 = sbr.rel (0) target = $region25
  $region24: #{autoencoder_forward.14} parent=0 // pred_region
    _
  $region25: #{autoencoder_forward.14} parent=0 // pred_fallthru
    _

// kernel: autoencoder_forward.15
$region0: #{autoencoder_forward.15}
  #allocation0 [shape = 'u32[]', space=smem, size = 0x4, offset = 0x4, fixed_abs, tag = 'smem constant byte address 0x4 - core index']
  #allocation1 [shape = 'u32[144,128]{1,0:T(1,128)}', space=vmem, size = 0x12000, scoped, tag = 'internal scratch']
  %s0 = inlined_call_operand.vmem [shape: bf16[512,256], index: 0, kind: input, shape index: {}]
  %s1 = inlined_call_operand.vmem [shape: bf16[256,3], index: 1, kind: input, shape index: {}]
  %s2 = inlined_call_operand.vmem [shape: f32[1,3], index: 2, kind: input, shape index: {}]
  %s3 = inlined_call_operand.vmem [shape: f32[512,3], index: 3, kind: output, shape index: {}]
  %s4 = sld [smem:[#allocation0]]
  $region22: #{autoencoder_forward.15} parent=0
    _
  %s6 = ssub.s32 1, %s4
  %s7 = scalar_select 0, %s6, %s4
  // Predicated region
  $region2: #{autoencoder_forward.15} parent=0 // pred_check
    _
  $region3: #{autoencoder_forward.15} parent=0 // pred_check_branch
    %9 = sbr.rel (0) target = $region5
  $region4: #{autoencoder_forward.15} parent=0 // pred_region
    _
  $region5: #{autoencoder_forward.15} parent=0 // pred_fallthru
    _
  // Predicated region
  $region6: #{autoencoder_forward.15} parent=0 // pred_check
    _
  $region7: #{autoencoder_forward.15} parent=0 // pred_check_branch
    %11 = sbr.rel (0) target = $region9
  $region8: #{autoencoder_forward.15} parent=0 // pred_region
    _
  $region9: #{autoencoder_forward.15} parent=0 // pred_fallthru
    _
  // Predicated region
  $region10: #{autoencoder_forward.15} parent=0 // pred_check
    _
  $region11: #{autoencoder_forward.15} parent=0 // pred_check_branch
    %13 = sbr.rel (0) target = $region13
  $region12: #{autoencoder_forward.15} parent=0 // pred_region
    _
  $region13: #{autoencoder_forward.15} parent=0 // pred_fallthru
    _
  %v15 = vld [vmem:[%s0] sm:$0xff]
  %v16 = vld [vmem:[%s0 + $0x8] sm:$0xff]
  %v17 = vld [vmem:[%s0 + $0x10] sm:$0xff]
  %v18 = vld [vmem:[%s0 + $0x18] sm:$0xff]
  %v19 = vld [vmem:[%s0 + $0x20] sm:$0xff]
  %v20 = vld [vmem:[%s0 + $0x28] sm:$0xff]
  %v21 = vld [vmem:[%s0 + $0x30] sm:$0xff]
  %v22 = vld [vmem:[%s0 + $0x38] sm:$0xff]
  %v23 = vld [vmem:[%s0 + $0x40] sm:$0xff]
  %v24 = vld [vmem:[%s0 + $0x48] sm:$0xff]
  %v25 = vld [vmem:[%s0 + $0x50] sm:$0xff]
  %v26 = vld [vmem:[%s0 + $0x58] sm:$0xff]
  %v27 = vld [vmem:[%s0 + $0x60] sm:$0xff]
  %v28 = vld [vmem:[%s0 + $0x68] sm:$0xff]
  %v29 = vld [vmem:[%s0 + $0x70] sm:$0xff]
  %v30 = vld [vmem:[%s0 + $0x78] sm:$0xff]
  %v31 = vld [vmem:[%s0 + $0x80] sm:$0xff]
  %v32 = vld [vmem:[%s0 + $0x88] sm:$0xff]
  %v33 = vld [vmem:[%s0 + $0x90] sm:$0xff]
  %v34 = vld [vmem:[%s0 + $0x98] sm:$0xff]
  %v35 = vld [vmem:[%s0 + $0xa0] sm:$0xff]
  %v36 = vld [vmem:[%s0 + $0xa8] sm:$0xff]
  %v37 = vld [vmem:[%s0 + $0xb0] sm:$0xff]
  %v38 = vld [vmem:[%s0 + $0xb8] sm:$0xff]
  %v39 = vld [vmem:[%s0 + $0xc0] sm:$0xff]
  %v40 = vld [vmem:[%s0 + $0xc8] sm:$0xff]
  %v41 = vld [vmem:[%s0 + $0xd0] sm:$0xff]
  %v42 = vld [vmem:[%s0 + $0xd8] sm:$0xff]
  %v43 = vld [vmem:[%s0 + $0xe0] sm:$0xff]
  %v44 = vld [vmem:[%s0 + $0xe8] sm:$0xff]
  %v45 = vld [vmem:[%s0 + $0xf0] sm:$0xff]
  %v46 = vld [vmem:[%s0 + $0xf8] sm:$0xff]
  %v47 = vld [vmem:[%s0 + $0x100] sm:$0xff]
  %v48 = vld [vmem:[%s0 + $0x108] sm:$0xff]
  %v49 = vld [vmem:[%s0 + $0x110] sm:$0xff]
  %v50 = vld [vmem:[%s0 + $0x118] sm:$0xff]
  %v51 = vld [vmem:[%s0 + $0x120] sm:$0xff]
  %v52 = vld [vmem:[%s0 + $0x128] sm:$0xff]
  %v53 = vld [vmem:[%s0 + $0x130] sm:$0xff]
  %v54 = vld [vmem:[%s0 + $0x138] sm:$0xff]
  %v55 = vld [vmem:[%s0 + $0x140] sm:$0xff]
  %v56 = vld [vmem:[%s0 + $0x148] sm:$0xff]
  %v57 = vld [vmem:[%s0 + $0x150] sm:$0xff]
  %v58 = vld [vmem:[%s0 + $0x158] sm:$0xff]
  %v59 = vld [vmem:[%s0 + $0x160] sm:$0xff]
  %v60 = vld [vmem:[%s0 + $0x168] sm:$0xff]
  %v61 = vld [vmem:[%s0 + $0x170] sm:$0xff]
  %v62 = vld [vmem:[%s0 + $0x178] sm:$0xff]
  %v63 = vld [vmem:[%s0 + $0x180] sm:$0xff]
  %v64 = vld [vmem:[%s0 + $0x188] sm:$0xff]
  %v65 = vld [vmem:[%s0 + $0x190] sm:$0xff]
  %v66 = vld [vmem:[%s0 + $0x198] sm:$0xff]
  %v67 = vld [vmem:[%s0 + $0x1a0] sm:$0xff]
  %v68 = vld [vmem:[%s0 + $0x1a8] sm:$0xff]
  %v69 = vld [vmem:[%s0 + $0x1b0] sm:$0xff]
  %v70 = vld [vmem:[%s0 + $0x1b8] sm:$0xff]
  %v71 = vld [vmem:[%s0 + $0x1c0] sm:$0xff]
  %v72 = vld [vmem:[%s0 + $0x1c8] sm:$0xff]
  %v73 = vld [vmem:[%s0 + $0x1d0] sm:$0xff]
  %v74 = vld [vmem:[%s0 + $0x1d8] sm:$0xff]
  %v75 = vld [vmem:[%s0 + $0x1e0] sm:$0xff]
  %v76 = vld [vmem:[%s0 + $0x1e8] sm:$0xff]
  %v77 = vld [vmem:[%s0 + $0x1f0] sm:$0xff]
  %v78 = vld [vmem:[%s0 + $0x1f8] sm:$0xff]
  %v79 = vld [vmem:[%s1] sm:$0xf]
  %v80 = vld [vmem:[%s1 + $0x4] sm:$0xf]
  %v81 = vld [vmem:[%s1 + $0x8] sm:$0xf]
  %v82 = vld [vmem:[%s1 + $0xc] sm:$0xf]
  %v83 = vld [vmem:[%s1 + $0x10] sm:$0xf]
  %v84 = vld [vmem:[%s1 + $0x14] sm:$0xf]
  %v85 = vld [vmem:[%s1 + $0x18] sm:$0xf]
  %v86 = vld [vmem:[%s1 + $0x1c] sm:$0xf]
  %v87 = vld [vmem:[%s1 + $0x20] sm:$0xf]
  %v88 = vld [vmem:[%s1 + $0x24] sm:$0xf]
  %v89 = vld [vmem:[%s1 + $0x28] sm:$0xf]
  %v90 = vld [vmem:[%s1 + $0x2c] sm:$0xf]
  %v91 = vld [vmem:[%s1 + $0x30] sm:$0xf]
  %v92 = vld [vmem:[%s1 + $0x34] sm:$0xf]
  %v93 = vld [vmem:[%s1 + $0x38] sm:$0xf]
  %v94 = vld [vmem:[%s1 + $0x3c] sm:$0xf]
  %v95 = vld [vmem:[%s1 + $0x40] sm:$0xf]
  %v96 = vld [vmem:[%s1 + $0x44] sm:$0xf]
  %v97 = vld [vmem:[%s1 + $0x48] sm:$0xf]
  %v98 = vld [vmem:[%s1 + $0x4c] sm:$0xf]
  %v99 = vld [vmem:[%s1 + $0x50] sm:$0xf]
  %v100 = vld [vmem:[%s1 + $0x54] sm:$0xf]
  %v101 = vld [vmem:[%s1 + $0x58] sm:$0xf]
  %v102 = vld [vmem:[%s1 + $0x5c] sm:$0xf]
  %v103 = vld [vmem:[%s1 + $0x60] sm:$0xf]
  %v104 = vld [vmem:[%s1 + $0x64] sm:$0xf]
  %v105 = vld [vmem:[%s1 + $0x68] sm:$0xf]
  %v106 = vld [vmem:[%s1 + $0x6c] sm:$0xf]
  %v107 = vld [vmem:[%s1 + $0x70] sm:$0xf]
  %v108 = vld [vmem:[%s1 + $0x74] sm:$0xf]
  %v109 = vld [vmem:[%s1 + $0x78] sm:$0xf]
  %v110 = vld [vmem:[%s1 + $0x7c] sm:$0xf]
  %v111 = vld [vmem:[%s2] sm:$0x1]
  %v113 = vlaneseq
  %v114 = vshrl.u32 %v113, 7
  %v115 = vsub.s32 0, %v114
  %v116 = vrot.slane %v111, %v115
  %v182 = vunpack.c.l.b16 %v15
  %v183 = vunpack.c.h.b16 %v15
  %v184 = vunpack.c.l.b16 %v16
  %v185 = vunpack.c.h.b16 %v16
  %v186 = vunpack.c.l.b16 %v17
  %v187 = vunpack.c.h.b16 %v17
  %v188 = vunpack.c.l.b16 %v18
  %v189 = vunpack.c.h.b16 %v18
  %v190 = vunpack.c.l.b16 %v19
  %v191 = vunpack.c.h.b16 %v19
  %v192 = vunpack.c.l.b16 %v20
  %v193 = vunpack.c.h.b16 %v20
  %v194 = vunpack.c.l.b16 %v21
  %v195 = vunpack.c.h.b16 %v21
  %v196 = vunpack.c.l.b16 %v22
  %v197 = vunpack.c.h.b16 %v22
  %v198 = vunpack.c.l.b16 %v23
  %v199 = vunpack.c.h.b16 %v23
  %v200 = vunpack.c.l.b16 %v24
  %v201 = vunpack.c.h.b16 %v24
  %v202 = vunpack.c.l.b16 %v25
  %v203 = vunpack.c.h.b16 %v25
  %v204 = vunpack.c.l.b16 %v26
  %v205 = vunpack.c.h.b16 %v26
  %v206 = vunpack.c.l.b16 %v27
  %v207 = vunpack.c.h.b16 %v27
  %v208 = vunpack.c.l.b16 %v28
  %v209 = vunpack.c.h.b16 %v28
  %v210 = vunpack.c.l.b16 %v29
  %v211 = vunpack.c.h.b16 %v29
  %v212 = vunpack.c.l.b16 %v30
  %v213 = vunpack.c.h.b16 %v30
  %v214 = vunpack.c.l.b16 %v31
  %v215 = vunpack.c.h.b16 %v31
  %v216 = vunpack.c.l.b16 %v32
  %v217 = vunpack.c.h.b16 %v32
  %v218 = vunpack.c.l.b16 %v33
  %v219 = vunpack.c.h.b16 %v33
  %v220 = vunpack.c.l.b16 %v34
  %v221 = vunpack.c.h.b16 %v34
  %v222 = vunpack.c.l.b16 %v35
  %v223 = vunpack.c.h.b16 %v35
  %v224 = vunpack.c.l.b16 %v36
  %v225 = vunpack.c.h.b16 %v36
  %v226 = vunpack.c.l.b16 %v37
  %v227 = vunpack.c.h.b16 %v37
  %v228 = vunpack.c.l.b16 %v38
  %v229 = vunpack.c.h.b16 %v38
  %v230 = vunpack.c.l.b16 %v39
  %v231 = vunpack.c.h.b16 %v39
  %v232 = vunpack.c.l.b16 %v40
  %v233 = vunpack.c.h.b16 %v40
  %v234 = vunpack.c.l.b16 %v41
  %v235 = vunpack.c.h.b16 %v41
  %v236 = vunpack.c.l.b16 %v42
  %v237 = vunpack.c.h.b16 %v42
  %v238 = vunpack.c.l.b16 %v43
  %v239 = vunpack.c.h.b16 %v43
  %v240 = vunpack.c.l.b16 %v44
  %v241 = vunpack.c.h.b16 %v44
  %v242 = vunpack.c.l.b16 %v45
  %v243 = vunpack.c.h.b16 %v45
  %v244 = vunpack.c.l.b16 %v46
  %v245 = vunpack.c.h.b16 %v46
  %v246 = vunpack.c.l.b16 %v47
  %v247 = vunpack.c.h.b16 %v47
  %v248 = vunpack.c.l.b16 %v48
  %v249 = vunpack.c.h.b16 %v48
  %v250 = vunpack.c.l.b16 %v49
  %v251 = vunpack.c.h.b16 %v49
  %v252 = vunpack.c.l.b16 %v50
  %v253 = vunpack.c.h.b16 %v50
  %v254 = vunpack.c.l.b16 %v51
  %v255 = vunpack.c.h.b16 %v51
  %v256 = vunpack.c.l.b16 %v52
  %v257 = vunpack.c.h.b16 %v52
  %v258 = vunpack.c.l.b16 %v53
  %v259 = vunpack.c.h.b16 %v53
  %v260 = vunpack.c.l.b16 %v54
  %v261 = vunpack.c.h.b16 %v54
  %v262 = vunpack.c.l.b16 %v55
  %v263 = vunpack.c.h.b16 %v55
  %v264 = vunpack.c.l.b16 %v56
  %v265 = vunpack.c.h.b16 %v56
  %v266 = vunpack.c.l.b16 %v57
  %v267 = vunpack.c.h.b16 %v57
  %v268 = vunpack.c.l.b16 %v58
  %v269 = vunpack.c.h.b16 %v58
  %v270 = vunpack.c.l.b16 %v59
  %v271 = vunpack.c.h.b16 %v59
  %v272 = vunpack.c.l.b16 %v60
  %v273 = vunpack.c.h.b16 %v60
  %v274 = vunpack.c.l.b16 %v61
  %v275 = vunpack.c.h.b16 %v61
  %v276 = vunpack.c.l.b16 %v62
  %v277 = vunpack.c.h.b16 %v62
  %v278 = vunpack.c.l.b16 %v63
  %v279 = vunpack.c.h.b16 %v63
  %v280 = vunpack.c.l.b16 %v64
  %v281 = vunpack.c.h.b16 %v64
  %v282 = vunpack.c.l.b16 %v65
  %v283 = vunpack.c.h.b16 %v65
  %v284 = vunpack.c.l.b16 %v66
  %v285 = vunpack.c.h.b16 %v66
  %v286 = vunpack.c.l.b16 %v67
  %v287 = vunpack.c.h.b16 %v67
  %v288 = vunpack.c.l.b16 %v68
  %v289 = vunpack.c.h.b16 %v68
  %v290 = vunpack.c.l.b16 %v69
  %v291 = vunpack.c.h.b16 %v69
  %v292 = vunpack.c.l.b16 %v70
  %v293 = vunpack.c.h.b16 %v70
  %v294 = vunpack.c.l.b16 %v71
  %v295 = vunpack.c.h.b16 %v71
  %v296 = vunpack.c.l.b16 %v72
  %v297 = vunpack.c.h.b16 %v72
  %v298 = vunpack.c.l.b16 %v73
  %v299 = vunpack.c.h.b16 %v73
  %v300 = vunpack.c.l.b16 %v74
  %v301 = vunpack.c.h.b16 %v74
  %v302 = vunpack.c.l.b16 %v75
  %v303 = vunpack.c.h.b16 %v75
  %v304 = vunpack.c.l.b16 %v76
  %v305 = vunpack.c.h.b16 %v76
  %v306 = vunpack.c.l.b16 %v77
  %v307 = vunpack.c.h.b16 %v77
  %v308 = vunpack.c.l.b16 %v78
  %v309 = vunpack.c.h.b16 %v78
  %v310 = vpack.c.b16 %v184, %v182
  %v311 = vpack.c.b16 %v185, %v183
  %v312 = vpack.c.b16 %v188, %v186
  %v313 = vpack.c.b16 %v189, %v187
  %v314 = vpack.c.b16 %v192, %v190
  %v315 = vpack.c.b16 %v193, %v191
  %v316 = vpack.c.b16 %v196, %v194
  %v317 = vpack.c.b16 %v197, %v195
  %v318 = vpack.c.b16 %v200, %v198
  %v319 = vpack.c.b16 %v201, %v199
  %v320 = vpack.c.b16 %v204, %v202
  %v321 = vpack.c.b16 %v205, %v203
  %v322 = vpack.c.b16 %v208, %v206
  %v323 = vpack.c.b16 %v209, %v207
  %v324 = vpack.c.b16 %v212, %v210
  %v325 = vpack.c.b16 %v213, %v211
  %v326 = vpack.c.b16 %v216, %v214
  %v327 = vpack.c.b16 %v217, %v215
  %v328 = vpack.c.b16 %v220, %v218
  %v329 = vpack.c.b16 %v221, %v219
  %v330 = vpack.c.b16 %v224, %v222
  %v331 = vpack.c.b16 %v225, %v223
  %v332 = vpack.c.b16 %v228, %v226
  %v333 = vpack.c.b16 %v229, %v227
  %v334 = vpack.c.b16 %v232, %v230
  %v335 = vpack.c.b16 %v233, %v231
  %v336 = vpack.c.b16 %v236, %v234
  %v337 = vpack.c.b16 %v237, %v235
  %v338 = vpack.c.b16 %v240, %v238
  %v339 = vpack.c.b16 %v241, %v239
  %v340 = vpack.c.b16 %v244, %v242
  %v341 = vpack.c.b16 %v245, %v243
  %v342 = vpack.c.b16 %v248, %v246
  %v343 = vpack.c.b16 %v249, %v247
  %v344 = vpack.c.b16 %v252, %v250
  %v345 = vpack.c.b16 %v253, %v251
  %v346 = vpack.c.b16 %v256, %v254
  %v347 = vpack.c.b16 %v257, %v255
  %v348 = vpack.c.b16 %v260, %v258
  %v349 = vpack.c.b16 %v261, %v259
  %v350 = vpack.c.b16 %v264, %v262
  %v351 = vpack.c.b16 %v265, %v263
  %v352 = vpack.c.b16 %v268, %v266
  %v353 = vpack.c.b16 %v269, %v267
  %v354 = vpack.c.b16 %v272, %v270
  %v355 = vpack.c.b16 %v273, %v271
  %v356 = vpack.c.b16 %v276, %v274
  %v357 = vpack.c.b16 %v277, %v275
  %v358 = vpack.c.b16 %v280, %v278
  %v359 = vpack.c.b16 %v281, %v279
  %v360 = vpack.c.b16 %v284, %v282
  %v361 = vpack.c.b16 %v285, %v283
  %v362 = vpack.c.b16 %v288, %v286
  %v363 = vpack.c.b16 %v289, %v287
  %v364 = vpack.c.b16 %v292, %v290
  %v365 = vpack.c.b16 %v293, %v291
  %v366 = vpack.c.b16 %v296, %v294
  %v367 = vpack.c.b16 %v297, %v295
  %v368 = vpack.c.b16 %v300, %v298
  %v369 = vpack.c.b16 %v301, %v299
  %v370 = vpack.c.b16 %v304, %v302
  %v371 = vpack.c.b16 %v305, %v303
  %v372 = vpack.c.b16 %v308, %v306
  %v373 = vpack.c.b16 %v309, %v307
  %v470 = vunpack.c.l.b16 %v79
  %v471 = vunpack.c.l.b16 %v80
  %v472 = vunpack.c.l.b16 %v81
  %v473 = vunpack.c.l.b16 %v82
  %v474 = vunpack.c.l.b16 %v83
  %v475 = vunpack.c.l.b16 %v84
  %v476 = vunpack.c.l.b16 %v85
  %v477 = vunpack.c.l.b16 %v86
  %v478 = vunpack.c.l.b16 %v87
  %v479 = vunpack.c.l.b16 %v88
  %v480 = vunpack.c.l.b16 %v89
  %v481 = vunpack.c.l.b16 %v90
  %v482 = vunpack.c.l.b16 %v91
  %v483 = vunpack.c.l.b16 %v92
  %v484 = vunpack.c.l.b16 %v93
  %v485 = vunpack.c.l.b16 %v94
  %v486 = vunpack.c.l.b16 %v95
  %v487 = vunpack.c.l.b16 %v96
  %v488 = vunpack.c.l.b16 %v97
  %v489 = vunpack.c.l.b16 %v98
  %v490 = vunpack.c.l.b16 %v99
  %v491 = vunpack.c.l.b16 %v100
  %v492 = vunpack.c.l.b16 %v101
  %v493 = vunpack.c.l.b16 %v102
  %v494 = vunpack.c.l.b16 %v103
  %v495 = vunpack.c.l.b16 %v104
  %v496 = vunpack.c.l.b16 %v105
  %v497 = vunpack.c.l.b16 %v106
  %v498 = vunpack.c.l.b16 %v107
  %v499 = vunpack.c.l.b16 %v108
  %v500 = vunpack.c.l.b16 %v109
  %v501 = vunpack.c.l.b16 %v110
  %v502 = vpack.c.b16 %v471, %v470
  %v503 = vpack.c.b16 %v473, %v472
  %v504 = vpack.c.b16 %v475, %v474
  %v505 = vpack.c.b16 %v477, %v476
  %v506 = vpack.c.b16 %v479, %v478
  %v507 = vpack.c.b16 %v481, %v480
  %v508 = vpack.c.b16 %v483, %v482
  %v509 = vpack.c.b16 %v485, %v484
  %v510 = vpack.c.b16 %v487, %v486
  %v511 = vpack.c.b16 %v489, %v488
  %v512 = vpack.c.b16 %v491, %v490
  %v513 = vpack.c.b16 %v493, %v492
  %v514 = vpack.c.b16 %v495, %v494
  %v515 = vpack.c.b16 %v497, %v496
  %v516 = vpack.c.b16 %v499, %v498
  %v517 = vpack.c.b16 %v501, %v500
  %534 = vmatprep.subr.bf16.mxu0 0
  %535 = vmatpush1.bf16.msra.mxu0 %v502
  %536 = vmatprep.subr.bf16.mxu0 0
  %537 = vmatpush1.bf16.msra.mxu0 %v503
  %538 = vmatprep.subr.bf16.mxu0 0
  %539 = vmatpush1.bf16.msra.mxu0 %v504
  %540 = vmatprep.subr.bf16.mxu0 0
  %541 = vmatpush1.bf16.msra.mxu0 %v505
  %542 = vmatprep.subr.bf16.mxu0 0
  %543 = vmatpush1.bf16.msra.mxu0 %v506
  %544 = vmatprep.subr.bf16.mxu0 0
  %545 = vmatpush1.bf16.msra.mxu0 %v507
  %546 = vmatprep.subr.bf16.mxu0 0
  %547 = vmatpush1.bf16.msra.mxu0 %v508
  %548 = vmatprep.subr.bf16.mxu0 0
  %549 = vmatpush1.bf16.msra.mxu0 %v509
  %550 = vmatprep.subr.bf16.mxu0 0
  %551 = vmatpush1.bf16.msra.mxu0 %v510
  %552 = vmatprep.subr.bf16.mxu0 0
  %553 = vmatpush1.bf16.msra.mxu0 %v511
  %554 = vmatprep.subr.bf16.mxu0 0
  %555 = vmatpush1.bf16.msra.mxu0 %v512
  %556 = vmatprep.subr.bf16.mxu0 0
  %557 = vmatpush1.bf16.msra.mxu0 %v513
  %558 = vmatprep.subr.bf16.mxu0 0
  %559 = vmatpush1.bf16.msra.mxu0 %v514
  %560 = vmatprep.subr.bf16.mxu0 0
  %561 = vmatpush1.bf16.msra.mxu0 %v515
  %562 = vmatprep.subr.bf16.mxu0 0
  %563 = vmatpush1.bf16.msra.mxu0 %v516
  %564 = vmatprep.subr.bf16.mxu0 0
  %565 = vmatpush1.bf16.msra.mxu0 %v517
  %566 = vmatprep.mubr.bf16.mxu0 %v311
  %567 = vmatmul.mubr.bf16.gmra.mrb[0].mxu0 %v310
  %v568 = vpop.f32.mrb[0].mxu0
  %v569 = vadd.f32 %v116, %v568
  %v570 = vpop.f32.mrb[0].mxu0
  %v571 = vpop.f32.mrb[0].mxu0
  %v572 = vadd.f32 %v116, %v571
  %v573 = vpop.f32.mrb[0].mxu0
  %574 = vmatprep.mubr.bf16.mxu0 %v313
  %575 = vmatmul.mubr.bf16.gmra.mrb[0].mxu0 %v312
  %v576 = vpop.f32.mrb[0].mxu0
  %v577 = vadd.f32 %v116, %v576
  %v578 = vpop.f32.mrb[0].mxu0
  %v579 = vpop.f32.mrb[0].mxu0
  %v580 = vadd.f32 %v116, %v579
  %v581 = vpop.f32.mrb[0].mxu0
  %582 = vmatprep.mubr.bf16.mxu0 %v315
  %583 = vmatmul.mubr.bf16.gmra.mrb[0].mxu0 %v314
  %v584 = vpop.f32.mrb[0].mxu0
  %v585 = vadd.f32 %v116, %v584
  %v586 = vpop.f32.mrb[0].mxu0
  %v587 = vpop.f32.mrb[0].mxu0
  %v588 = vadd.f32 %v116, %v587
  %v589 = vpop.f32.mrb[0].mxu0
  %590 = vmatprep.mubr.bf16.mxu0 %v317
  %591 = vmatmul.mubr.bf16.gmra.mrb[0].mxu0 %v316
  %v592 = vpop.f32.mrb[0].mxu0
  %v593 = vadd.f32 %v116, %v592
  %v594 = vpop.f32.mrb[0].mxu0
  %v595 = vpop.f32.mrb[0].mxu0
  %v596 = vadd.f32 %v116, %v595
  %v597 = vpop.f32.mrb[0].mxu0
  %598 = vmatprep.mubr.bf16.mxu0 %v319
  %599 = vmatmul.mubr.bf16.gmra.mrb[0].mxu0 %v318
  %v600 = vpop.f32.mrb[0].mxu0
  %v601 = vadd.f32 %v116, %v600
  %v602 = vpop.f32.mrb[0].mxu0
  %v603 = vpop.f32.mrb[0].mxu0
  %v604 = vadd.f32 %v116, %v603
  %v605 = vpop.f32.mrb[0].mxu0
  %606 = vmatprep.mubr.bf16.mxu0 %v321
  %607 = vmatmul.mubr.bf16.gmra.mrb[0].mxu0 %v320
  %v608 = vpop.f32.mrb[0].mxu0
  %v609 = vadd.f32 %v116, %v608
  %v610 = vpop.f32.mrb[0].mxu0
  %v611 = vpop.f32.mrb[0].mxu0
  %v612 = vadd.f32 %v116, %v611
  %v613 = vpop.f32.mrb[0].mxu0
  %614 = vmatprep.mubr.bf16.mxu0 %v323
  %615 = vmatmul.mubr.bf16.gmra.mrb[0].mxu0 %v322
  %v616 = vpop.f32.mrb[0].mxu0
  %v617 = vadd.f32 %v116, %v616
  %v618 = vpop.f32.mrb[0].mxu0
  %v619 = vpop.f32.mrb[0].mxu0
  %v620 = vadd.f32 %v116, %v619
  %v621 = vpop.f32.mrb[0].mxu0
  %622 = vmatprep.mubr.bf16.mxu0 %v325
  %623 = vmatmul.mubr.bf16.gmra.mrb[0].mxu0 %v324
  %v624 = vpop.f32.mrb[0].mxu0
  %v625 = vadd.f32 %v116, %v624
  %v626 = vpop.f32.mrb[0].mxu0
  %v627 = vpop.f32.mrb[0].mxu0
  %v628 = vadd.f32 %v116, %v627
  %v629 = vpop.f32.mrb[0].mxu0
  %630 = vmatprep.mubr.bf16.mxu0 %v327
  %631 = vmatmul.mubr.bf16.gmra.mrb[0].mxu0 %v326
  %v632 = vpop.f32.mrb[0].mxu0
  %v633 = vadd.f32 %v116, %v632
  %v634 = vpop.f32.mrb[0].mxu0
  %v635 = vpop.f32.mrb[0].mxu0
  %v636 = vadd.f32 %v116, %v635
  %v637 = vpop.f32.mrb[0].mxu0
  %638 = vmatprep.mubr.bf16.mxu0 %v329
  %639 = vmatmul.mubr.bf16.gmra.mrb[0].mxu0 %v328
  %v640 = vpop.f32.mrb[0].mxu0
  %v641 = vadd.f32 %v116, %v640
  %v642 = vpop.f32.mrb[0].mxu0
  %v643 = vpop.f32.mrb[0].mxu0
  %v644 = vadd.f32 %v116, %v643
  %v645 = vpop.f32.mrb[0].mxu0
  %646 = vmatprep.mubr.bf16.mxu0 %v331
  %647 = vmatmul.mubr.bf16.gmra.mrb[0].mxu0 %v330
  %v648 = vpop.f32.mrb[0].mxu0
  %v649 = vadd.f32 %v116, %v648
  %v650 = vpop.f32.mrb[0].mxu0
  %v651 = vpop.f32.mrb[0].mxu0
  %v652 = vadd.f32 %v116, %v651
  %v653 = vpop.f32.mrb[0].mxu0
  %654 = vmatprep.mubr.bf16.mxu0 %v333
  %655 = vmatmul.mubr.bf16.gmra.mrb[0].mxu0 %v332
  %v656 = vpop.f32.mrb[0].mxu0
  %v657 = vadd.f32 %v116, %v656
  %v658 = vpop.f32.mrb[0].mxu0
  %v659 = vpop.f32.mrb[0].mxu0
  %v660 = vadd.f32 %v116, %v659
  %v661 = vpop.f32.mrb[0].mxu0
  %662 = vmatprep.mubr.bf16.mxu0 %v335
  %663 = vmatmul.mubr.bf16.gmra.mrb[0].mxu0 %v334
  %v664 = vpop.f32.mrb[0].mxu0
  %v665 = vadd.f32 %v116, %v664
  %v666 = vpop.f32.mrb[0].mxu0
  %v667 = vpop.f32.mrb[0].mxu0
  %v668 = vadd.f32 %v116, %v667
  %v669 = vpop.f32.mrb[0].mxu0
  %670 = vmatprep.mubr.bf16.mxu0 %v337
  %671 = vmatmul.mubr.bf16.gmra.mrb[0].mxu0 %v336
  %v672 = vpop.f32.mrb[0].mxu0
  %v673 = vadd.f32 %v116, %v672
  %v674 = vpop.f32.mrb[0].mxu0
  %v675 = vpop.f32.mrb[0].mxu0
  %v676 = vadd.f32 %v116, %v675
  %v677 = vpop.f32.mrb[0].mxu0
  %678 = vmatprep.mubr.bf16.mxu0 %v339
  %679 = vmatmul.mubr.bf16.gmra.mrb[0].mxu0 %v338
  %v680 = vpop.f32.mrb[0].mxu0
  %v681 = vadd.f32 %v116, %v680
  %v682 = vpop.f32.mrb[0].mxu0
  %v683 = vpop.f32.mrb[0].mxu0
  %v684 = vadd.f32 %v116, %v683
  %v685 = vpop.f32.mrb[0].mxu0
  %686 = vmatprep.mubr.bf16.mxu0 %v341
  %687 = vmatmul.mubr.bf16.gmra.mrb[0].mxu0 %v340
  %v688 = vpop.f32.mrb[0].mxu0
  %v689 = vadd.f32 %v116, %v688
  %v690 = vpop.f32.mrb[0].mxu0
  %v691 = vpop.f32.mrb[0].mxu0
  %v692 = vadd.f32 %v116, %v691
  %v693 = vpop.f32.mrb[0].mxu0
  %694 = vmatprep.mubr.bf16.mxu0 %v343
  %695 = vmatmul.mubr.bf16.gmra.mrb[0].mxu0 %v342
  %v696 = vpop.f32.mrb[0].mxu0
  %v697 = vadd.f32 %v116, %v696
  %v698 = vpop.f32.mrb[0].mxu0
  %v699 = vpop.f32.mrb[0].mxu0
  %v700 = vadd.f32 %v116, %v699
  %v701 = vpop.f32.mrb[0].mxu0
  %702 = vmatprep.mubr.bf16.mxu0 %v345
  %703 = vmatmul.mubr.bf16.gmra.mrb[0].mxu0 %v344
  %v704 = vpop.f32.mrb[0].mxu0
  %v705 = vadd.f32 %v116, %v704
  %v706 = vpop.f32.mrb[0].mxu0
  %v707 = vpop.f32.mrb[0].mxu0
  %v708 = vadd.f32 %v116, %v707
  %v709 = vpop.f32.mrb[0].mxu0
  %710 = vmatprep.mubr.bf16.mxu0 %v347
  %711 = vmatmul.mubr.bf16.gmra.mrb[0].mxu0 %v346
  %v712 = vpop.f32.mrb[0].mxu0
  %v713 = vadd.f32 %v116, %v712
  %v714 = vpop.f32.mrb[0].mxu0
  %v715 = vpop.f32.mrb[0].mxu0
  %v716 = vadd.f32 %v116, %v715
  %v717 = vpop.f32.mrb[0].mxu0
  %718 = vmatprep.mubr.bf16.mxu0 %v349
  %719 = vmatmul.mubr.bf16.gmra.mrb[0].mxu0 %v348
  %v720 = vpop.f32.mrb[0].mxu0
  %v721 = vadd.f32 %v116, %v720
  %v722 = vpop.f32.mrb[0].mxu0
  %v723 = vpop.f32.mrb[0].mxu0
  %v724 = vadd.f32 %v116, %v723
  %v725 = vpop.f32.mrb[0].mxu0
  %726 = vmatprep.mubr.bf16.mxu0 %v351
  %727 = vmatmul.mubr.bf16.gmra.mrb[0].mxu0 %v350
  %v728 = vpop.f32.mrb[0].mxu0
  %v729 = vadd.f32 %v116, %v728
  %v730 = vpop.f32.mrb[0].mxu0
  %v731 = vpop.f32.mrb[0].mxu0
  %v732 = vadd.f32 %v116, %v731
  %v733 = vpop.f32.mrb[0].mxu0
  %734 = vmatprep.mubr.bf16.mxu0 %v353
  %735 = vmatmul.mubr.bf16.gmra.mrb[0].mxu0 %v352
  %v736 = vpop.f32.mrb[0].mxu0
  %v737 = vadd.f32 %v116, %v736
  %v738 = vpop.f32.mrb[0].mxu0
  %v739 = vpop.f32.mrb[0].mxu0
  %v740 = vadd.f32 %v116, %v739
  %v741 = vpop.f32.mrb[0].mxu0
  %742 = vmatprep.mubr.bf16.mxu0 %v355
  %743 = vmatmul.mubr.bf16.gmra.mrb[0].mxu0 %v354
  %v744 = vpop.f32.mrb[0].mxu0
  %v745 = vadd.f32 %v116, %v744
  %v746 = vpop.f32.mrb[0].mxu0
  %v747 = vpop.f32.mrb[0].mxu0
  %v748 = vadd.f32 %v116, %v747
  %v749 = vpop.f32.mrb[0].mxu0
  %750 = vmatprep.mubr.bf16.mxu0 %v357
  %751 = vmatmul.mubr.bf16.gmra.mrb[0].mxu0 %v356
  %v752 = vpop.f32.mrb[0].mxu0
  %v753 = vadd.f32 %v116, %v752
  %v754 = vpop.f32.mrb[0].mxu0
  %v755 = vpop.f32.mrb[0].mxu0
  %v756 = vadd.f32 %v116, %v755
  %v757 = vpop.f32.mrb[0].mxu0
  %758 = vmatprep.mubr.bf16.mxu0 %v359
  %759 = vmatmul.mubr.bf16.gmra.mrb[0].mxu0 %v358
  %v760 = vpop.f32.mrb[0].mxu0
  %v761 = vadd.f32 %v116, %v760
  %v762 = vpop.f32.mrb[0].mxu0
  %v763 = vpop.f32.mrb[0].mxu0
  %v764 = vadd.f32 %v116, %v763
  %v765 = vpop.f32.mrb[0].mxu0
  %766 = vmatprep.mubr.bf16.mxu0 %v361
  %767 = vmatmul.mubr.bf16.gmra.mrb[0].mxu0 %v360
  %v768 = vpop.f32.mrb[0].mxu0
  %v769 = vadd.f32 %v116, %v768
  %v770 = vpop.f32.mrb[0].mxu0
  %v771 = vpop.f32.mrb[0].mxu0
  %v772 = vadd.f32 %v116, %v771
  %v773 = vpop.f32.mrb[0].mxu0
  %774 = vmatprep.mubr.bf16.mxu0 %v363
  %775 = vmatmul.mubr.bf16.gmra.mrb[0].mxu0 %v362
  %v776 = vpop.f32.mrb[0].mxu0
  %v777 = vadd.f32 %v116, %v776
  %v778 = vpop.f32.mrb[0].mxu0
  %v779 = vpop.f32.mrb[0].mxu0
  %v780 = vadd.f32 %v116, %v779
  %v781 = vpop.f32.mrb[0].mxu0
  %782 = vmatprep.mubr.bf16.mxu0 %v365
  %783 = vmatmul.mubr.bf16.gmra.mrb[0].mxu0 %v364
  %v784 = vpop.f32.mrb[0].mxu0
  %v785 = vadd.f32 %v116, %v784
  %v786 = vpop.f32.mrb[0].mxu0
  %v787 = vpop.f32.mrb[0].mxu0
  %v788 = vadd.f32 %v116, %v787
  %v789 = vpop.f32.mrb[0].mxu0
  %790 = vmatprep.mubr.bf16.mxu0 %v367
  %791 = vmatmul.mubr.bf16.gmra.mrb[0].mxu0 %v366
  %v792 = vpop.f32.mrb[0].mxu0
  %v793 = vadd.f32 %v116, %v792
  %v794 = vpop.f32.mrb[0].mxu0
  %v795 = vpop.f32.mrb[0].mxu0
  %v796 = vadd.f32 %v116, %v795
  %v797 = vpop.f32.mrb[0].mxu0
  %798 = vmatprep.mubr.bf16.mxu0 %v369
  %799 = vmatmul.mubr.bf16.gmra.mrb[0].mxu0 %v368
  %v800 = vpop.f32.mrb[0].mxu0
  %v801 = vadd.f32 %v116, %v800
  %v802 = vpop.f32.mrb[0].mxu0
  %v803 = vpop.f32.mrb[0].mxu0
  %v804 = vadd.f32 %v116, %v803
  %v805 = vpop.f32.mrb[0].mxu0
  %806 = vmatprep.mubr.bf16.mxu0 %v371
  %807 = vmatmul.mubr.bf16.gmra.mrb[0].mxu0 %v370
  %v808 = vpop.f32.mrb[0].mxu0
  %v809 = vadd.f32 %v116, %v808
  %v810 = vpop.f32.mrb[0].mxu0
  %v811 = vpop.f32.mrb[0].mxu0
  %v812 = vadd.f32 %v116, %v811
  %v813 = vpop.f32.mrb[0].mxu0
  %814 = vmatprep.mubr.bf16.mxu0 %v373
  %815 = vmatmul.mubr.bf16.gmra.mrb[0].mxu0 %v372
  %v816 = vpop.f32.mrb[0].mxu0
  %v817 = vadd.f32 %v116, %v816
  %v818 = vpop.f32.mrb[0].mxu0
  %v819 = vpop.f32.mrb[0].mxu0
  %v820 = vadd.f32 %v116, %v819
  %v821 = vpop.f32.mrb[0].mxu0
  %822 = vdwg.mxu0
  %v823 = vand.u32 2147483647, %v569
  %v824 = vand.u32 2147483647, %v572
  %v825 = vand.u32 2147483647, %v577
  %v826 = vand.u32 2147483647, %v580
  %v827 = vand.u32 2147483647, %v585
  %v828 = vand.u32 2147483647, %v588
  %v829 = vand.u32 2147483647, %v593
  %v830 = vand.u32 2147483647, %v596
  %v831 = vand.u32 2147483647, %v601
  %v832 = vand.u32 2147483647, %v604
  %v833 = vand.u32 2147483647, %v609
  %v834 = vand.u32 2147483647, %v612
  %v835 = vand.u32 2147483647, %v617
  %v836 = vand.u32 2147483647, %v620
  %v837 = vand.u32 2147483647, %v625
  %v838 = vand.u32 2147483647, %v628
  %v839 = vand.u32 2147483647, %v633
  %v840 = vand.u32 2147483647, %v636
  %v841 = vand.u32 2147483647, %v641
  %v842 = vand.u32 2147483647, %v644
  %v843 = vand.u32 2147483647, %v649
  %v844 = vand.u32 2147483647, %v652
  %v845 = vand.u32 2147483647, %v657
  %v846 = vand.u32 2147483647, %v660
  %v847 = vand.u32 2147483647, %v665
  %v848 = vand.u32 2147483647, %v668
  %v849 = vand.u32 2147483647, %v673
  %v850 = vand.u32 2147483647, %v676
  %v851 = vand.u32 2147483647, %v681
  %v852 = vand.u32 2147483647, %v684
  %v853 = vand.u32 2147483647, %v689
  %v854 = vand.u32 2147483647, %v692
  %v855 = vand.u32 2147483647, %v697
  %v856 = vand.u32 2147483647, %v700
  %v857 = vand.u32 2147483647, %v705
  %v858 = vand.u32 2147483647, %v708
  %v859 = vand.u32 2147483647, %v713
  %v860 = vand.u32 2147483647, %v716
  %v861 = vand.u32 2147483647, %v721
  %v862 = vand.u32 2147483647, %v724
  %v863 = vand.u32 2147483647, %v729
  %v864 = vand.u32 2147483647, %v732
  %v865 = vand.u32 2147483647, %v737
  %v866 = vand.u32 2147483647, %v740
  %v867 = vand.u32 2147483647, %v745
  %v868 = vand.u32 2147483647, %v748
  %v869 = vand.u32 2147483647, %v753
  %v870 = vand.u32 2147483647, %v756
  %v871 = vand.u32 2147483647, %v761
  %v872 = vand.u32 2147483647, %v764
  %v873 = vand.u32 2147483647, %v769
  %v874 = vand.u32 2147483647, %v772
  %v875 = vand.u32 2147483647, %v777
  %v876 = vand.u32 2147483647, %v780
  %v877 = vand.u32 2147483647, %v785
  %v878 = vand.u32 2147483647, %v788
  %v879 = vand.u32 2147483647, %v793
  %v880 = vand.u32 2147483647, %v796
  %v881 = vand.u32 2147483647, %v801
  %v882 = vand.u32 2147483647, %v804
  %v883 = vand.u32 2147483647, %v809
  %v884 = vand.u32 2147483647, %v812
  %v885 = vand.u32 2147483647, %v817
  %v886 = vand.u32 2147483647, %v820
  %v887 = vsub.f32 0.0, %v823
  %v888 = vsub.f32 0.0, %v824
  %v889 = vsub.f32 0.0, %v825
  %v890 = vsub.f32 0.0, %v826
  %v891 = vsub.f32 0.0, %v827
  %v892 = vsub.f32 0.0, %v828
  %v893 = vsub.f32 0.0, %v829
  %v894 = vsub.f32 0.0, %v830
  %v895 = vsub.f32 0.0, %v831
  %v896 = vsub.f32 0.0, %v832
  %v897 = vsub.f32 0.0, %v833
  %v898 = vsub.f32 0.0, %v834
  %v899 = vsub.f32 0.0, %v835
  %v900 = vsub.f32 0.0, %v836
  %v901 = vsub.f32 0.0, %v837
  %v902 = vsub.f32 0.0, %v838
  %v903 = vsub.f32 0.0, %v839
  %v904 = vsub.f32 0.0, %v840
  %v905 = vsub.f32 0.0, %v841
  %v906 = vsub.f32 0.0, %v842
  %v907 = vsub.f32 0.0, %v843
  %v908 = vsub.f32 0.0, %v844
  %v909 = vsub.f32 0.0, %v845
  %v910 = vsub.f32 0.0, %v846
  %v911 = vsub.f32 0.0, %v847
  %v912 = vsub.f32 0.0, %v848
  %v913 = vsub.f32 0.0, %v849
  %v914 = vsub.f32 0.0, %v850
  %v915 = vsub.f32 0.0, %v851
  %v916 = vsub.f32 0.0, %v852
  %v917 = vsub.f32 0.0, %v853
  %v918 = vsub.f32 0.0, %v854
  %v919 = vsub.f32 0.0, %v855
  %v920 = vsub.f32 0.0, %v856
  %v921 = vsub.f32 0.0, %v857
  %v922 = vsub.f32 0.0, %v858
  %v923 = vsub.f32 0.0, %v859
  %v924 = vsub.f32 0.0, %v860
  %v925 = vsub.f32 0.0, %v861
  %v926 = vsub.f32 0.0, %v862
  %v927 = vsub.f32 0.0, %v863
  %v928 = vsub.f32 0.0, %v864
  %v929 = vsub.f32 0.0, %v865
  %v930 = vsub.f32 0.0, %v866
  %v931 = vsub.f32 0.0, %v867
  %v932 = vsub.f32 0.0, %v868
  %v933 = vsub.f32 0.0, %v869
  %v934 = vsub.f32 0.0, %v870
  %v935 = vsub.f32 0.0, %v871
  %v936 = vsub.f32 0.0, %v872
  %v937 = vsub.f32 0.0, %v873
  %v938 = vsub.f32 0.0, %v874
  %v939 = vsub.f32 0.0, %v875
  %v940 = vsub.f32 0.0, %v876
  %v941 = vsub.f32 0.0, %v877
  %v942 = vsub.f32 0.0, %v878
  %v943 = vsub.f32 0.0, %v879
  %v944 = vsub.f32 0.0, %v880
  %v945 = vsub.f32 0.0, %v881
  %v946 = vsub.f32 0.0, %v882
  %v947 = vsub.f32 0.0, %v883
  %v948 = vsub.f32 0.0, %v884
  %v949 = vsub.f32 0.0, %v885
  %v950 = vsub.f32 0.0, %v886
  %v951 = vmul.f32 %v887, 1.442695
  %v952 = vpow.pop %v951
  %v953 = vmul.f32 %v888, 1.442695
  %v954 = vpow.pop %v953
  %v955 = vmul.f32 %v889, 1.442695
  %v956 = vpow.pop %v955
  %v957 = vmul.f32 %v890, 1.442695
  %v958 = vpow.pop %v957
  %v959 = vmul.f32 %v891, 1.442695
  %v960 = vpow.pop %v959
  %v961 = vmul.f32 %v892, 1.442695
  %v962 = vpow.pop %v961
  %v963 = vmul.f32 %v893, 1.442695
  %v964 = vpow.pop %v963
  %v965 = vmul.f32 %v894, 1.442695
  %v966 = vpow.pop %v965
  %v967 = vmul.f32 %v895, 1.442695
  %v968 = vpow.pop %v967
  %v969 = vmul.f32 %v896, 1.442695
  %v970 = vpow.pop %v969
  %v971 = vmul.f32 %v897, 1.442695
  %v972 = vpow.pop %v971
  %v973 = vmul.f32 %v898, 1.442695
  %v974 = vpow.pop %v973
  %v975 = vmul.f32 %v899, 1.442695
  %v976 = vpow.pop %v975
  %v977 = vmul.f32 %v900, 1.442695
  %v978 = vpow.pop %v977
  %v979 = vmul.f32 %v901, 1.442695
  %v980 = vpow.pop %v979
  %v981 = vmul.f32 %v902, 1.442695
  %v982 = vpow.pop %v981
  %v983 = vmul.f32 %v903, 1.442695
  %v984 = vpow.pop %v983
  %v985 = vmul.f32 %v904, 1.442695
  %v986 = vpow.pop %v985
  %v987 = vmul.f32 %v905, 1.442695
  %v988 = vpow.pop %v987
  %v989 = vmul.f32 %v906, 1.442695
  %v990 = vpow.pop %v989
  %v991 = vmul.f32 %v907, 1.442695
  %v992 = vpow.pop %v991
  %v993 = vmul.f32 %v908, 1.442695
  %v994 = vpow.pop %v993
  %v995 = vmul.f32 %v909, 1.442695
  %v996 = vpow.pop %v995
  %v997 = vmul.f32 %v910, 1.442695
  %v998 = vpow.pop %v997
  %v999 = vmul.f32 %v911, 1.442695
  %v1000 = vpow.pop %v999
  %v1001 = vmul.f32 %v912, 1.442695
  %v1002 = vpow.pop %v1001
  %v1003 = vmul.f32 %v913, 1.442695
  %v1004 = vpow.pop %v1003
  %v1005 = vmul.f32 %v914, 1.442695
  %v1006 = vpow.pop %v1005
  %v1007 = vmul.f32 %v915, 1.442695
  %v1008 = vpow.pop %v1007
  %v1009 = vmul.f32 %v916, 1.442695
  %v1010 = vpow.pop %v1009
  %v1011 = vmul.f32 %v917, 1.442695
  %v1012 = vpow.pop %v1011
  %v1013 = vmul.f32 %v918, 1.442695
  %v1014 = vpow.pop %v1013
  %v1015 = vmul.f32 %v919, 1.442695
  %v1016 = vpow.pop %v1015
  %v1017 = vmul.f32 %v920, 1.442695
  %v1018 = vpow.pop %v1017
  %v1019 = vmul.f32 %v921, 1.442695
  %v1020 = vpow.pop %v1019
  %v1021 = vmul.f32 %v922, 1.442695
  %v1022 = vpow.pop %v1021
  %v1023 = vmul.f32 %v923, 1.442695
  %v1024 = vpow.pop %v1023
  %v1025 = vmul.f32 %v924, 1.442695
  %v1026 = vpow.pop %v1025
  %v1027 = vmul.f32 %v925, 1.442695
  %v1028 = vpow.pop %v1027
  %v1029 = vmul.f32 %v926, 1.442695
  %v1030 = vpow.pop %v1029
  %v1031 = vmul.f32 %v927, 1.442695
  %v1032 = vpow.pop %v1031
  %v1033 = vmul.f32 %v928, 1.442695
  %v1034 = vpow.pop %v1033
  %v1035 = vmul.f32 %v929, 1.442695
  %v1036 = vpow.pop %v1035
  %v1037 = vmul.f32 %v930, 1.442695
  %v1038 = vpow.pop %v1037
  %v1039 = vmul.f32 %v931, 1.442695
  %v1040 = vpow.pop %v1039
  %v1041 = vmul.f32 %v932, 1.442695
  %v1042 = vpow.pop %v1041
  %v1043 = vmul.f32 %v933, 1.442695
  %v1044 = vpow.pop %v1043
  %v1045 = vmul.f32 %v934, 1.442695
  %v1046 = vpow.pop %v1045
  %v1047 = vmul.f32 %v935, 1.442695
  %v1048 = vpow.pop %v1047
  %v1049 = vmul.f32 %v936, 1.442695
  %v1050 = vpow.pop %v1049
  %v1051 = vmul.f32 %v937, 1.442695
  %v1052 = vpow.pop %v1051
  %v1053 = vmul.f32 %v938, 1.442695
  %v1054 = vpow.pop %v1053
  %v1055 = vmul.f32 %v939, 1.442695
  %v1056 = vpow.pop %v1055
  %v1057 = vmul.f32 %v940, 1.442695
  %v1058 = vpow.pop %v1057
  %v1059 = vmul.f32 %v941, 1.442695
  %v1060 = vpow.pop %v1059
  %v1061 = vmul.f32 %v942, 1.442695
  %v1062 = vpow.pop %v1061
  %v1063 = vmul.f32 %v943, 1.442695
  %v1064 = vpow.pop %v1063
  %v1065 = vmul.f32 %v944, 1.442695
  %v1066 = vpow.pop %v1065
  %v1067 = vmul.f32 %v945, 1.442695
  %v1068 = vpow.pop %v1067
  %v1069 = vmul.f32 %v946, 1.442695
  %v1070 = vpow.pop %v1069
  %v1071 = vmul.f32 %v947, 1.442695
  %v1072 = vpow.pop %v1071
  %v1073 = vmul.f32 %v948, 1.442695
  %v1074 = vpow.pop %v1073
  %v1075 = vmul.f32 %v949, 1.442695
  %v1076 = vpow.pop %v1075
  %v1077 = vmul.f32 %v950, 1.442695
  %v1078 = vpow.pop %v1077
  %v1079 = vadd.f32 %v952, 1.0
  %v1080 = vadd.f32 %v954, 1.0
  %v1081 = vadd.f32 %v956, 1.0
  %v1082 = vadd.f32 %v958, 1.0
  %v1083 = vadd.f32 %v960, 1.0
  %v1084 = vadd.f32 %v962, 1.0
  %v1085 = vadd.f32 %v964, 1.0
  %v1086 = vadd.f32 %v966, 1.0
  %v1087 = vadd.f32 %v968, 1.0
  %v1088 = vadd.f32 %v970, 1.0
  %v1089 = vadd.f32 %v972, 1.0
  %v1090 = vadd.f32 %v974, 1.0
  %v1091 = vadd.f32 %v976, 1.0
  %v1092 = vadd.f32 %v978, 1.0
  %v1093 = vadd.f32 %v980, 1.0
  %v1094 = vadd.f32 %v982, 1.0
  %v1095 = vadd.f32 %v984, 1.0
  %v1096 = vadd.f32 %v986, 1.0
  %v1097 = vadd.f32 %v988, 1.0
  %v1098 = vadd.f32 %v990, 1.0
  %v1099 = vadd.f32 %v992, 1.0
  %v1100 = vadd.f32 %v994, 1.0
  %v1101 = vadd.f32 %v996, 1.0
  %v1102 = vadd.f32 %v998, 1.0
  %v1103 = vadd.f32 %v1000, 1.0
  %v1104 = vadd.f32 %v1002, 1.0
  %v1105 = vadd.f32 %v1004, 1.0
  %v1106 = vadd.f32 %v1006, 1.0
  %v1107 = vadd.f32 %v1008, 1.0
  %v1108 = vadd.f32 %v1010, 1.0
  %v1109 = vadd.f32 %v1012, 1.0
  %v1110 = vadd.f32 %v1014, 1.0
  %v1111 = vadd.f32 %v1016, 1.0
  %v1112 = vadd.f32 %v1018, 1.0
  %v1113 = vadd.f32 %v1020, 1.0
  %v1114 = vadd.f32 %v1022, 1.0
  %v1115 = vadd.f32 %v1024, 1.0
  %v1116 = vadd.f32 %v1026, 1.0
  %v1117 = vadd.f32 %v1028, 1.0
  %v1118 = vadd.f32 %v1030, 1.0
  %v1119 = vadd.f32 %v1032, 1.0
  %v1120 = vadd.f32 %v1034, 1.0
  %v1121 = vadd.f32 %v1036, 1.0
  %v1122 = vadd.f32 %v1038, 1.0
  %v1123 = vadd.f32 %v1040, 1.0
  %v1124 = vadd.f32 %v1042, 1.0
  %v1125 = vadd.f32 %v1044, 1.0
  %v1126 = vadd.f32 %v1046, 1.0
  %v1127 = vadd.f32 %v1048, 1.0
  %v1128 = vadd.f32 %v1050, 1.0
  %v1129 = vadd.f32 %v1052, 1.0
  %v1130 = vadd.f32 %v1054, 1.0
  %v1131 = vadd.f32 %v1056, 1.0
  %v1132 = vadd.f32 %v1058, 1.0
  %v1133 = vadd.f32 %v1060, 1.0
  %v1134 = vadd.f32 %v1062, 1.0
  %v1135 = vadd.f32 %v1064, 1.0
  %v1136 = vadd.f32 %v1066, 1.0
  %v1137 = vadd.f32 %v1068, 1.0
  %v1138 = vadd.f32 %v1070, 1.0
  %v1139 = vadd.f32 %v1072, 1.0
  %v1140 = vadd.f32 %v1074, 1.0
  %v1141 = vadd.f32 %v1076, 1.0
  %v1142 = vadd.f32 %v1078, 1.0
  %v1143 = vrcp.pop %v1079
  %v1144 = vrcp.pop %v1080
  %v1145 = vrcp.pop %v1081
  %v1146 = vrcp.pop %v1082
  %v1147 = vrcp.pop %v1083
  %v1148 = vrcp.pop %v1084
  %v1149 = vrcp.pop %v1085
  %v1150 = vrcp.pop %v1086
  %v1151 = vrcp.pop %v1087
  %v1152 = vrcp.pop %v1088
  %v1153 = vrcp.pop %v1089
  %v1154 = vrcp.pop %v1090
  %v1155 = vrcp.pop %v1091
  %v1156 = vrcp.pop %v1092
  %v1157 = vrcp.pop %v1093
  %v1158 = vrcp.pop %v1094
  %v1159 = vrcp.pop %v1095
  %v1160 = vrcp.pop %v1096
  %v1161 = vrcp.pop %v1097
  %v1162 = vrcp.pop %v1098
  %v1163 = vrcp.pop %v1099
  %v1164 = vrcp.pop %v1100
  %v1165 = vrcp.pop %v1101
  %v1166 = vrcp.pop %v1102
  %v1167 = vrcp.pop %v1103
  %v1168 = vrcp.pop %v1104
  %v1169 = vrcp.pop %v1105
  %v1170 = vrcp.pop %v1106
  %v1171 = vrcp.pop %v1107
  %v1172 = vrcp.pop %v1108
  %v1173 = vrcp.pop %v1109
  %v1174 = vrcp.pop %v1110
  %v1175 = vrcp.pop %v1111
  %v1176 = vrcp.pop %v1112
  %v1177 = vrcp.pop %v1113
  %v1178 = vrcp.pop %v1114
  %v1179 = vrcp.pop %v1115
  %v1180 = vrcp.pop %v1116
  %v1181 = vrcp.pop %v1117
  %v1182 = vrcp.pop %v1118
  %v1183 = vrcp.pop %v1119
  %v1184 = vrcp.pop %v1120
  %v1185 = vrcp.pop %v1121
  %v1186 = vrcp.pop %v1122
  %v1187 = vrcp.pop %v1123
  %v1188 = vrcp.pop %v1124
  %v1189 = vrcp.pop %v1125
  %v1190 = vrcp.pop %v1126
  %v1191 = vrcp.pop %v1127
  %v1192 = vrcp.pop %v1128
  %v1193 = vrcp.pop %v1129
  %v1194 = vrcp.pop %v1130
  %v1195 = vrcp.pop %v1131
  %v1196 = vrcp.pop %v1132
  %v1197 = vrcp.pop %v1133
  %v1198 = vrcp.pop %v1134
  %v1199 = vrcp.pop %v1135
  %v1200 = vrcp.pop %v1136
  %v1201 = vrcp.pop %v1137
  %v1202 = vrcp.pop %v1138
  %v1203 = vrcp.pop %v1139
  %v1204 = vrcp.pop %v1140
  %v1205 = vrcp.pop %v1141
  %v1206 = vrcp.pop %v1142
  %vm1207 = vcmp.ge.f32.partialorder %v569, 0.0
  %vm1208 = vcmp.ge.f32.partialorder %v572, 0.0
  %vm1209 = vcmp.ge.f32.partialorder %v577, 0.0
  %vm1210 = vcmp.ge.f32.partialorder %v580, 0.0
  %vm1211 = vcmp.ge.f32.partialorder %v585, 0.0
  %vm1212 = vcmp.ge.f32.partialorder %v588, 0.0
  %vm1213 = vcmp.ge.f32.partialorder %v593, 0.0
  %vm1214 = vcmp.ge.f32.partialorder %v596, 0.0
  %vm1215 = vcmp.ge.f32.partialorder %v601, 0.0
  %vm1216 = vcmp.ge.f32.partialorder %v604, 0.0
  %vm1217 = vcmp.ge.f32.partialorder %v609, 0.0
  %vm1218 = vcmp.ge.f32.partialorder %v612, 0.0
  %vm1219 = vcmp.ge.f32.partialorder %v617, 0.0
  %vm1220 = vcmp.ge.f32.partialorder %v620, 0.0
  %vm1221 = vcmp.ge.f32.partialorder %v625, 0.0
  %vm1222 = vcmp.ge.f32.partialorder %v628, 0.0
  %vm1223 = vcmp.ge.f32.partialorder %v633, 0.0
  %vm1224 = vcmp.ge.f32.partialorder %v636, 0.0
  %vm1225 = vcmp.ge.f32.partialorder %v641, 0.0
  %vm1226 = vcmp.ge.f32.partialorder %v644, 0.0
  %vm1227 = vcmp.ge.f32.partialorder %v649, 0.0
  %vm1228 = vcmp.ge.f32.partialorder %v652, 0.0
  %vm1229 = vcmp.ge.f32.partialorder %v657, 0.0
  %vm1230 = vcmp.ge.f32.partialorder %v660, 0.0
  %vm1231 = vcmp.ge.f32.partialorder %v665, 0.0
  %vm1232 = vcmp.ge.f32.partialorder %v668, 0.0
  %vm1233 = vcmp.ge.f32.partialorder %v673, 0.0
  %vm1234 = vcmp.ge.f32.partialorder %v676, 0.0
  %vm1235 = vcmp.ge.f32.partialorder %v681, 0.0
  %vm1236 = vcmp.ge.f32.partialorder %v684, 0.0
  %vm1237 = vcmp.ge.f32.partialorder %v689, 0.0
  %vm1238 = vcmp.ge.f32.partialorder %v692, 0.0
  %vm1239 = vcmp.ge.f32.partialorder %v697, 0.0
  %vm1240 = vcmp.ge.f32.partialorder %v700, 0.0
  %vm1241 = vcmp.ge.f32.partialorder %v705, 0.0
  %vm1242 = vcmp.ge.f32.partialorder %v708, 0.0
  %vm1243 = vcmp.ge.f32.partialorder %v713, 0.0
  %vm1244 = vcmp.ge.f32.partialorder %v716, 0.0
  %vm1245 = vcmp.ge.f32.partialorder %v721, 0.0
  %vm1246 = vcmp.ge.f32.partialorder %v724, 0.0
  %vm1247 = vcmp.ge.f32.partialorder %v729, 0.0
  %vm1248 = vcmp.ge.f32.partialorder %v732, 0.0
  %vm1249 = vcmp.ge.f32.partialorder %v737, 0.0
  %vm1250 = vcmp.ge.f32.partialorder %v740, 0.0
  %vm1251 = vcmp.ge.f32.partialorder %v745, 0.0
  %vm1252 = vcmp.ge.f32.partialorder %v748, 0.0
  %vm1253 = vcmp.ge.f32.partialorder %v753, 0.0
  %vm1254 = vcmp.ge.f32.partialorder %v756, 0.0
  %vm1255 = vcmp.ge.f32.partialorder %v761, 0.0
  %vm1256 = vcmp.ge.f32.partialorder %v764, 0.0
  %vm1257 = vcmp.ge.f32.partialorder %v769, 0.0
  %vm1258 = vcmp.ge.f32.partialorder %v772, 0.0
  %vm1259 = vcmp.ge.f32.partialorder %v777, 0.0
  %vm1260 = vcmp.ge.f32.partialorder %v780, 0.0
  %vm1261 = vcmp.ge.f32.partialorder %v785, 0.0
  %vm1262 = vcmp.ge.f32.partialorder %v788, 0.0
  %vm1263 = vcmp.ge.f32.partialorder %v793, 0.0
  %vm1264 = vcmp.ge.f32.partialorder %v796, 0.0
  %vm1265 = vcmp.ge.f32.partialorder %v801, 0.0
  %vm1266 = vcmp.ge.f32.partialorder %v804, 0.0
  %vm1267 = vcmp.ge.f32.partialorder %v809, 0.0
  %vm1268 = vcmp.ge.f32.partialorder %v812, 0.0
  %vm1269 = vcmp.ge.f32.partialorder %v817, 0.0
  %vm1270 = vcmp.ge.f32.partialorder %v820, 0.0
  %v1271 = vmul.f32 %v952, %v1143
  %v1272 = vmul.f32 %v954, %v1144
  %v1273 = vmul.f32 %v956, %v1145
  %v1274 = vmul.f32 %v958, %v1146
  %v1275 = vmul.f32 %v960, %v1147
  %v1276 = vmul.f32 %v962, %v1148
  %v1277 = vmul.f32 %v964, %v1149
  %v1278 = vmul.f32 %v966, %v1150
  %v1279 = vmul.f32 %v968, %v1151
  %v1280 = vmul.f32 %v970, %v1152
  %v1281 = vmul.f32 %v972, %v1153
  %v1282 = vmul.f32 %v974, %v1154
  %v1283 = vmul.f32 %v976, %v1155
  %v1284 = vmul.f32 %v978, %v1156
  %v1285 = vmul.f32 %v980, %v1157
  %v1286 = vmul.f32 %v982, %v1158
  %v1287 = vmul.f32 %v984, %v1159
  %v1288 = vmul.f32 %v986, %v1160
  %v1289 = vmul.f32 %v988, %v1161
  %v1290 = vmul.f32 %v990, %v1162
  %v1291 = vmul.f32 %v992, %v1163
  %v1292 = vmul.f32 %v994, %v1164
  %v1293 = vmul.f32 %v996, %v1165
  %v1294 = vmul.f32 %v998, %v1166
  %v1295 = vmul.f32 %v1000, %v1167
  %v1296 = vmul.f32 %v1002, %v1168
  %v1297 = vmul.f32 %v1004, %v1169
  %v1298 = vmul.f32 %v1006, %v1170
  %v1299 = vmul.f32 %v1008, %v1171
  %v1300 = vmul.f32 %v1010, %v1172
  %v1301 = vmul.f32 %v1012, %v1173
  %v1302 = vmul.f32 %v1014, %v1174
  %v1303 = vmul.f32 %v1016, %v1175
  %v1304 = vmul.f32 %v1018, %v1176
  %v1305 = vmul.f32 %v1020, %v1177
  %v1306 = vmul.f32 %v1022, %v1178
  %v1307 = vmul.f32 %v1024, %v1179
  %v1308 = vmul.f32 %v1026, %v1180
  %v1309 = vmul.f32 %v1028, %v1181
  %v1310 = vmul.f32 %v1030, %v1182
  %v1311 = vmul.f32 %v1032, %v1183
  %v1312 = vmul.f32 %v1034, %v1184
  %v1313 = vmul.f32 %v1036, %v1185
  %v1314 = vmul.f32 %v1038, %v1186
  %v1315 = vmul.f32 %v1040, %v1187
  %v1316 = vmul.f32 %v1042, %v1188
  %v1317 = vmul.f32 %v1044, %v1189
  %v1318 = vmul.f32 %v1046, %v1190
  %v1319 = vmul.f32 %v1048, %v1191
  %v1320 = vmul.f32 %v1050, %v1192
  %v1321 = vmul.f32 %v1052, %v1193
  %v1322 = vmul.f32 %v1054, %v1194
  %v1323 = vmul.f32 %v1056, %v1195
  %v1324 = vmul.f32 %v1058, %v1196
  %v1325 = vmul.f32 %v1060, %v1197
  %v1326 = vmul.f32 %v1062, %v1198
  %v1327 = vmul.f32 %v1064, %v1199
  %v1328 = vmul.f32 %v1066, %v1200
  %v1329 = vmul.f32 %v1068, %v1201
  %v1330 = vmul.f32 %v1070, %v1202
  %v1331 = vmul.f32 %v1072, %v1203
  %v1332 = vmul.f32 %v1074, %v1204
  %v1333 = vmul.f32 %v1076, %v1205
  %v1334 = vmul.f32 %v1078, %v1206
  %v1335 = vsel %vm1207, %v1143, %v1271
  %v1336 = vsel %vm1208, %v1144, %v1272
  %v1337 = vsel %vm1209, %v1145, %v1273
  %v1338 = vsel %vm1210, %v1146, %v1274
  %v1339 = vsel %vm1211, %v1147, %v1275
  %v1340 = vsel %vm1212, %v1148, %v1276
  %v1341 = vsel %vm1213, %v1149, %v1277
  %v1342 = vsel %vm1214, %v1150, %v1278
  %v1343 = vsel %vm1215, %v1151, %v1279
  %v1344 = vsel %vm1216, %v1152, %v1280
  %v1345 = vsel %vm1217, %v1153, %v1281
  %v1346 = vsel %vm1218, %v1154, %v1282
  %v1347 = vsel %vm1219, %v1155, %v1283
  %v1348 = vsel %vm1220, %v1156, %v1284
  %v1349 = vsel %vm1221, %v1157, %v1285
  %v1350 = vsel %vm1222, %v1158, %v1286
  %v1351 = vsel %vm1223, %v1159, %v1287
  %v1352 = vsel %vm1224, %v1160, %v1288
  %v1353 = vsel %vm1225, %v1161, %v1289
  %v1354 = vsel %vm1226, %v1162, %v1290
  %v1355 = vsel %vm1227, %v1163, %v1291
  %v1356 = vsel %vm1228, %v1164, %v1292
  %v1357 = vsel %vm1229, %v1165, %v1293
  %v1358 = vsel %vm1230, %v1166, %v1294
  %v1359 = vsel %vm1231, %v1167, %v1295
  %v1360 = vsel %vm1232, %v1168, %v1296
  %v1361 = vsel %vm1233, %v1169, %v1297
  %v1362 = vsel %vm1234, %v1170, %v1298
  %v1363 = vsel %vm1235, %v1171, %v1299
  %v1364 = vsel %vm1236, %v1172, %v1300
  %v1365 = vsel %vm1237, %v1173, %v1301
  %v1366 = vsel %vm1238, %v1174, %v1302
  %v1367 = vsel %vm1239, %v1175, %v1303
  %v1368 = vsel %vm1240, %v1176, %v1304
  %v1369 = vsel %vm1241, %v1177, %v1305
  %v1370 = vsel %vm1242, %v1178, %v1306
  %v1371 = vsel %vm1243, %v1179, %v1307
  %v1372 = vsel %vm1244, %v1180, %v1308
  %v1373 = vsel %vm1245, %v1181, %v1309
  %v1374 = vsel %vm1246, %v1182, %v1310
  %v1375 = vsel %vm1247, %v1183, %v1311
  %v1376 = vsel %vm1248, %v1184, %v1312
  %v1377 = vsel %vm1249, %v1185, %v1313
  %v1378 = vsel %vm1250, %v1186, %v1314
  %v1379 = vsel %vm1251, %v1187, %v1315
  %v1380 = vsel %vm1252, %v1188, %v1316
  %v1381 = vsel %vm1253, %v1189, %v1317
  %v1382 = vsel %vm1254, %v1190, %v1318
  %v1383 = vsel %vm1255, %v1191, %v1319
  %v1384 = vsel %vm1256, %v1192, %v1320
  %v1385 = vsel %vm1257, %v1193, %v1321
  %v1386 = vsel %vm1258, %v1194, %v1322
  %v1387 = vsel %vm1259, %v1195, %v1323
  %v1388 = vsel %vm1260, %v1196, %v1324
  %v1389 = vsel %vm1261, %v1197, %v1325
  %v1390 = vsel %vm1262, %v1198, %v1326
  %v1391 = vsel %vm1263, %v1199, %v1327
  %v1392 = vsel %vm1264, %v1200, %v1328
  %v1393 = vsel %vm1265, %v1201, %v1329
  %v1394 = vsel %vm1266, %v1202, %v1330
  %v1395 = vsel %vm1267, %v1203, %v1331
  %v1396 = vsel %vm1268, %v1204, %v1332
  %v1397 = vsel %vm1269, %v1205, %v1333
  %v1398 = vsel %vm1270, %v1206, %v1334
  %vm1399 = vcmask 23552
  %1400 = vst.msk [vmem:[%s3] sm:$0xff] %vm1399, %v1335
  %1401 = vst.msk [vmem:[%s3 + $0x8] sm:$0xff] %vm1399, %v1336
  %1402 = vst.msk [vmem:[%s3 + $0x10] sm:$0xff] %vm1399, %v1337
  %1403 = vst.msk [vmem:[%s3 + $0x18] sm:$0xff] %vm1399, %v1338
  %1404 = vst.msk [vmem:[%s3 + $0x20] sm:$0xff] %vm1399, %v1339
  %1405 = vst.msk [vmem:[%s3 + $0x28] sm:$0xff] %vm1399, %v1340
  %1406 = vst.msk [vmem:[%s3 + $0x30] sm:$0xff] %vm1399, %v1341
  %1407 = vst.msk [vmem:[%s3 + $0x38] sm:$0xff] %vm1399, %v1342
  %1408 = vst.msk [vmem:[%s3 + $0x40] sm:$0xff] %vm1399, %v1343
  %1409 = vst.msk [vmem:[%s3 + $0x48] sm:$0xff] %vm1399, %v1344
  %1410 = vst.msk [vmem:[%s3 + $0x50] sm:$0xff] %vm1399, %v1345
  %1411 = vst.msk [vmem:[%s3 + $0x58] sm:$0xff] %vm1399, %v1346
  %1412 = vst.msk [vmem:[%s3 + $0x60] sm:$0xff] %vm1399, %v1347
  %1413 = vst.msk [vmem:[%s3 + $0x68] sm:$0xff] %vm1399, %v1348
  %1414 = vst.msk [vmem:[%s3 + $0x70] sm:$0xff] %vm1399, %v1349
  %1415 = vst.msk [vmem:[%s3 + $0x78] sm:$0xff] %vm1399, %v1350
  %1416 = vst.msk [vmem:[%s3 + $0x80] sm:$0xff] %vm1399, %v1351
  %1417 = vst.msk [vmem:[%s3 + $0x88] sm:$0xff] %vm1399, %v1352
  %1418 = vst.msk [vmem:[%s3 + $0x90] sm:$0xff] %vm1399, %v1353
  %1419 = vst.msk [vmem:[%s3 + $0x98] sm:$0xff] %vm1399, %v1354
  %1420 = vst.msk [vmem:[%s3 + $0xa0] sm:$0xff] %vm1399, %v1355
  %1421 = vst.msk [vmem:[%s3 + $0xa8] sm:$0xff] %vm1399, %v1356
  %1422 = vst.msk [vmem:[%s3 + $0xb0] sm:$0xff] %vm1399, %v1357
  %1423 = vst.msk [vmem:[%s3 + $0xb8] sm:$0xff] %vm1399, %v1358
  %1424 = vst.msk [vmem:[%s3 + $0xc0] sm:$0xff] %vm1399, %v1359
  %1425 = vst.msk [vmem:[%s3 + $0xc8] sm:$0xff] %vm1399, %v1360
  %1426 = vst.msk [vmem:[%s3 + $0xd0] sm:$0xff] %vm1399, %v1361
  %1427 = vst.msk [vmem:[%s3 + $0xd8] sm:$0xff] %vm1399, %v1362
  %1428 = vst.msk [vmem:[%s3 + $0xe0] sm:$0xff] %vm1399, %v1363
  %1429 = vst.msk [vmem:[%s3 + $0xe8] sm:$0xff] %vm1399, %v1364
  %1430 = vst.msk [vmem:[%s3 + $0xf0] sm:$0xff] %vm1399, %v1365
  %1431 = vst.msk [vmem:[%s3 + $0xf8] sm:$0xff] %vm1399, %v1366
  %1432 = vst.msk [vmem:[%s3 + $0x100] sm:$0xff] %vm1399, %v1367
  %1433 = vst.msk [vmem:[%s3 + $0x108] sm:$0xff] %vm1399, %v1368
  %1434 = vst.msk [vmem:[%s3 + $0x110] sm:$0xff] %vm1399, %v1369
  %1435 = vst.msk [vmem:[%s3 + $0x118] sm:$0xff] %vm1399, %v1370
  %1436 = vst.msk [vmem:[%s3 + $0x120] sm:$0xff] %vm1399, %v1371
  %1437 = vst.msk [vmem:[%s3 + $0x128] sm:$0xff] %vm1399, %v1372
  %1438 = vst.msk [vmem:[%s3 + $0x130] sm:$0xff] %vm1399, %v1373
  %1439 = vst.msk [vmem:[%s3 + $0x138] sm:$0xff] %vm1399, %v1374
  %1440 = vst.msk [vmem:[%s3 + $0x140] sm:$0xff] %vm1399, %v1375
  %1441 = vst.msk [vmem:[%s3 + $0x148] sm:$0xff] %vm1399, %v1376
  %1442 = vst.msk [vmem:[%s3 + $0x150] sm:$0xff] %vm1399, %v1377
  %1443 = vst.msk [vmem:[%s3 + $0x158] sm:$0xff] %vm1399, %v1378
  %1444 = vst.msk [vmem:[%s3 + $0x160] sm:$0xff] %vm1399, %v1379
  %1445 = vst.msk [vmem:[%s3 + $0x168] sm:$0xff] %vm1399, %v1380
  %1446 = vst.msk [vmem:[%s3 + $0x170] sm:$0xff] %vm1399, %v1381
  %1447 = vst.msk [vmem:[%s3 + $0x178] sm:$0xff] %vm1399, %v1382
  %1448 = vst.msk [vmem:[%s3 + $0x180] sm:$0xff] %vm1399, %v1383
  %1449 = vst.msk [vmem:[%s3 + $0x188] sm:$0xff] %vm1399, %v1384
  %1450 = vst.msk [vmem:[%s3 + $0x190] sm:$0xff] %vm1399, %v1385
  %1451 = vst.msk [vmem:[%s3 + $0x198] sm:$0xff] %vm1399, %v1386
  %1452 = vst.msk [vmem:[%s3 + $0x1a0] sm:$0xff] %vm1399, %v1387
  %1453 = vst.msk [vmem:[%s3 + $0x1a8] sm:$0xff] %vm1399, %v1388
  %1454 = vst.msk [vmem:[%s3 + $0x1b0] sm:$0xff] %vm1399, %v1389
  %1455 = vst.msk [vmem:[%s3 + $0x1b8] sm:$0xff] %vm1399, %v1390
  %1456 = vst.msk [vmem:[%s3 + $0x1c0] sm:$0xff] %vm1399, %v1391
  %1457 = vst.msk [vmem:[%s3 + $0x1c8] sm:$0xff] %vm1399, %v1392
  %1458 = vst.msk [vmem:[%s3 + $0x1d0] sm:$0xff] %vm1399, %v1393
  %1459 = vst.msk [vmem:[%s3 + $0x1d8] sm:$0xff] %vm1399, %v1394
  %1460 = vst.msk [vmem:[%s3 + $0x1e0] sm:$0xff] %vm1399, %v1395
  %1461 = vst.msk [vmem:[%s3 + $0x1e8] sm:$0xff] %vm1399, %v1396
  %1462 = vst.msk [vmem:[%s3 + $0x1f0] sm:$0xff] %vm1399, %v1397
  %1463 = vst.msk [vmem:[%s3 + $0x1f8] sm:$0xff] %vm1399, %v1398
  // Predicated region
  $region14: #{autoencoder_forward.15} parent=0 // pred_check
    _
  $region15: #{autoencoder_forward.15} parent=0 // pred_check_branch
    %1465 = sbr.rel (0) target = $region17
  $region16: #{autoencoder_forward.15} parent=0 // pred_region
    _
  $region17: #{autoencoder_forward.15} parent=0 // pred_fallthru
    _
  // Predicated region
  $region18: #{autoencoder_forward.15} parent=0 // pred_check
    _
  $region19: #{autoencoder_forward.15} parent=0 // pred_check_branch
    %1467 = sbr.rel (0) target = $region21
  $region20: #{autoencoder_forward.15} parent=0 // pred_region
    _
  $region21: #{autoencoder_forward.15} parent=0 // pred_fallthru
    _

</llo_original>
